<compile_context>
chip_gen: v7x
topology: tpu7x:2x2x1
jax: 0.10.0
libtpu: 0.0.40
codegen_flags: <defaults>
</compile_context>

<pallas_src>
import functools

import jax
import jax.numpy as jnp
from jax.experimental import pallas as pl
from jax.experimental.pallas import tpu as pltpu


def _attention_kernel(x_ref, wqkv_ref, wout_ref, bout_ref, o_ref, *,
                      heads, dim_head, scale):
    """One batch element per grid step; lane-dense layout (N = H*W in lanes).

    x_ref:    (1, C, N)  f32   flattened NCHW input
    wqkv_ref: (3*hidden, C) bf16  1x1 conv weight producing q,k,v (no bias)
    wout_ref: (C, hidden)   bf16  1x1 conv weight of the output projection
    bout_ref: (C, 1)        f32   output projection bias
    o_ref:    (1, C, N)
    """
    N = x_ref.shape[2]
    hidden = heads * dim_head

    # ---- qkv projection: (3*hidden, C) @ (C, N), bf16 operands, f32 accumulate
    x = x_ref[0].astype(jnp.bfloat16)                                # (C, N)
    qkv = jnp.dot(wqkv_ref[...], x,
                  preferred_element_type=jnp.float32)                # (3H, N) f32

    q = qkv[0 * hidden:1 * hidden].reshape(heads, dim_head, N)
    k = qkv[1 * hidden:2 * hidden].reshape(heads, dim_head, N)
    v = qkv[2 * hidden:3 * hidden].reshape(heads, dim_head, N)

    # ---- l2norm over the spatial axis (== F.normalize(t, dim=-1), eps=1e-12),
    #      via rsqrt (EUP); `mul` folds the attention scale into q's factor.
    def _l2norm(t, mul):
        ss = jnp.sum(t * t, axis=-1, keepdims=True)                  # (h, d, 1)
        inv = jax.lax.rsqrt(jnp.maximum(ss, 1e-24)) * mul            # (h, d, 1)
        return t * inv

    q = _l2norm(q, scale)   # scale folded here
    k = _l2norm(k, 1.0)

    # ---- sim[h, i, j] = scale * sum_d q_hat[h,d,i] * k_hat[h,d,j]
    sim = jax.lax.dot_general(
        q.astype(jnp.bfloat16), k.astype(jnp.bfloat16),
        (((1,), (1,)), ((0,), (0,))),
        preferred_element_type=jnp.float32)                          # (h, N, N) f32

    # ---- softmax with deferred normalization. |sim| <= scale (=10) because
    #      q, k are unit-norm, so exp cannot overflow and no max-pass is needed.
    p = jnp.exp(sim)                                                 # (h, N, N) f32
    row_sum = jnp.sum(p, axis=-1)                                    # (h, N)    f32

    # ---- out_t[h, d, i] = sum_j v[h, d, j] * p[h, i, j]   (lane-dense in i)
    out_t = jax.lax.dot_general(
        v.astype(jnp.bfloat16), p.astype(jnp.bfloat16),
        (((2,), (2,)), ((0,), (0,))),
        preferred_element_type=jnp.float32)                          # (h, d, N) f32

    inv_l = pl.reciprocal(row_sum, approx=True)                      # (h, N), EUP
    out_t = out_t * inv_l.reshape(heads, 1, N)                       # normalize

    out2 = out_t.reshape(hidden, N).astype(jnp.bfloat16)             # 'b (h d) n'

    # ---- output 1x1 conv: (C, hidden) @ (hidden, N) + bias, lane-dense store
    y = jnp.dot(wout_ref[...], out2, preferred_element_type=jnp.float32)
    y = y + bout_ref[...]                                            # (C, N) f32

    o_ref[0] = y.astype(o_ref.dtype)


def attention_forward(x_nchw, params, *, heads=4, dim_head=32, scale=10.0):
    """Forward pass of `Attention`; input/output are NCHW like the PyTorch module."""
    w_qkv = params["w_qkv"]          # (3*hidden, C, 1, 1)
    w_out = params["w_out"]          # (C, hidden, 1, 1)
    b_out = params["b_out"]          # (C,)

    B, C, H, W = x_nchw.shape
    hidden = heads * dim_head
    N = H * W

    # pure reshapes only; weights cast to bf16 once here (halves weight DMA)
    x_flat = x_nchw.reshape(B, C, N)
    wqkv2 = w_qkv.reshape(3 * hidden, C).astype(jnp.bfloat16)
    wout2 = w_out.reshape(C, hidden).astype(jnp.bfloat16)
    bout2 = b_out.reshape(C, 1).astype(jnp.float32)

    kernel = functools.partial(_attention_kernel, heads=heads,
                               dim_head=dim_head, scale=scale)

    out_flat = pl.pallas_call(
        kernel,
        out_shape=jax.ShapeDtypeStruct((B, C, N), x_nchw.dtype),
        grid_spec=pltpu.PrefetchScalarGridSpec(
            num_scalar_prefetch=0,
            grid=(B,),
            in_specs=[
                pl.BlockSpec((1, C, N), lambda b: (b, 0, 0)),
                pl.BlockSpec((3 * hidden, C), lambda b: (0, 0)),
                pl.BlockSpec((C, hidden), lambda b: (0, 0)),
                pl.BlockSpec((C, 1), lambda b: (0, 0)),
            ],
            out_specs=pl.BlockSpec((1, C, N), lambda b: (b, 0, 0)),
        ),
        compiler_params=pltpu.CompilerParams(
            # batch axis can shard across v7x's 2 TensorCores; on single-TC
            # parts it is a tiny serial loop (B=2). Default scoped-VMEM limit
            # is plenty (live footprint < 8 MiB), so no vmem_limit_bytes.
            dimension_semantics=("parallel",),
        ),
    )(x_flat, wqkv2, wout2, bout2)

    return out_flat.reshape(B, C, H, W)


def attention_reference(x, w_qkv, w_out, b_out, *, heads=4, dim_head=32, scale=10.0):
    """Pure-JAX f32 reference matching the PyTorch module (NCHW)."""
    B, C, H, W = x.shape
    hidden = heads * dim_head
    n = H * W
    x_flat = x.reshape(B, C, n)
    qkv = jnp.einsum("oc,bcn->bon", w_qkv.reshape(3 * hidden, C), x_flat)
    q, k, v = jnp.split(qkv, 3, axis=1)
    q = q.reshape(B, heads, dim_head, n)
    k = k.reshape(B, heads, dim_head, n)
    v = v.reshape(B, heads, dim_head, n)

    def l2n(t):  # F.normalize(t, dim=-1), eps=1e-12
        return t / jnp.maximum(jnp.sqrt(jnp.sum(t * t, axis=-1, keepdims=True)), 1e-12)

    q, k = l2n(q), l2n(k)
    sim = jnp.einsum("bhdi,bhdj->bhij", q, k) * scale
    attn = jax.nn.softmax(sim, axis=-1)
    out = jnp.einsum("bhij,bhdj->bhid", attn, v)                  # (B, h, n, d)
    out = jnp.transpose(out, (0, 1, 3, 2)).reshape(B, hidden, n)  # 'b (h d) n'
    y = jnp.einsum("ch,bhn->bcn", w_out.reshape(C, hidden), out) + b_out[None, :, None]
    return y.reshape(B, C, H, W)


if __name__ == "__main__":
    key = jax.random.PRNGKey(0)
    k1, k2, k3, k4 = jax.random.split(key, 4)

    # Attention(dim=32, heads=4, dim_head=32, scale=10); batch 2, 16x16 feature map.
    B, dim, H, W = 2, 32, 16, 16
    heads, dim_head, scale = 4, 32, 10.0
    hidden = heads * dim_head

    x = jax.random.normal(k1, (B, dim, H, W), jnp.float32)
    params = {
        "w_qkv": 0.2 * jax.random.normal(k2, (3 * hidden, dim, 1, 1), jnp.float32),
        "w_out": 0.2 * jax.random.normal(k3, (dim, hidden, 1, 1), jnp.float32),
        "b_out": 0.1 * jax.random.normal(k4, (dim,), jnp.float32),
    }

    out = jax.block_until_ready(
        attention_forward(x, params, heads=heads, dim_head=dim_head, scale=scale))
    ref = attention_reference(x, params["w_qkv"], params["w_out"], params["b_out"],
                              heads=heads, dim_head=dim_head, scale=scale)

    assert out.shape == (B, dim, H, W)
    # Tolerance accounts for bf16 MXU operands (f32 accumulation) and the
    # approximate EUP reciprocal, vs the pure-f32 reference.
    max_err = float(jnp.max(jnp.abs(out - ref)))
    assert jnp.allclose(out, ref, atol=5e-2, rtol=2e-2), max_err

    print("KERNEL_OK")
</pallas_src>

<mosaic_0001>
module attributes {stable_mosaic.version = 11 : i64} {
  func.func @_attention_kernel(%arg0: i32, %arg1: memref<1x32x256xf32, #tpu.memory_space<vmem>>, %arg2: memref<384x32xbf16, #tpu.memory_space<vmem>>, %arg3: memref<32x128xbf16, #tpu.memory_space<vmem>>, %arg4: memref<32x1xf32, #tpu.memory_space<vmem>>, %arg5: memref<1x32x256xf32, #tpu.memory_space<vmem>>) attributes {dimension_semantics = [#tpu.dimension_semantics<parallel>], iteration_bounds = array<i64: 2>, scalar_prefetch = 0 : i64, scratch_operands = 0 : i64, tpu.core_type = #tpu.core_type<tc>, window_params = [{transform_indices = @transform_0, window_bounds = array<i64: 1, 32, 256>}, {pipeline_mode = #tpu.pipeline_mode<synchronous>, transform_indices = @transform_1, window_bounds = array<i64: 384, 32>}, {pipeline_mode = #tpu.pipeline_mode<synchronous>, transform_indices = @transform_2, window_bounds = array<i64: 32, 128>}, {pipeline_mode = #tpu.pipeline_mode<synchronous>, transform_indices = @transform_3, window_bounds = array<i64: 32, 1>}, {transform_indices = @transform_4, window_bounds = array<i64: 1, 32, 256>}]} {
    %c0 = arith.constant 0 : index
    %c0_0 = arith.constant 0 : index
    %c0_1 = arith.constant 0 : index
    %0 = vector.load %arg1[%c0, %c0_0, %c0_1] : memref<1x32x256xf32, #tpu.memory_space<vmem>>, vector<1x32x256xf32>
    %1 = vector.shape_cast %0 : vector<1x32x256xf32> to vector<32x256xf32>
    %2 = arith.truncf %1 : vector<32x256xf32> to vector<32x256xbf16>
    %c0_2 = arith.constant 0 : index
    %c0_3 = arith.constant 0 : index
    %3 = vector.load %arg2[%c0_2, %c0_3] : memref<384x32xbf16, #tpu.memory_space<vmem>>, vector<384x32xbf16>
    %cst = arith.constant dense<0.000000e+00> : vector<384x256xf32>
    %4 = tpu.matmul %3, %2, %cst {dimension_numbers = #tpu.dot_dimension_numbers<[1], [0], [0], [1], [0, 0, 1, 1], [], []>} : vector<384x32xbf16>, vector<32x256xbf16>, vector<384x256xf32> -> vector<384x256xf32>
    %5 = vector.extract_strided_slice %4 {offsets = [0, 0], sizes = [128, 256], strides = [1, 1]} : vector<384x256xf32> to vector<128x256xf32>
    %6 = vector.shape_cast %5 : vector<128x256xf32> to vector<4x32x256xf32>
    %7 = vector.extract_strided_slice %4 {offsets = [128, 0], sizes = [128, 256], strides = [1, 1]} : vector<384x256xf32> to vector<128x256xf32>
    %8 = vector.shape_cast %7 : vector<128x256xf32> to vector<4x32x256xf32>
    %9 = vector.extract_strided_slice %4 {offsets = [256, 0], sizes = [128, 256], strides = [1, 1]} : vector<384x256xf32> to vector<128x256xf32>
    %10 = vector.shape_cast %9 : vector<128x256xf32> to vector<4x32x256xf32>
    %11 = arith.mulf %6, %6 : vector<4x32x256xf32>
    %cst_4 = arith.constant dense<0.000000e+00> : vector<4x32xf32>
    %12 = vector.multi_reduction <add>, %11, %cst_4 [2] : vector<4x32x256xf32> to vector<4x32xf32>
    %13 = vector.shape_cast %12 : vector<4x32xf32> to vector<4x32x1xf32>
    %cst_5 = arith.constant 1.000000e-24 : f32
    %14 = vector.broadcast %cst_5 : f32 to vector<4x32x1xf32>
    %15 = arith.maximumf %13, %14 : vector<4x32x1xf32>
    %16 = math.rsqrt %15 : vector<4x32x1xf32>
    %cst_6 = arith.constant 1.000000e+01 : f32
    %17 = vector.broadcast %cst_6 : f32 to vector<4x32x1xf32>
    %18 = arith.mulf %16, %17 : vector<4x32x1xf32>
    %19 = vector.broadcast %18 : vector<4x32x1xf32> to vector<4x32x256xf32>
    %20 = arith.mulf %6, %19 : vector<4x32x256xf32>
    %21 = arith.mulf %8, %8 : vector<4x32x256xf32>
    %cst_7 = arith.constant dense<0.000000e+00> : vector<4x32xf32>
    %22 = vector.multi_reduction <add>, %21, %cst_7 [2] : vector<4x32x256xf32> to vector<4x32xf32>
    %23 = vector.shape_cast %22 : vector<4x32xf32> to vector<4x32x1xf32>
    %cst_8 = arith.constant 1.000000e-24 : f32
    %24 = vector.broadcast %cst_8 : f32 to vector<4x32x1xf32>
    %25 = arith.maximumf %23, %24 : vector<4x32x1xf32>
    %26 = math.rsqrt %25 : vector<4x32x1xf32>
    %cst_9 = arith.constant 1.000000e+00 : f32
    %27 = vector.broadcast %cst_9 : f32 to vector<4x32x1xf32>
    %28 = arith.mulf %26, %27 : vector<4x32x1xf32>
    %29 = vector.broadcast %28 : vector<4x32x1xf32> to vector<4x32x256xf32>
    %30 = arith.mulf %8, %29 : vector<4x32x256xf32>
    %31 = arith.truncf %20 : vector<4x32x256xf32> to vector<4x32x256xbf16>
    %32 = arith.truncf %30 : vector<4x32x256xf32> to vector<4x32x256xbf16>
    %cst_10 = arith.constant dense<0.000000e+00> : vector<4x256x256xf32>
    %33 = tpu.matmul %31, %32, %cst_10 {dimension_numbers = #tpu.dot_dimension_numbers<[1], [1], [2], [2], [0, 0, 0, 2, 1, 2], [0], [0]>} : vector<4x32x256xbf16>, vector<4x32x256xbf16>, vector<4x256x256xf32> -> vector<4x256x256xf32>
    %34 = math.exp %33 : vector<4x256x256xf32>
    %cst_11 = arith.constant dense<0.000000e+00> : vector<4x256xf32>
    %35 = vector.multi_reduction <add>, %34, %cst_11 [2] : vector<4x256x256xf32> to vector<4x256xf32>
    %36 = arith.truncf %10 : vector<4x32x256xf32> to vector<4x32x256xbf16>
    %37 = arith.truncf %34 : vector<4x256x256xf32> to vector<4x256x256xbf16>
    %cst_12 = arith.constant dense<0.000000e+00> : vector<4x32x256xf32>
    %38 = tpu.matmul %36, %37, %cst_12 {dimension_numbers = #tpu.dot_dimension_numbers<[2], [2], [1], [1], [0, 0, 0, 1, 1, 1], [0], [0]>} : vector<4x32x256xbf16>, vector<4x256x256xbf16>, vector<4x32x256xf32> -> vector<4x32x256xf32>
    %39 = tpu.reciprocal %35 {approx = true} : vector<4x256xf32> -> vector<4x256xf32>
    %40 = vector.shape_cast %39 : vector<4x256xf32> to vector<4x1x256xf32>
    %41 = vector.broadcast %40 : vector<4x1x256xf32> to vector<4x32x256xf32>
    %42 = arith.mulf %38, %41 : vector<4x32x256xf32>
    %43 = vector.shape_cast %42 : vector<4x32x256xf32> to vector<128x256xf32>
    %44 = arith.truncf %43 : vector<128x256xf32> to vector<128x256xbf16>
    %c0_13 = arith.constant 0 : index
    %c0_14 = arith.constant 0 : index
    %45 = vector.load %arg3[%c0_13, %c0_14] : memref<32x128xbf16, #tpu.memory_space<vmem>>, vector<32x128xbf16>
    %cst_15 = arith.constant dense<0.000000e+00> : vector<32x256xf32>
    %46 = tpu.matmul %45, %44, %cst_15 {dimension_numbers = #tpu.dot_dimension_numbers<[1], [0], [0], [1], [0, 0, 1, 1], [], []>} : vector<32x128xbf16>, vector<128x256xbf16>, vector<32x256xf32> -> vector<32x256xf32>
    %c0_16 = arith.constant 0 : index
    %c0_17 = arith.constant 0 : index
    %47 = vector.load %arg4[%c0_16, %c0_17] : memref<32x1xf32, #tpu.memory_space<vmem>>, vector<32x1xf32>
    %48 = vector.broadcast %47 : vector<32x1xf32> to vector<32x256xf32>
    %49 = arith.addf %46, %48 : vector<32x256xf32>
    %c0_18 = arith.constant 0 : index
    %c0_19 = arith.constant 0 : index
    %c0_20 = arith.constant 0 : index
    %50 = vector.load %arg5[%c0_18, %c0_19, %c0_20] : memref<1x32x256xf32, #tpu.memory_space<vmem>>, vector<1x32x256xf32>
    %51 = vector.shape_cast %50 : vector<1x32x256xf32> to vector<32x256xf32>
    %52 = vector.shape_cast %49 : vector<32x256xf32> to vector<1x32x256xf32>
    tpu.vector_store %arg5[%c0_18, %c0_19, %c0_20], %52 {strides = array<i32>} : memref<1x32x256xf32, #tpu.memory_space<vmem>>, vector<1x32x256xf32>,
    return
  }
  func.func @transform_0(%arg0: i32) -> (i32, i32, i32) {
    %c0_i32 = arith.constant 0 : i32
    %c0_i32_0 = arith.constant 0 : i32
    %c0_i32_1 = arith.constant 0 : i32
    return %arg0, %c0_i32, %c0_i32_0 : i32, i32, i32
  }
  func.func @transform_1(%arg0: i32) -> (i32, i32) {
    %c0_i32 = arith.constant 0 : i32
    %c0_i32_0 = arith.constant 0 : i32
    %c0_i32_1 = arith.constant 0 : i32
    return %c0_i32, %c0_i32_0 : i32, i32
  }
  func.func @transform_2(%arg0: i32) -> (i32, i32) {
    %c0_i32 = arith.constant 0 : i32
    %c0_i32_0 = arith.constant 0 : i32
    %c0_i32_1 = arith.constant 0 : i32
    return %c0_i32, %c0_i32_0 : i32, i32
  }
  func.func @transform_3(%arg0: i32) -> (i32, i32) {
    %c0_i32 = arith.constant 0 : i32
    %c0_i32_0 = arith.constant 0 : i32
    %c0_i32_1 = arith.constant 0 : i32
    return %c0_i32, %c0_i32_0 : i32, i32
  }
  func.func @transform_4(%arg0: i32) -> (i32, i32, i32) {
    %c0_i32 = arith.constant 0 : i32
    %c0_i32_0 = arith.constant 0 : i32
    %c0_i32_1 = arith.constant 0 : i32
    return %arg0, %c0_i32, %c0_i32_0 : i32, i32, i32
  }
}

</mosaic_0001>

<llo_original>
// kernel: tpu_custom_call.1
$region0: #{tpu_custom_call.1}
  #allocation0 [shape = 'u32[]', space=smem, size = 0x4, offset = 0x4, fixed_abs, tag = 'smem constant byte address 0x4 - core index']
  #allocation1 [shape = 'u32[144,128]{1,0:T(1,128)}', space=vmem, size = 0x12000, scoped, tag = 'internal scratch']
  %s0 = inlined_call_operand.vmem [shape: f32[2,32,256], index: 0, kind: input, shape index: {}]
  %s1 = inlined_call_operand.vmem [shape: bf16[384,32], index: 1, kind: input, shape index: {}]
  %s2 = inlined_call_operand.vmem [shape: bf16[32,128], index: 2, kind: input, shape index: {}]
  %s3 = inlined_call_operand.vmem [shape: f32[32,1], index: 3, kind: input, shape index: {}]
  %s4 = inlined_call_operand.hbm [shape: f32[2,32,256], index: 4, kind: output, shape index: {}]
  %s5 = sld [smem:[#allocation0]]
  $region49: #{tpu_custom_call.1} parent=0
    _
  %s7 = ssub.s32 1, %s5
  %s8 = scalar_select 0, %s7, %s5
  $region1: #{tpu_custom_call.1} parent=0
    #allocation2 [shape = 'u8[65536]{0}', space=vmem, size = 0x10000, scoped, tag = 'output window, operand 0']
    #allocation3 [shape = 's32[2]{0}', space=sflag, size = 0x8, scoped, tag = 'scoped memory for tpu_custom_call.1']
    %9 = vsyncpa [#allocation3], 0
    %s10 = scalar_lea.sflag [#allocation3], 1
    %11 = vsyncpa %s10, 0
    loop: start=0, step=1, limit=4
    $region2: #{tpu_custom_call.1} parent=1 // loop_pre_header
      _
    $region3: #{tpu_custom_call.1} parent=1 // loop_header
      %s13 = sphi 0, %s17
      %p14 = scmp.ge.s32.totalorder %s13, 4
      %s23 = sphi 0, %s25
      %s26 = sphi 0, %s23
      %s27 = sphi 0, %s26
      %s43 = sphi 0, %s27
      %s47 = sphi 0, %s47
      %s49 = sphi 0, %s47
      %s50 = sphi 0, %s49
      %s64 = sphi 0, %s50
      %s68 = sphi 0, %s68
      %s70 = sphi 0, %s68
      %s71 = sphi 0, %s70
      %s85 = sphi 0, %s71
      %s89 = sphi 0, %s89
      %s91 = sphi 0, %s89
      %s92 = sphi 0, %s91
      %s106 = sphi 0, %s92
      %s112 = sphi 0, %s114
      %s115 = sphi 0, %s112
      %s116 = sphi 0, %s115
      %s132 = sphi 0, %s116
    $region4: #{tpu_custom_call.1} parent=1 // loop_header_branch
      %16 = sbr.rel (%p14) target = $region8
    $region5: #{tpu_custom_call.1} parent=1 // loop_body
      %s18 = ssub.s32 %s13, 1
      %s19 = ssub.s32 %s13, 2
      %s20 = sadd.s32 %s13, 1
      %s21 = ssub.s32 %s13, %s20
      %p22 = scmp.eq.s32.totalorder %s21, 0
      %s24 = sadd.s32 %s23, 1
      %s25 = scalar_select %p22, %s23, %s24
      %p28 = pneg %p22
      %p29 = scmp.eq.s32.totalorder %s13, 1
      %p30 = por %p28, %p29
      %p31 = scmp.ne.s32.totalorder %s23, %s26
      %p32 = scmp.eq.s32.totalorder %s13, 0
      %p33 = por %p31, %p32
      %p34 = scmp.ne.s32.totalorder %s23, %s26
      %p35 = scmp.eq.s32.totalorder %s18, 1
      %p36 = por %p34, %p35
      %p37 = scmp.ne.s32.totalorder %s26, %s27
      %p38 = scmp.eq.s32.totalorder %s18, 0
      %p39 = por %p37, %p38
      %p40 = scmp.ne.s32.totalorder %s26, %s27
      %p41 = scmp.eq.s32.totalorder %s19, 1
      %p42 = por %p40, %p41
      %p44 = scmp.ne.s32.totalorder %s27, %s43
      %p45 = scmp.eq.s32.totalorder %s19, 0
      %p46 = por %p44, %p45
      %s48 = sadd.s32 %s47, 1
      %p51 = scmp.eq.s32.totalorder %s13, 1
      %p52 = scmp.ne.s32.totalorder %s47, %s49
      %p53 = scmp.eq.s32.totalorder %s13, 0
      %p54 = por %p52, %p53
      %p55 = scmp.ne.s32.totalorder %s47, %s49
      %p56 = scmp.eq.s32.totalorder %s18, 1
      %p57 = por %p55, %p56
      %p58 = scmp.ne.s32.totalorder %s49, %s50
      %p59 = scmp.eq.s32.totalorder %s18, 0
      %p60 = por %p58, %p59
      %p61 = scmp.ne.s32.totalorder %s49, %s50
      %p62 = scmp.eq.s32.totalorder %s19, 1
      %p63 = por %p61, %p62
      %p65 = scmp.ne.s32.totalorder %s50, %s64
      %p66 = scmp.eq.s32.totalorder %s19, 0
      %p67 = por %p65, %p66
      %s69 = sadd.s32 %s68, 1
      %p72 = scmp.eq.s32.totalorder %s13, 1
      %p73 = scmp.ne.s32.totalorder %s68, %s70
      %p74 = scmp.eq.s32.totalorder %s13, 0
      %p75 = por %p73, %p74
      %p76 = scmp.ne.s32.totalorder %s68, %s70
      %p77 = scmp.eq.s32.totalorder %s18, 1
      %p78 = por %p76, %p77
      %p79 = scmp.ne.s32.totalorder %s70, %s71
      %p80 = scmp.eq.s32.totalorder %s18, 0
      %p81 = por %p79, %p80
      %p82 = scmp.ne.s32.totalorder %s70, %s71
      %p83 = scmp.eq.s32.totalorder %s19, 1
      %p84 = por %p82, %p83
      %p86 = scmp.ne.s32.totalorder %s71, %s85
      %p87 = scmp.eq.s32.totalorder %s19, 0
      %p88 = por %p86, %p87
      %s90 = sadd.s32 %s89, 1
      %p93 = scmp.eq.s32.totalorder %s13, 1
      %p94 = scmp.ne.s32.totalorder %s89, %s91
      %p95 = scmp.eq.s32.totalorder %s13, 0
      %p96 = por %p94, %p95
      %p97 = scmp.ne.s32.totalorder %s89, %s91
      %p98 = scmp.eq.s32.totalorder %s18, 1
      %p99 = por %p97, %p98
      %p100 = scmp.ne.s32.totalorder %s91, %s92
      %p101 = scmp.eq.s32.totalorder %s18, 0
      %p102 = por %p100, %p101
      %p103 = scmp.ne.s32.totalorder %s91, %s92
      %p104 = scmp.eq.s32.totalorder %s19, 1
      %p105 = por %p103, %p104
      %p107 = scmp.ne.s32.totalorder %s92, %s106
      %p108 = scmp.eq.s32.totalorder %s19, 0
      %p109 = por %p107, %p108
      %s110 = ssub.s32 %s13, %s20
      %p111 = scmp.eq.s32.totalorder %s110, 0
      %s113 = sadd.s32 %s112, 1
      %s114 = scalar_select %p111, %s112, %s113
      %p117 = pneg %p111
      %p118 = scmp.eq.s32.totalorder %s13, 1
      %p119 = por %p117, %p118
      %p120 = scmp.ne.s32.totalorder %s112, %s115
      %p121 = scmp.eq.s32.totalorder %s13, 0
      %p122 = por %p120, %p121
      %p123 = scmp.ne.s32.totalorder %s112, %s115
      %p124 = scmp.eq.s32.totalorder %s18, 1
      %p125 = por %p123, %p124
      %p126 = scmp.ne.s32.totalorder %s115, %s116
      %p127 = scmp.eq.s32.totalorder %s18, 0
      %p128 = por %p126, %p127
      %p129 = scmp.ne.s32.totalorder %s115, %s116
      %p130 = scmp.eq.s32.totalorder %s19, 1
      %p131 = por %p129, %p130
      %p133 = scmp.ne.s32.totalorder %s116, %s132
      %p134 = scmp.eq.s32.totalorder %s19, 0
      %p135 = por %p133, %p134
      %p136 = scmp.le.s32.totalorder 1, %s13
      %p137 = scmp.lt.s32.totalorder %s13, 3
      %p138 = pnand %p136, %p137
      %p139 = pneg %p138
      // Predicated region
      $region9: #{tpu_custom_call.1} parent=5 // pred_check
        _
      $region10: #{tpu_custom_call.1} parent=5 // pred_check_branch
        %141 = sbr.rel (%p138) target = $region12
      $region11: #{tpu_custom_call.1} parent=5 // pred_region
        %s142 = ssub.s32 %s13, 1
        // Predicated region
        $region13: #{tpu_custom_call.1} parent=11 // pred_check
          %p143 = pneg %p60
        $region14: #{tpu_custom_call.1} parent=11 // pred_check_branch
          %145 = sbr.rel (%p143) target = $region16
        $region15: #{tpu_custom_call.1} parent=11 // pred_region
          _
        $region16: #{tpu_custom_call.1} parent=11 // pred_fallthru
          _
        // Predicated region
        $region17: #{tpu_custom_call.1} parent=11 // pred_check
          %p146 = pneg %p81
        $region18: #{tpu_custom_call.1} parent=11 // pred_check_branch
          %148 = sbr.rel (%p146) target = $region20
        $region19: #{tpu_custom_call.1} parent=11 // pred_region
          _
        $region20: #{tpu_custom_call.1} parent=11 // pred_fallthru
          _
        // Predicated region
        $region21: #{tpu_custom_call.1} parent=11 // pred_check
          %p149 = pneg %p102
        $region22: #{tpu_custom_call.1} parent=11 // pred_check_branch
          %151 = sbr.rel (%p149) target = $region24
        $region23: #{tpu_custom_call.1} parent=11 // pred_region
          _
        $region24: #{tpu_custom_call.1} parent=11 // pred_fallthru
          _
      $region12: #{tpu_custom_call.1} parent=5 // pred_fallthru
        _
      %p152 = scmp.lt.s32.totalorder %s13, 2
      // Predicated region
      $region25: #{tpu_custom_call.1} parent=5 // pred_check
        %p153 = pneg %p152
      $region26: #{tpu_custom_call.1} parent=5 // pred_check_branch
        %155 = sbr.rel (%p153) target = $region28
      $region27: #{tpu_custom_call.1} parent=5 // pred_region
        // Predicated region
        $region29: #{tpu_custom_call.1} parent=27 // pred_check
          %p156 = pneg %p33
        $region30: #{tpu_custom_call.1} parent=27 // pred_check_branch
          %158 = sbr.rel (%p156) target = $region32
        $region31: #{tpu_custom_call.1} parent=27 // pred_region
          %p159 = scmp.lt.s32.totalorder %s13, 1
          %s160 = scalar_select %p159, %s13, 1
          %s161 = smul.addr %s160, 8
          %s162 = smul.addr %s161, 8
          %s163 = scalar_lea.vmem %s0, %s162
        $region32: #{tpu_custom_call.1} parent=27 // pred_fallthru
          _
      $region28: #{tpu_custom_call.1} parent=5 // pred_fallthru
        _
      %p164 = scmp.le.s32.totalorder 1, %s13
      %p165 = scmp.lt.s32.totalorder %s13, 3
      %p166 = pnand %p164, %p165
      %p167 = pneg %p166
      // Predicated region
      $region33: #{tpu_custom_call.1} parent=5 // pred_check
        _
      $region34: #{tpu_custom_call.1} parent=5 // pred_check_branch
        %169 = sbr.rel (%p166) target = $region36
      $region35: #{tpu_custom_call.1} parent=5 // pred_region
        %s170 = ssub.s32 %s13, 1
        %p171 = scmp.lt.s32.totalorder %s18, 1
        %s172 = scalar_select %p171, %s18, 1
        %s173 = smul.addr %s172, 8
        %s174 = smul.addr %s173, 8
        %s175 = scalar_lea.vmem %s0, %s174
        %p176 = pneg %p39
        %p177 = pneg %p36
        %p178 = pneg %p60
        %p179 = pneg %p57
        %p180 = pneg %p81
        %p181 = pneg %p78
        %p182 = pneg %p102
        %p183 = pneg %p99
        %p184 = pneg %p128
        %p185 = pneg %p125
        %s186 = sand.u32 %s115, 1
        %s187 = scalar_lea.sflag [#allocation3], %s186
        %s188 = sand.u32 %s115, 1
        %s189 = smul.addr %s188, 64
        %s190 = scalar_lea.vmem [#allocation2], %s189
        %p191 = scmp.lt.s32.totalorder %s18, 1
        %s192 = scalar_select %p191, %s18, 1
        %s193 = smul.addr %s192, 8
        %s194 = smul.addr %s193, 8
        %s195 = scalar_lea.vmem %s0, %s194
        %v197 = vld [vmem:[%s195] sm:$0xff]
        %v198 = vld [vmem:[%s195 + $0x8] sm:$0xff]
        %v199 = vld [vmem:[%s195 + $0x10] sm:$0xff]
        %v200 = vld [vmem:[%s195 + $0x18] sm:$0xff]
        %v201 = vld [vmem:[%s195 + $0x20] sm:$0xff]
        %v202 = vld [vmem:[%s195 + $0x28] sm:$0xff]
        %v203 = vld [vmem:[%s195 + $0x30] sm:$0xff]
        %v204 = vld [vmem:[%s195 + $0x38] sm:$0xff]
        %v205 = vpack.c.bf16 %v199, %v197
        %v206 = vpack.c.bf16 %v200, %v198
        %v207 = vpack.c.bf16 %v203, %v201
        %v208 = vpack.c.bf16 %v204, %v202
        %v209 = vld [vmem:[%s1] sm:$0xf]
        %v210 = vld [vmem:[%s1 + $0x4] sm:$0xf]
        %v211 = vld [vmem:[%s1 + $0x8] sm:$0xf]
        %v212 = vld [vmem:[%s1 + $0xc] sm:$0xf]
        %v213 = vld [vmem:[%s1 + $0x10] sm:$0xf]
        %v214 = vld [vmem:[%s1 + $0x14] sm:$0xf]
        %v215 = vld [vmem:[%s1 + $0x18] sm:$0xf]
        %v216 = vld [vmem:[%s1 + $0x1c] sm:$0xf]
        %v217 = vld [vmem:[%s1 + $0x20] sm:$0xf]
        %v218 = vld [vmem:[%s1 + $0x24] sm:$0xf]
        %v219 = vld [vmem:[%s1 + $0x28] sm:$0xf]
        %v220 = vld [vmem:[%s1 + $0x2c] sm:$0xf]
        %v221 = vld [vmem:[%s1 + $0x30] sm:$0xf]
        %v222 = vld [vmem:[%s1 + $0x34] sm:$0xf]
        %v223 = vld [vmem:[%s1 + $0x38] sm:$0xf]
        %v224 = vld [vmem:[%s1 + $0x3c] sm:$0xf]
        %v225 = vld [vmem:[%s1 + $0x40] sm:$0xf]
        %v226 = vld [vmem:[%s1 + $0x44] sm:$0xf]
        %v227 = vld [vmem:[%s1 + $0x48] sm:$0xf]
        %v228 = vld [vmem:[%s1 + $0x4c] sm:$0xf]
        %v229 = vld [vmem:[%s1 + $0x50] sm:$0xf]
        %v230 = vld [vmem:[%s1 + $0x54] sm:$0xf]
        %v231 = vld [vmem:[%s1 + $0x58] sm:$0xf]
        %v232 = vld [vmem:[%s1 + $0x5c] sm:$0xf]
        %v233 = vld [vmem:[%s1 + $0x60] sm:$0xf]
        %v234 = vld [vmem:[%s1 + $0x64] sm:$0xf]
        %v235 = vld [vmem:[%s1 + $0x68] sm:$0xf]
        %v236 = vld [vmem:[%s1 + $0x6c] sm:$0xf]
        %v237 = vld [vmem:[%s1 + $0x70] sm:$0xf]
        %v238 = vld [vmem:[%s1 + $0x74] sm:$0xf]
        %v239 = vld [vmem:[%s1 + $0x78] sm:$0xf]
        %v240 = vld [vmem:[%s1 + $0x7c] sm:$0xf]
        %v241 = vld [vmem:[%s1 + $0x80] sm:$0xf]
        %v242 = vld [vmem:[%s1 + $0x84] sm:$0xf]
        %v243 = vld [vmem:[%s1 + $0x88] sm:$0xf]
        %v244 = vld [vmem:[%s1 + $0x8c] sm:$0xf]
        %v245 = vld [vmem:[%s1 + $0x90] sm:$0xf]
        %v246 = vld [vmem:[%s1 + $0x94] sm:$0xf]
        %v247 = vld [vmem:[%s1 + $0x98] sm:$0xf]
        %v248 = vld [vmem:[%s1 + $0x9c] sm:$0xf]
        %v249 = vld [vmem:[%s1 + $0xa0] sm:$0xf]
        %v250 = vld [vmem:[%s1 + $0xa4] sm:$0xf]
        %v251 = vld [vmem:[%s1 + $0xa8] sm:$0xf]
        %v252 = vld [vmem:[%s1 + $0xac] sm:$0xf]
        %v253 = vld [vmem:[%s1 + $0xb0] sm:$0xf]
        %v254 = vld [vmem:[%s1 + $0xb4] sm:$0xf]
        %v255 = vld [vmem:[%s1 + $0xb8] sm:$0xf]
        %v256 = vld [vmem:[%s1 + $0xbc] sm:$0xf]
        %v305 = vunpack.c.l.b16 %v209
        %v306 = vunpack.c.l.b16 %v210
        %v307 = vunpack.c.l.b16 %v211
        %v308 = vunpack.c.l.b16 %v212
        %v309 = vunpack.c.l.b16 %v213
        %v310 = vunpack.c.l.b16 %v214
        %v311 = vunpack.c.l.b16 %v215
        %v312 = vunpack.c.l.b16 %v216
        %v313 = vunpack.c.l.b16 %v217
        %v314 = vunpack.c.l.b16 %v218
        %v315 = vunpack.c.l.b16 %v219
        %v316 = vunpack.c.l.b16 %v220
        %v317 = vunpack.c.l.b16 %v221
        %v318 = vunpack.c.l.b16 %v222
        %v319 = vunpack.c.l.b16 %v223
        %v320 = vunpack.c.l.b16 %v224
        %v321 = vunpack.c.l.b16 %v225
        %v322 = vunpack.c.l.b16 %v226
        %v323 = vunpack.c.l.b16 %v227
        %v324 = vunpack.c.l.b16 %v228
        %v325 = vunpack.c.l.b16 %v229
        %v326 = vunpack.c.l.b16 %v230
        %v327 = vunpack.c.l.b16 %v231
        %v328 = vunpack.c.l.b16 %v232
        %v329 = vunpack.c.l.b16 %v233
        %v330 = vunpack.c.l.b16 %v234
        %v331 = vunpack.c.l.b16 %v235
        %v332 = vunpack.c.l.b16 %v236
        %v333 = vunpack.c.l.b16 %v237
        %v334 = vunpack.c.l.b16 %v238
        %v335 = vunpack.c.l.b16 %v239
        %v336 = vunpack.c.l.b16 %v240
        %v337 = vunpack.c.l.b16 %v241
        %v338 = vunpack.c.l.b16 %v242
        %v339 = vunpack.c.l.b16 %v243
        %v340 = vunpack.c.l.b16 %v244
        %v341 = vunpack.c.l.b16 %v245
        %v342 = vunpack.c.l.b16 %v246
        %v343 = vunpack.c.l.b16 %v247
        %v344 = vunpack.c.l.b16 %v248
        %v345 = vunpack.c.l.b16 %v249
        %v346 = vunpack.c.l.b16 %v250
        %v347 = vunpack.c.l.b16 %v251
        %v348 = vunpack.c.l.b16 %v252
        %v349 = vunpack.c.l.b16 %v253
        %v350 = vunpack.c.l.b16 %v254
        %v351 = vunpack.c.l.b16 %v255
        %v352 = vunpack.c.l.b16 %v256
        %v353 = vpack.c.b16 %v306, %v305
        %v354 = vpack.c.b16 %v308, %v307
        %v355 = vpack.c.b16 %v310, %v309
        %v356 = vpack.c.b16 %v312, %v311
        %v357 = vpack.c.b16 %v314, %v313
        %v358 = vpack.c.b16 %v316, %v315
        %v359 = vpack.c.b16 %v318, %v317
        %v360 = vpack.c.b16 %v320, %v319
        %v361 = vpack.c.b16 %v322, %v321
        %v362 = vpack.c.b16 %v324, %v323
        %v363 = vpack.c.b16 %v326, %v325
        %v364 = vpack.c.b16 %v328, %v327
        %v365 = vpack.c.b16 %v330, %v329
        %v366 = vpack.c.b16 %v332, %v331
        %v367 = vpack.c.b16 %v334, %v333
        %v368 = vpack.c.b16 %v336, %v335
        %v369 = vpack.c.b16 %v338, %v337
        %v370 = vpack.c.b16 %v340, %v339
        %v371 = vpack.c.b16 %v342, %v341
        %v372 = vpack.c.b16 %v344, %v343
        %v373 = vpack.c.b16 %v346, %v345
        %v374 = vpack.c.b16 %v348, %v347
        %v375 = vpack.c.b16 %v350, %v349
        %v376 = vpack.c.b16 %v352, %v351
        %vm377 = vcmask 261120
        %v379 = vsel %vm377, %v353, 0
        %v382 = vsel %vm377, %v354, 0
        %v385 = vsel %vm377, %v355, 0
        %v388 = vsel %vm377, %v356, 0
        %v391 = vsel %vm377, %v357, 0
        %v394 = vsel %vm377, %v358, 0
        %v397 = vsel %vm377, %v359, 0
        %v400 = vsel %vm377, %v360, 0
        %v403 = vsel %vm377, %v361, 0
        %v406 = vsel %vm377, %v362, 0
        %v409 = vsel %vm377, %v363, 0
        %v412 = vsel %vm377, %v364, 0
        %v415 = vsel %vm377, %v365, 0
        %v418 = vsel %vm377, %v366, 0
        %v421 = vsel %vm377, %v367, 0
        %v424 = vsel %vm377, %v368, 0
        %v427 = vsel %vm377, %v369, 0
        %v430 = vsel %vm377, %v370, 0
        %v433 = vsel %vm377, %v371, 0
        %v436 = vsel %vm377, %v372, 0
        %v439 = vsel %vm377, %v373, 0
        %v442 = vsel %vm377, %v374, 0
        %v445 = vsel %vm377, %v375, 0
        %v448 = vsel %vm377, %v376, 0
        %450 = vmatprep.subr.bf16.mxu0 %v206
        %451 = vmatpush1.bf16.msra.mxu0 %v205
        %452 = vmatprep.subr.bf16.mxu0 %v208
        %453 = vmatpush1.bf16.msra.mxu0 %v207
        %454 = vmatprep.subr.bf16.mxu0 0
        %455 = vmatpush1.bf16.msra.mxu0 0
        %456 = vmatprep.subr.bf16.mxu0 0
        %457 = vmatpush1.bf16.msra.mxu0 0
        %458 = vmatprep.subr.bf16.mxu0 0
        %459 = vmatpush1.bf16.msra.mxu0 0
        %460 = vmatprep.subr.bf16.mxu0 0
        %461 = vmatpush1.bf16.msra.mxu0 0
        %462 = vmatprep.subr.bf16.mxu0 0
        %463 = vmatpush1.bf16.msra.mxu0 0
        %464 = vmatprep.subr.bf16.mxu0 0
        %465 = vmatpush1.bf16.msra.mxu0 0
        %466 = vmatprep.subr.bf16.mxu0 0
        %467 = vmatpush1.bf16.msra.mxu0 0
        %468 = vmatprep.subr.bf16.mxu0 0
        %469 = vmatpush1.bf16.msra.mxu0 0
        %470 = vmatprep.subr.bf16.mxu0 0
        %471 = vmatpush1.bf16.msra.mxu0 0
        %472 = vmatprep.subr.bf16.mxu0 0
        %473 = vmatpush1.bf16.msra.mxu0 0
        %474 = vmatprep.subr.bf16.mxu0 0
        %475 = vmatpush1.bf16.msra.mxu0 0
        %476 = vmatprep.subr.bf16.mxu0 0
        %477 = vmatpush1.bf16.msra.mxu0 0
        %478 = vmatprep.subr.bf16.mxu0 0
        %479 = vmatpush1.bf16.msra.mxu0 0
        %480 = vmatprep.subr.bf16.mxu0 0
        %481 = vmatpush1.bf16.msra.mxu0 0
        %482 = vmatprep.mubr.bf16.mxu0 0
        %483 = vmatmul.mubr.bf16.gmra.mrb[0].mxu0 %v379
        %v484 = vpop.f32.mrb[0].mxu0
        %v485 = vadd.f32 0.0, %v484
        %v486 = vpop.f32.mrb[0].mxu0
        %v487 = vadd.f32 0.0, %v486
        %v488 = vpop.f32.mrb[0].mxu0
        %v489 = vadd.f32 0.0, %v488
        %v490 = vpop.f32.mrb[0].mxu0
        %v491 = vadd.f32 0.0, %v490
        %492 = vmatprep.mubr.bf16.mxu0 0
        %493 = vmatmul.mubr.bf16.gmra.mrb[0].mxu0 %v382
        %v494 = vpop.f32.mrb[0].mxu0
        %v495 = vadd.f32 0.0, %v494
        %v496 = vpop.f32.mrb[0].mxu0
        %v497 = vadd.f32 0.0, %v496
        %v498 = vpop.f32.mrb[0].mxu0
        %v499 = vadd.f32 0.0, %v498
        %v500 = vpop.f32.mrb[0].mxu0
        %v501 = vadd.f32 0.0, %v500
        %502 = vmatprep.mubr.bf16.mxu0 0
        %503 = vmatmul.mubr.bf16.gmra.mrb[0].mxu0 %v385
        %v504 = vpop.f32.mrb[0].mxu0
        %v505 = vadd.f32 0.0, %v504
        %v506 = vpop.f32.mrb[0].mxu0
        %v507 = vadd.f32 0.0, %v506
        %v508 = vpop.f32.mrb[0].mxu0
        %v509 = vadd.f32 0.0, %v508
        %v510 = vpop.f32.mrb[0].mxu0
        %v511 = vadd.f32 0.0, %v510
        %512 = vmatprep.mubr.bf16.mxu0 0
        %513 = vmatmul.mubr.bf16.gmra.mrb[0].mxu0 %v388
        %v514 = vpop.f32.mrb[0].mxu0
        %v515 = vadd.f32 0.0, %v514
        %v516 = vpop.f32.mrb[0].mxu0
        %v517 = vadd.f32 0.0, %v516
        %v518 = vpop.f32.mrb[0].mxu0
        %v519 = vadd.f32 0.0, %v518
        %v520 = vpop.f32.mrb[0].mxu0
        %v521 = vadd.f32 0.0, %v520
        %522 = vmatprep.mubr.bf16.mxu0 0
        %523 = vmatmul.mubr.bf16.gmra.mrb[0].mxu0 %v391
        %v524 = vpop.f32.mrb[0].mxu0
        %v525 = vadd.f32 0.0, %v524
        %v526 = vpop.f32.mrb[0].mxu0
        %v527 = vadd.f32 0.0, %v526
        %v528 = vpop.f32.mrb[0].mxu0
        %v529 = vadd.f32 0.0, %v528
        %v530 = vpop.f32.mrb[0].mxu0
        %v531 = vadd.f32 0.0, %v530
        %532 = vmatprep.mubr.bf16.mxu0 0
        %533 = vmatmul.mubr.bf16.gmra.mrb[0].mxu0 %v394
        %v534 = vpop.f32.mrb[0].mxu0
        %v535 = vadd.f32 0.0, %v534
        %v536 = vpop.f32.mrb[0].mxu0
        %v537 = vadd.f32 0.0, %v536
        %v538 = vpop.f32.mrb[0].mxu0
        %v539 = vadd.f32 0.0, %v538
        %v540 = vpop.f32.mrb[0].mxu0
        %v541 = vadd.f32 0.0, %v540
        %542 = vmatprep.mubr.bf16.mxu0 0
        %543 = vmatmul.mubr.bf16.gmra.mrb[0].mxu0 %v397
        %v544 = vpop.f32.mrb[0].mxu0
        %v545 = vadd.f32 0.0, %v544
        %v546 = vpop.f32.mrb[0].mxu0
        %v547 = vadd.f32 0.0, %v546
        %v548 = vpop.f32.mrb[0].mxu0
        %v549 = vadd.f32 0.0, %v548
        %v550 = vpop.f32.mrb[0].mxu0
        %v551 = vadd.f32 0.0, %v550
        %552 = vmatprep.mubr.bf16.mxu0 0
        %553 = vmatmul.mubr.bf16.gmra.mrb[0].mxu0 %v400
        %v554 = vpop.f32.mrb[0].mxu0
        %v555 = vadd.f32 0.0, %v554
        %v556 = vpop.f32.mrb[0].mxu0
        %v557 = vadd.f32 0.0, %v556
        %v558 = vpop.f32.mrb[0].mxu0
        %v559 = vadd.f32 0.0, %v558
        %v560 = vpop.f32.mrb[0].mxu0
        %v561 = vadd.f32 0.0, %v560
        %562 = vmatprep.mubr.bf16.mxu0 0
        %563 = vmatmul.mubr.bf16.gmra.mrb[0].mxu0 %v403
        %v564 = vpop.f32.mrb[0].mxu0
        %v565 = vadd.f32 0.0, %v564
        %v566 = vpop.f32.mrb[0].mxu0
        %v567 = vadd.f32 0.0, %v566
        %v568 = vpop.f32.mrb[0].mxu0
        %v569 = vadd.f32 0.0, %v568
        %v570 = vpop.f32.mrb[0].mxu0
        %v571 = vadd.f32 0.0, %v570
        %572 = vmatprep.mubr.bf16.mxu0 0
        %573 = vmatmul.mubr.bf16.gmra.mrb[0].mxu0 %v406
        %v574 = vpop.f32.mrb[0].mxu0
        %v575 = vadd.f32 0.0, %v574
        %v576 = vpop.f32.mrb[0].mxu0
        %v577 = vadd.f32 0.0, %v576
        %v578 = vpop.f32.mrb[0].mxu0
        %v579 = vadd.f32 0.0, %v578
        %v580 = vpop.f32.mrb[0].mxu0
        %v581 = vadd.f32 0.0, %v580
        %582 = vmatprep.mubr.bf16.mxu0 0
        %583 = vmatmul.mubr.bf16.gmra.mrb[0].mxu0 %v409
        %v584 = vpop.f32.mrb[0].mxu0
        %v585 = vadd.f32 0.0, %v584
        %v586 = vpop.f32.mrb[0].mxu0
        %v587 = vadd.f32 0.0, %v586
        %v588 = vpop.f32.mrb[0].mxu0
        %v589 = vadd.f32 0.0, %v588
        %v590 = vpop.f32.mrb[0].mxu0
        %v591 = vadd.f32 0.0, %v590
        %592 = vmatprep.mubr.bf16.mxu0 0
        %593 = vmatmul.mubr.bf16.gmra.mrb[0].mxu0 %v412
        %v594 = vpop.f32.mrb[0].mxu0
        %v595 = vadd.f32 0.0, %v594
        %v596 = vpop.f32.mrb[0].mxu0
        %v597 = vadd.f32 0.0, %v596
        %v598 = vpop.f32.mrb[0].mxu0
        %v599 = vadd.f32 0.0, %v598
        %v600 = vpop.f32.mrb[0].mxu0
        %v601 = vadd.f32 0.0, %v600
        %602 = vmatprep.mubr.bf16.mxu0 0
        %603 = vmatmul.mubr.bf16.gmra.mrb[0].mxu0 %v415
        %v604 = vpop.f32.mrb[0].mxu0
        %v605 = vadd.f32 0.0, %v604
        %v606 = vpop.f32.mrb[0].mxu0
        %v607 = vadd.f32 0.0, %v606
        %v608 = vpop.f32.mrb[0].mxu0
        %v609 = vadd.f32 0.0, %v608
        %v610 = vpop.f32.mrb[0].mxu0
        %v611 = vadd.f32 0.0, %v610
        %612 = vmatprep.mubr.bf16.mxu0 0
        %613 = vmatmul.mubr.bf16.gmra.mrb[0].mxu0 %v418
        %v614 = vpop.f32.mrb[0].mxu0
        %v615 = vadd.f32 0.0, %v614
        %v616 = vpop.f32.mrb[0].mxu0
        %v617 = vadd.f32 0.0, %v616
        %v618 = vpop.f32.mrb[0].mxu0
        %v619 = vadd.f32 0.0, %v618
        %v620 = vpop.f32.mrb[0].mxu0
        %v621 = vadd.f32 0.0, %v620
        %622 = vmatprep.mubr.bf16.mxu0 0
        %623 = vmatmul.mubr.bf16.gmra.mrb[0].mxu0 %v421
        %v624 = vpop.f32.mrb[0].mxu0
        %v625 = vadd.f32 0.0, %v624
        %v626 = vpop.f32.mrb[0].mxu0
        %v627 = vadd.f32 0.0, %v626
        %v628 = vpop.f32.mrb[0].mxu0
        %v629 = vadd.f32 0.0, %v628
        %v630 = vpop.f32.mrb[0].mxu0
        %v631 = vadd.f32 0.0, %v630
        %632 = vmatprep.mubr.bf16.mxu0 0
        %633 = vmatmul.mubr.bf16.gmra.mrb[0].mxu0 %v424
        %v634 = vpop.f32.mrb[0].mxu0
        %v635 = vadd.f32 0.0, %v634
        %v636 = vpop.f32.mrb[0].mxu0
        %v637 = vadd.f32 0.0, %v636
        %v638 = vpop.f32.mrb[0].mxu0
        %v639 = vadd.f32 0.0, %v638
        %v640 = vpop.f32.mrb[0].mxu0
        %v641 = vadd.f32 0.0, %v640
        %642 = vmatprep.mubr.bf16.mxu0 0
        %643 = vmatmul.mubr.bf16.gmra.mrb[0].mxu0 %v427
        %v644 = vpop.f32.mrb[0].mxu0
        %v645 = vadd.f32 0.0, %v644
        %v646 = vpop.f32.mrb[0].mxu0
        %v647 = vadd.f32 0.0, %v646
        %v648 = vpop.f32.mrb[0].mxu0
        %v649 = vadd.f32 0.0, %v648
        %v650 = vpop.f32.mrb[0].mxu0
        %v651 = vadd.f32 0.0, %v650
        %652 = vmatprep.mubr.bf16.mxu0 0
        %653 = vmatmul.mubr.bf16.gmra.mrb[0].mxu0 %v430
        %v654 = vpop.f32.mrb[0].mxu0
        %v655 = vadd.f32 0.0, %v654
        %v656 = vpop.f32.mrb[0].mxu0
        %v657 = vadd.f32 0.0, %v656
        %v658 = vpop.f32.mrb[0].mxu0
        %v659 = vadd.f32 0.0, %v658
        %v660 = vpop.f32.mrb[0].mxu0
        %v661 = vadd.f32 0.0, %v660
        %662 = vmatprep.mubr.bf16.mxu0 0
        %663 = vmatmul.mubr.bf16.gmra.mrb[0].mxu0 %v433
        %v664 = vpop.f32.mrb[0].mxu0
        %v665 = vadd.f32 0.0, %v664
        %v666 = vpop.f32.mrb[0].mxu0
        %v667 = vadd.f32 0.0, %v666
        %v668 = vpop.f32.mrb[0].mxu0
        %v669 = vadd.f32 0.0, %v668
        %v670 = vpop.f32.mrb[0].mxu0
        %v671 = vadd.f32 0.0, %v670
        %672 = vmatprep.mubr.bf16.mxu0 0
        %673 = vmatmul.mubr.bf16.gmra.mrb[0].mxu0 %v436
        %v674 = vpop.f32.mrb[0].mxu0
        %v675 = vadd.f32 0.0, %v674
        %v676 = vpop.f32.mrb[0].mxu0
        %v677 = vadd.f32 0.0, %v676
        %v678 = vpop.f32.mrb[0].mxu0
        %v679 = vadd.f32 0.0, %v678
        %v680 = vpop.f32.mrb[0].mxu0
        %v681 = vadd.f32 0.0, %v680
        %682 = vmatprep.mubr.bf16.mxu0 0
        %683 = vmatmul.mubr.bf16.gmra.mrb[0].mxu0 %v439
        %v684 = vpop.f32.mrb[0].mxu0
        %v685 = vadd.f32 0.0, %v684
        %v686 = vpop.f32.mrb[0].mxu0
        %v687 = vadd.f32 0.0, %v686
        %v688 = vpop.f32.mrb[0].mxu0
        %v689 = vadd.f32 0.0, %v688
        %v690 = vpop.f32.mrb[0].mxu0
        %v691 = vadd.f32 0.0, %v690
        %692 = vmatprep.mubr.bf16.mxu0 0
        %693 = vmatmul.mubr.bf16.gmra.mrb[0].mxu0 %v442
        %v694 = vpop.f32.mrb[0].mxu0
        %v695 = vadd.f32 0.0, %v694
        %v696 = vpop.f32.mrb[0].mxu0
        %v697 = vadd.f32 0.0, %v696
        %v698 = vpop.f32.mrb[0].mxu0
        %v699 = vadd.f32 0.0, %v698
        %v700 = vpop.f32.mrb[0].mxu0
        %v701 = vadd.f32 0.0, %v700
        %702 = vmatprep.mubr.bf16.mxu0 0
        %703 = vmatmul.mubr.bf16.gmra.mrb[0].mxu0 %v445
        %v704 = vpop.f32.mrb[0].mxu0
        %v705 = vadd.f32 0.0, %v704
        %v706 = vpop.f32.mrb[0].mxu0
        %v707 = vadd.f32 0.0, %v706
        %v708 = vpop.f32.mrb[0].mxu0
        %v709 = vadd.f32 0.0, %v708
        %v710 = vpop.f32.mrb[0].mxu0
        %v711 = vadd.f32 0.0, %v710
        %712 = vmatprep.mubr.bf16.mxu0 0
        %713 = vmatmul.mubr.bf16.gmra.mrb[0].mxu0 %v448
        %v714 = vpop.f32.mrb[0].mxu0
        %v715 = vadd.f32 0.0, %v714
        %v716 = vpop.f32.mrb[0].mxu0
        %v717 = vadd.f32 0.0, %v716
        %v718 = vpop.f32.mrb[0].mxu0
        %v719 = vadd.f32 0.0, %v718
        %v720 = vpop.f32.mrb[0].mxu0
        %v721 = vadd.f32 0.0, %v720
        %722 = vdwg.mxu0
        %v723 = vmul.f32 %v485, %v485
        %v724 = vmul.f32 %v487, %v487
        %v725 = vmul.f32 %v489, %v489
        %v726 = vmul.f32 %v491, %v491
        %v727 = vmul.f32 %v495, %v495
        %v728 = vmul.f32 %v497, %v497
        %v729 = vmul.f32 %v499, %v499
        %v730 = vmul.f32 %v501, %v501
        %v731 = vmul.f32 %v505, %v505
        %v732 = vmul.f32 %v507, %v507
        %v733 = vmul.f32 %v509, %v509
        %v734 = vmul.f32 %v511, %v511
        %v735 = vmul.f32 %v515, %v515
        %v736 = vmul.f32 %v517, %v517
        %v737 = vmul.f32 %v519, %v519
        %v738 = vmul.f32 %v521, %v521
        %v739 = vmul.f32 %v525, %v525
        %v740 = vmul.f32 %v527, %v527
        %v741 = vmul.f32 %v529, %v529
        %v742 = vmul.f32 %v531, %v531
        %v743 = vmul.f32 %v535, %v535
        %v744 = vmul.f32 %v537, %v537
        %v745 = vmul.f32 %v539, %v539
        %v746 = vmul.f32 %v541, %v541
        %v747 = vmul.f32 %v545, %v545
        %v748 = vmul.f32 %v547, %v547
        %v749 = vmul.f32 %v549, %v549
        %v750 = vmul.f32 %v551, %v551
        %v751 = vmul.f32 %v555, %v555
        %v752 = vmul.f32 %v557, %v557
        %v753 = vmul.f32 %v559, %v559
        %v754 = vmul.f32 %v561, %v561
        %v755 = vadd.f32 %v723, %v724
        %756 = vadd.xlane.f32.xlu0 %v755
        %v757 = vpop.xlane.xlu0 %756
        %v758 = vadd.f32 %v725, %v726
        %759 = vadd.xlane.f32.xlu0 %v758
        %v760 = vpop.xlane.xlu0 %759
        %v761 = vadd.f32 %v727, %v728
        %762 = vadd.xlane.f32.xlu0 %v761
        %v763 = vpop.xlane.xlu0 %762
        %v764 = vadd.f32 %v729, %v730
        %765 = vadd.xlane.f32.xlu0 %v764
        %v766 = vpop.xlane.xlu0 %765
        %v767 = vadd.f32 %v731, %v732
        %768 = vadd.xlane.f32.xlu0 %v767
        %v769 = vpop.xlane.xlu0 %768
        %v770 = vadd.f32 %v733, %v734
        %771 = vadd.xlane.f32.xlu0 %v770
        %v772 = vpop.xlane.xlu0 %771
        %v773 = vadd.f32 %v735, %v736
        %774 = vadd.xlane.f32.xlu0 %v773
        %v775 = vpop.xlane.xlu0 %774
        %v776 = vadd.f32 %v737, %v738
        %777 = vadd.xlane.f32.xlu0 %v776
        %v778 = vpop.xlane.xlu0 %777
        %v779 = vadd.f32 %v739, %v740
        %780 = vadd.xlane.f32.xlu0 %v779
        %v781 = vpop.xlane.xlu0 %780
        %v782 = vadd.f32 %v741, %v742
        %783 = vadd.xlane.f32.xlu0 %v782
        %v784 = vpop.xlane.xlu0 %783
        %v785 = vadd.f32 %v743, %v744
        %786 = vadd.xlane.f32.xlu0 %v785
        %v787 = vpop.xlane.xlu0 %786
        %v788 = vadd.f32 %v745, %v746
        %789 = vadd.xlane.f32.xlu0 %v788
        %v790 = vpop.xlane.xlu0 %789
        %v791 = vadd.f32 %v747, %v748
        %792 = vadd.xlane.f32.xlu0 %v791
        %v793 = vpop.xlane.xlu0 %792
        %v794 = vadd.f32 %v749, %v750
        %795 = vadd.xlane.f32.xlu0 %v794
        %v796 = vpop.xlane.xlu0 %795
        %v797 = vadd.f32 %v751, %v752
        %798 = vadd.xlane.f32.xlu0 %v797
        %v799 = vpop.xlane.xlu0 %798
        %v800 = vadd.f32 %v753, %v754
        %801 = vadd.xlane.f32.xlu0 %v800
        %v802 = vpop.xlane.xlu0 %801
        %v803 = vmax.f32 %v757, 1e-24
        %v804 = vmax.f32 %v760, 1e-24
        %v805 = vmax.f32 %v763, 1e-24
        %v806 = vmax.f32 %v766, 1e-24
        %v807 = vmax.f32 %v769, 1e-24
        %v808 = vmax.f32 %v772, 1e-24
        %v809 = vmax.f32 %v775, 1e-24
        %v810 = vmax.f32 %v778, 1e-24
        %v811 = vmax.f32 %v781, 1e-24
        %v812 = vmax.f32 %v784, 1e-24
        %v813 = vmax.f32 %v787, 1e-24
        %v814 = vmax.f32 %v790, 1e-24
        %v815 = vmax.f32 %v793, 1e-24
        %v816 = vmax.f32 %v796, 1e-24
        %v817 = vmax.f32 %v799, 1e-24
        %v818 = vmax.f32 %v802, 1e-24
        %v819 = vrsqrt.pop %v803
        %v820 = vrsqrt.pop %v804
        %v821 = vrsqrt.pop %v805
        %v822 = vrsqrt.pop %v806
        %v823 = vrsqrt.pop %v807
        %v824 = vrsqrt.pop %v808
        %v825 = vrsqrt.pop %v809
        %v826 = vrsqrt.pop %v810
        %v827 = vrsqrt.pop %v811
        %v828 = vrsqrt.pop %v812
        %v829 = vrsqrt.pop %v813
        %v830 = vrsqrt.pop %v814
        %v831 = vrsqrt.pop %v815
        %v832 = vrsqrt.pop %v816
        %v833 = vrsqrt.pop %v817
        %v834 = vrsqrt.pop %v818
        %v835 = vmul.f32 %v819, 10.0
        %v836 = vmul.f32 %v820, 10.0
        %v837 = vmul.f32 %v821, 10.0
        %v838 = vmul.f32 %v822, 10.0
        %v839 = vmul.f32 %v823, 10.0
        %v840 = vmul.f32 %v824, 10.0
        %v841 = vmul.f32 %v825, 10.0
        %v842 = vmul.f32 %v826, 10.0
        %v843 = vmul.f32 %v827, 10.0
        %v844 = vmul.f32 %v828, 10.0
        %v845 = vmul.f32 %v829, 10.0
        %v846 = vmul.f32 %v830, 10.0
        %v847 = vmul.f32 %v831, 10.0
        %v848 = vmul.f32 %v832, 10.0
        %v849 = vmul.f32 %v833, 10.0
        %v850 = vmul.f32 %v834, 10.0
        %v851 = vmul.f32 %v485, %v835
        %v852 = vmul.f32 %v487, %v835
        %v853 = vmul.f32 %v489, %v836
        %v854 = vmul.f32 %v491, %v836
        %v855 = vmul.f32 %v495, %v837
        %v856 = vmul.f32 %v497, %v837
        %v857 = vmul.f32 %v499, %v838
        %v858 = vmul.f32 %v501, %v838
        %v859 = vmul.f32 %v505, %v839
        %v860 = vmul.f32 %v507, %v839
        %v861 = vmul.f32 %v509, %v840
        %v862 = vmul.f32 %v511, %v840
        %v863 = vmul.f32 %v515, %v841
        %v864 = vmul.f32 %v517, %v841
        %v865 = vmul.f32 %v519, %v842
        %v866 = vmul.f32 %v521, %v842
        %v867 = vmul.f32 %v525, %v843
        %v868 = vmul.f32 %v527, %v843
        %v869 = vmul.f32 %v529, %v844
        %v870 = vmul.f32 %v531, %v844
        %v871 = vmul.f32 %v535, %v845
        %v872 = vmul.f32 %v537, %v845
        %v873 = vmul.f32 %v539, %v846
        %v874 = vmul.f32 %v541, %v846
        %v875 = vmul.f32 %v545, %v847
        %v876 = vmul.f32 %v547, %v847
        %v877 = vmul.f32 %v549, %v848
        %v878 = vmul.f32 %v551, %v848
        %v879 = vmul.f32 %v555, %v849
        %v880 = vmul.f32 %v557, %v849
        %v881 = vmul.f32 %v559, %v850
        %v882 = vmul.f32 %v561, %v850
        %v883 = vmul.f32 %v565, %v565
        %v884 = vmul.f32 %v567, %v567
        %v885 = vmul.f32 %v569, %v569
        %v886 = vmul.f32 %v571, %v571
        %v887 = vmul.f32 %v575, %v575
        %v888 = vmul.f32 %v577, %v577
        %v889 = vmul.f32 %v579, %v579
        %v890 = vmul.f32 %v581, %v581
        %v891 = vmul.f32 %v585, %v585
        %v892 = vmul.f32 %v587, %v587
        %v893 = vmul.f32 %v589, %v589
        %v894 = vmul.f32 %v591, %v591
        %v895 = vmul.f32 %v595, %v595
        %v896 = vmul.f32 %v597, %v597
        %v897 = vmul.f32 %v599, %v599
        %v898 = vmul.f32 %v601, %v601
        %v899 = vmul.f32 %v605, %v605
        %v900 = vmul.f32 %v607, %v607
        %v901 = vmul.f32 %v609, %v609
        %v902 = vmul.f32 %v611, %v611
        %v903 = vmul.f32 %v615, %v615
        %v904 = vmul.f32 %v617, %v617
        %v905 = vmul.f32 %v619, %v619
        %v906 = vmul.f32 %v621, %v621
        %v907 = vmul.f32 %v625, %v625
        %v908 = vmul.f32 %v627, %v627
        %v909 = vmul.f32 %v629, %v629
        %v910 = vmul.f32 %v631, %v631
        %v911 = vmul.f32 %v635, %v635
        %v912 = vmul.f32 %v637, %v637
        %v913 = vmul.f32 %v639, %v639
        %v914 = vmul.f32 %v641, %v641
        %v915 = vadd.f32 %v883, %v884
        %916 = vadd.xlane.f32.xlu0 %v915
        %v917 = vpop.xlane.xlu0 %916
        %v918 = vadd.f32 %v885, %v886
        %919 = vadd.xlane.f32.xlu0 %v918
        %v920 = vpop.xlane.xlu0 %919
        %v921 = vadd.f32 %v887, %v888
        %922 = vadd.xlane.f32.xlu0 %v921
        %v923 = vpop.xlane.xlu0 %922
        %v924 = vadd.f32 %v889, %v890
        %925 = vadd.xlane.f32.xlu0 %v924
        %v926 = vpop.xlane.xlu0 %925
        %v927 = vadd.f32 %v891, %v892
        %928 = vadd.xlane.f32.xlu0 %v927
        %v929 = vpop.xlane.xlu0 %928
        %v930 = vadd.f32 %v893, %v894
        %931 = vadd.xlane.f32.xlu0 %v930
        %v932 = vpop.xlane.xlu0 %931
        %v933 = vadd.f32 %v895, %v896
        %934 = vadd.xlane.f32.xlu0 %v933
        %v935 = vpop.xlane.xlu0 %934
        %v936 = vadd.f32 %v897, %v898
        %937 = vadd.xlane.f32.xlu0 %v936
        %v938 = vpop.xlane.xlu0 %937
        %v939 = vadd.f32 %v899, %v900
        %940 = vadd.xlane.f32.xlu0 %v939
        %v941 = vpop.xlane.xlu0 %940
        %v942 = vadd.f32 %v901, %v902
        %943 = vadd.xlane.f32.xlu0 %v942
        %v944 = vpop.xlane.xlu0 %943
        %v945 = vadd.f32 %v903, %v904
        %946 = vadd.xlane.f32.xlu0 %v945
        %v947 = vpop.xlane.xlu0 %946
        %v948 = vadd.f32 %v905, %v906
        %949 = vadd.xlane.f32.xlu0 %v948
        %v950 = vpop.xlane.xlu0 %949
        %v951 = vadd.f32 %v907, %v908
        %952 = vadd.xlane.f32.xlu0 %v951
        %v953 = vpop.xlane.xlu0 %952
        %v954 = vadd.f32 %v909, %v910
        %955 = vadd.xlane.f32.xlu0 %v954
        %v956 = vpop.xlane.xlu0 %955
        %v957 = vadd.f32 %v911, %v912
        %958 = vadd.xlane.f32.xlu0 %v957
        %v959 = vpop.xlane.xlu0 %958
        %v960 = vadd.f32 %v913, %v914
        %961 = vadd.xlane.f32.xlu0 %v960
        %v962 = vpop.xlane.xlu0 %961
        %v963 = vmax.f32 %v917, 1e-24
        %v964 = vmax.f32 %v920, 1e-24
        %v965 = vmax.f32 %v923, 1e-24
        %v966 = vmax.f32 %v926, 1e-24
        %v967 = vmax.f32 %v929, 1e-24
        %v968 = vmax.f32 %v932, 1e-24
        %v969 = vmax.f32 %v935, 1e-24
        %v970 = vmax.f32 %v938, 1e-24
        %v971 = vmax.f32 %v941, 1e-24
        %v972 = vmax.f32 %v944, 1e-24
        %v973 = vmax.f32 %v947, 1e-24
        %v974 = vmax.f32 %v950, 1e-24
        %v975 = vmax.f32 %v953, 1e-24
        %v976 = vmax.f32 %v956, 1e-24
        %v977 = vmax.f32 %v959, 1e-24
        %v978 = vmax.f32 %v962, 1e-24
        %v979 = vrsqrt.pop %v963
        %v980 = vrsqrt.pop %v964
        %v981 = vrsqrt.pop %v965
        %v982 = vrsqrt.pop %v966
        %v983 = vrsqrt.pop %v967
        %v984 = vrsqrt.pop %v968
        %v985 = vrsqrt.pop %v969
        %v986 = vrsqrt.pop %v970
        %v987 = vrsqrt.pop %v971
        %v988 = vrsqrt.pop %v972
        %v989 = vrsqrt.pop %v973
        %v990 = vrsqrt.pop %v974
        %v991 = vrsqrt.pop %v975
        %v992 = vrsqrt.pop %v976
        %v993 = vrsqrt.pop %v977
        %v994 = vrsqrt.pop %v978
        %v995 = vmul.f32 %v565, %v979
        %v996 = vmul.f32 %v567, %v979
        %v997 = vmul.f32 %v569, %v980
        %v998 = vmul.f32 %v571, %v980
        %v999 = vmul.f32 %v575, %v981
        %v1000 = vmul.f32 %v577, %v981
        %v1001 = vmul.f32 %v579, %v982
        %v1002 = vmul.f32 %v581, %v982
        %v1003 = vmul.f32 %v585, %v983
        %v1004 = vmul.f32 %v587, %v983
        %v1005 = vmul.f32 %v589, %v984
        %v1006 = vmul.f32 %v591, %v984
        %v1007 = vmul.f32 %v595, %v985
        %v1008 = vmul.f32 %v597, %v985
        %v1009 = vmul.f32 %v599, %v986
        %v1010 = vmul.f32 %v601, %v986
        %v1011 = vmul.f32 %v605, %v987
        %v1012 = vmul.f32 %v607, %v987
        %v1013 = vmul.f32 %v609, %v988
        %v1014 = vmul.f32 %v611, %v988
        %v1015 = vmul.f32 %v615, %v989
        %v1016 = vmul.f32 %v617, %v989
        %v1017 = vmul.f32 %v619, %v990
        %v1018 = vmul.f32 %v621, %v990
        %v1019 = vmul.f32 %v625, %v991
        %v1020 = vmul.f32 %v627, %v991
        %v1021 = vmul.f32 %v629, %v992
        %v1022 = vmul.f32 %v631, %v992
        %v1023 = vmul.f32 %v635, %v993
        %v1024 = vmul.f32 %v637, %v993
        %v1025 = vmul.f32 %v639, %v994
        %v1026 = vmul.f32 %v641, %v994
        %v1027 = vpack.c.bf16 %v853, %v851
        %v1028 = vpack.c.bf16 %v854, %v852
        %v1029 = vpack.c.bf16 %v857, %v855
        %v1030 = vpack.c.bf16 %v858, %v856
        %v1031 = vpack.c.bf16 %v861, %v859
        %v1032 = vpack.c.bf16 %v862, %v860
        %v1033 = vpack.c.bf16 %v865, %v863
        %v1034 = vpack.c.bf16 %v866, %v864
        %v1035 = vpack.c.bf16 %v869, %v867
        %v1036 = vpack.c.bf16 %v870, %v868
        %v1037 = vpack.c.bf16 %v873, %v871
        %v1038 = vpack.c.bf16 %v874, %v872
        %v1039 = vpack.c.bf16 %v877, %v875
        %v1040 = vpack.c.bf16 %v878, %v876
        %v1041 = vpack.c.bf16 %v881, %v879
        %v1042 = vpack.c.bf16 %v882, %v880
        %v1043 = vpack.c.bf16 %v997, %v995
        %v1044 = vpack.c.bf16 %v998, %v996
        %v1045 = vpack.c.bf16 %v1001, %v999
        %v1046 = vpack.c.bf16 %v1002, %v1000
        %v1047 = vpack.c.bf16 %v1005, %v1003
        %v1048 = vpack.c.bf16 %v1006, %v1004
        %v1049 = vpack.c.bf16 %v1009, %v1007
        %v1050 = vpack.c.bf16 %v1010, %v1008
        %v1051 = vpack.c.bf16 %v1013, %v1011
        %v1052 = vpack.c.bf16 %v1014, %v1012
        %v1053 = vpack.c.bf16 %v1017, %v1015
        %v1054 = vpack.c.bf16 %v1018, %v1016
        %v1055 = vpack.c.bf16 %v1021, %v1019
        %v1056 = vpack.c.bf16 %v1022, %v1020
        %v1057 = vpack.c.bf16 %v1025, %v1023
        %v1058 = vpack.c.bf16 %v1026, %v1024
        %1059 = vxpose.xlu0.c.b16.start [1/8] %v1027, 128
        %1060 = vxpose.xlu0.c.b16.cont [2/8] %v1029, 128
        %1061 = vxpose.xlu0.c.b16.cont [3/8] 0, 128
        %1062 = vxpose.xlu0.c.b16.cont [4/8] 0, 128
        %1063 = vxpose.xlu0.c.b16.cont [5/8] 0, 128
        %1064 = vxpose.xlu0.c.b16.cont [6/8] 0, 128
        %1065 = vxpose.xlu0.c.b16.cont [7/8] 0, 128
        %1066 = vxpose.xlu0.c.b16.end [8/8] 0, 128
        %v1067 = vpop.trf.xlu0
        %v1068 = vpop.trf.xlu0
        %v1069 = vpop.trf.xlu0
        %v1070 = vpop.trf.xlu0
        %v1071 = vpop.trf.xlu0
        %v1072 = vpop.trf.xlu0
        %v1073 = vpop.trf.xlu0
        %v1074 = vpop.trf.xlu0
        %1075 = vxpose.xlu0.c.b16.start [1/8] %v1028, 128
        %1076 = vxpose.xlu0.c.b16.cont [2/8] %v1030, 128
        %1077 = vxpose.xlu0.c.b16.cont [3/8] 0, 128
        %1078 = vxpose.xlu0.c.b16.cont [4/8] 0, 128
        %1079 = vxpose.xlu0.c.b16.cont [5/8] 0, 128
        %1080 = vxpose.xlu0.c.b16.cont [6/8] 0, 128
        %1081 = vxpose.xlu0.c.b16.cont [7/8] 0, 128
        %1082 = vxpose.xlu0.c.b16.end [8/8] 0, 128
        %v1083 = vpop.trf.xlu0
        %v1084 = vpop.trf.xlu0
        %v1085 = vpop.trf.xlu0
        %v1086 = vpop.trf.xlu0
        %v1087 = vpop.trf.xlu0
        %v1088 = vpop.trf.xlu0
        %v1089 = vpop.trf.xlu0
        %v1090 = vpop.trf.xlu0
        %v1092 = vsel %vm377, %v1067, 0
        %v1095 = vsel %vm377, %v1068, 0
        %v1098 = vsel %vm377, %v1069, 0
        %v1101 = vsel %vm377, %v1070, 0
        %v1104 = vsel %vm377, %v1071, 0
        %v1107 = vsel %vm377, %v1072, 0
        %v1110 = vsel %vm377, %v1073, 0
        %v1113 = vsel %vm377, %v1074, 0
        %v1116 = vsel %vm377, %v1083, 0
        %v1119 = vsel %vm377, %v1084, 0
        %v1122 = vsel %vm377, %v1085, 0
        %v1125 = vsel %vm377, %v1086, 0
        %v1128 = vsel %vm377, %v1087, 0
        %v1131 = vsel %vm377, %v1088, 0
        %v1134 = vsel %vm377, %v1089, 0
        %v1137 = vsel %vm377, %v1090, 0
        %1139 = vmatprep.subr.bf16.mxu0 %v1044
        %1140 = vmatpush1.bf16.msra.mxu0 %v1043
        %1141 = vmatprep.subr.bf16.mxu0 %v1046
        %1142 = vmatpush1.bf16.msra.mxu0 %v1045
        %1143 = vmatprep.subr.bf16.mxu0 0
        %1144 = vmatpush1.bf16.msra.mxu0 0
        %1145 = vmatprep.subr.bf16.mxu0 0
        %1146 = vmatpush1.bf16.msra.mxu0 0
        %1147 = vmatprep.subr.bf16.mxu0 0
        %1148 = vmatpush1.bf16.msra.mxu0 0
        %1149 = vmatprep.subr.bf16.mxu0 0
        %1150 = vmatpush1.bf16.msra.mxu0 0
        %1151 = vmatprep.subr.bf16.mxu0 0
        %1152 = vmatpush1.bf16.msra.mxu0 0
        %1153 = vmatprep.subr.bf16.mxu0 0
        %1154 = vmatpush1.bf16.msra.mxu0 0
        %1155 = vmatprep.subr.bf16.mxu0 0
        %1156 = vmatpush1.bf16.msra.mxu0 0
        %1157 = vmatprep.subr.bf16.mxu0 0
        %1158 = vmatpush1.bf16.msra.mxu0 0
        %1159 = vmatprep.subr.bf16.mxu0 0
        %1160 = vmatpush1.bf16.msra.mxu0 0
        %1161 = vmatprep.subr.bf16.mxu0 0
        %1162 = vmatpush1.bf16.msra.mxu0 0
        %1163 = vmatprep.subr.bf16.mxu0 0
        %1164 = vmatpush1.bf16.msra.mxu0 0
        %1165 = vmatprep.subr.bf16.mxu0 0
        %1166 = vmatpush1.bf16.msra.mxu0 0
        %1167 = vmatprep.subr.bf16.mxu0 0
        %1168 = vmatpush1.bf16.msra.mxu0 0
        %1169 = vmatprep.subr.bf16.mxu0 0
        %1170 = vmatpush1.bf16.msra.mxu0 0
        %1171 = vmatprep.mubr.bf16.mxu0 0
        %1172 = vmatmul.mubr.bf16.gmra.mrb[0].mxu0 %v1092
        %v1173 = vpop.f32.mrb[0].mxu0
        %v1174 = vadd.f32 0.0, %v1173
        %v1175 = vpop.f32.mrb[0].mxu0
        %v1176 = vadd.f32 0.0, %v1175
        %v1177 = vpop.f32.mrb[0].mxu0
        %v1178 = vadd.f32 0.0, %v1177
        %v1179 = vpop.f32.mrb[0].mxu0
        %v1180 = vadd.f32 0.0, %v1179
        %1181 = vmatprep.mubr.bf16.mxu0 0
        %1182 = vmatmul.mubr.bf16.gmra.mrb[0].mxu0 %v1095
        %v1183 = vpop.f32.mrb[0].mxu0
        %v1184 = vadd.f32 0.0, %v1183
        %v1185 = vpop.f32.mrb[0].mxu0
        %v1186 = vadd.f32 0.0, %v1185
        %v1187 = vpop.f32.mrb[0].mxu0
        %v1188 = vadd.f32 0.0, %v1187
        %v1189 = vpop.f32.mrb[0].mxu0
        %v1190 = vadd.f32 0.0, %v1189
        %1191 = vmatprep.mubr.bf16.mxu0 0
        %1192 = vmatmul.mubr.bf16.gmra.mrb[0].mxu0 %v1098
        %v1193 = vpop.f32.mrb[0].mxu0
        %v1194 = vadd.f32 0.0, %v1193
        %v1195 = vpop.f32.mrb[0].mxu0
        %v1196 = vadd.f32 0.0, %v1195
        %v1197 = vpop.f32.mrb[0].mxu0
        %v1198 = vadd.f32 0.0, %v1197
        %v1199 = vpop.f32.mrb[0].mxu0
        %v1200 = vadd.f32 0.0, %v1199
        %1201 = vmatprep.mubr.bf16.mxu0 0
        %1202 = vmatmul.mubr.bf16.gmra.mrb[0].mxu0 %v1101
        %v1203 = vpop.f32.mrb[0].mxu0
        %v1204 = vadd.f32 0.0, %v1203
        %v1205 = vpop.f32.mrb[0].mxu0
        %v1206 = vadd.f32 0.0, %v1205
        %v1207 = vpop.f32.mrb[0].mxu0
        %v1208 = vadd.f32 0.0, %v1207
        %v1209 = vpop.f32.mrb[0].mxu0
        %v1210 = vadd.f32 0.0, %v1209
        %1211 = vmatprep.mubr.bf16.mxu0 0
        %1212 = vmatmul.mubr.bf16.gmra.mrb[0].mxu0 %v1104
        %v1213 = vpop.f32.mrb[0].mxu0
        %v1214 = vadd.f32 0.0, %v1213
        %v1215 = vpop.f32.mrb[0].mxu0
        %v1216 = vadd.f32 0.0, %v1215
        %v1217 = vpop.f32.mrb[0].mxu0
        %v1218 = vadd.f32 0.0, %v1217
        %v1219 = vpop.f32.mrb[0].mxu0
        %v1220 = vadd.f32 0.0, %v1219
        %1221 = vmatprep.mubr.bf16.mxu0 0
        %1222 = vmatmul.mubr.bf16.gmra.mrb[0].mxu0 %v1107
        %v1223 = vpop.f32.mrb[0].mxu0
        %v1224 = vadd.f32 0.0, %v1223
        %v1225 = vpop.f32.mrb[0].mxu0
        %v1226 = vadd.f32 0.0, %v1225
        %v1227 = vpop.f32.mrb[0].mxu0
        %v1228 = vadd.f32 0.0, %v1227
        %v1229 = vpop.f32.mrb[0].mxu0
        %v1230 = vadd.f32 0.0, %v1229
        %1231 = vmatprep.mubr.bf16.mxu0 0
        %1232 = vmatmul.mubr.bf16.gmra.mrb[0].mxu0 %v1110
        %v1233 = vpop.f32.mrb[0].mxu0
        %v1234 = vadd.f32 0.0, %v1233
        %v1235 = vpop.f32.mrb[0].mxu0
        %v1236 = vadd.f32 0.0, %v1235
        %v1237 = vpop.f32.mrb[0].mxu0
        %v1238 = vadd.f32 0.0, %v1237
        %v1239 = vpop.f32.mrb[0].mxu0
        %v1240 = vadd.f32 0.0, %v1239
        %1241 = vmatprep.mubr.bf16.mxu0 0
        %1242 = vmatmul.mubr.bf16.gmra.mrb[0].mxu0 %v1113
        %v1243 = vpop.f32.mrb[0].mxu0
        %v1244 = vadd.f32 0.0, %v1243
        %v1245 = vpop.f32.mrb[0].mxu0
        %v1246 = vadd.f32 0.0, %v1245
        %v1247 = vpop.f32.mrb[0].mxu0
        %v1248 = vadd.f32 0.0, %v1247
        %v1249 = vpop.f32.mrb[0].mxu0
        %v1250 = vadd.f32 0.0, %v1249
        %1251 = vmatprep.mubr.bf16.mxu0 0
        %1252 = vmatmul.mubr.bf16.gmra.mrb[0].mxu0 %v1116
        %v1253 = vpop.f32.mrb[0].mxu0
        %v1254 = vadd.f32 0.0, %v1253
        %v1255 = vpop.f32.mrb[0].mxu0
        %v1256 = vadd.f32 0.0, %v1255
        %v1257 = vpop.f32.mrb[0].mxu0
        %v1258 = vadd.f32 0.0, %v1257
        %v1259 = vpop.f32.mrb[0].mxu0
        %v1260 = vadd.f32 0.0, %v1259
        %1261 = vmatprep.mubr.bf16.mxu0 0
        %1262 = vmatmul.mubr.bf16.gmra.mrb[0].mxu0 %v1119
        %v1263 = vpop.f32.mrb[0].mxu0
        %v1264 = vadd.f32 0.0, %v1263
        %v1265 = vpop.f32.mrb[0].mxu0
        %v1266 = vadd.f32 0.0, %v1265
        %v1267 = vpop.f32.mrb[0].mxu0
        %v1268 = vadd.f32 0.0, %v1267
        %v1269 = vpop.f32.mrb[0].mxu0
        %v1270 = vadd.f32 0.0, %v1269
        %1271 = vmatprep.mubr.bf16.mxu0 0
        %1272 = vmatmul.mubr.bf16.gmra.mrb[0].mxu0 %v1122
        %v1273 = vpop.f32.mrb[0].mxu0
        %v1274 = vadd.f32 0.0, %v1273
        %v1275 = vpop.f32.mrb[0].mxu0
        %v1276 = vadd.f32 0.0, %v1275
        %v1277 = vpop.f32.mrb[0].mxu0
        %v1278 = vadd.f32 0.0, %v1277
        %v1279 = vpop.f32.mrb[0].mxu0
        %v1280 = vadd.f32 0.0, %v1279
        %1281 = vmatprep.mubr.bf16.mxu0 0
        %1282 = vmatmul.mubr.bf16.gmra.mrb[0].mxu0 %v1125
        %v1283 = vpop.f32.mrb[0].mxu0
        %v1284 = vadd.f32 0.0, %v1283
        %v1285 = vpop.f32.mrb[0].mxu0
        %v1286 = vadd.f32 0.0, %v1285
        %v1287 = vpop.f32.mrb[0].mxu0
        %v1288 = vadd.f32 0.0, %v1287
        %v1289 = vpop.f32.mrb[0].mxu0
        %v1290 = vadd.f32 0.0, %v1289
        %1291 = vmatprep.mubr.bf16.mxu0 0
        %1292 = vmatmul.mubr.bf16.gmra.mrb[0].mxu0 %v1128
        %v1293 = vpop.f32.mrb[0].mxu0
        %v1294 = vadd.f32 0.0, %v1293
        %v1295 = vpop.f32.mrb[0].mxu0
        %v1296 = vadd.f32 0.0, %v1295
        %v1297 = vpop.f32.mrb[0].mxu0
        %v1298 = vadd.f32 0.0, %v1297
        %v1299 = vpop.f32.mrb[0].mxu0
        %v1300 = vadd.f32 0.0, %v1299
        %1301 = vmatprep.mubr.bf16.mxu0 0
        %1302 = vmatmul.mubr.bf16.gmra.mrb[0].mxu0 %v1131
        %v1303 = vpop.f32.mrb[0].mxu0
        %v1304 = vadd.f32 0.0, %v1303
        %v1305 = vpop.f32.mrb[0].mxu0
        %v1306 = vadd.f32 0.0, %v1305
        %v1307 = vpop.f32.mrb[0].mxu0
        %v1308 = vadd.f32 0.0, %v1307
        %v1309 = vpop.f32.mrb[0].mxu0
        %v1310 = vadd.f32 0.0, %v1309
        %1311 = vmatprep.mubr.bf16.mxu0 0
        %1312 = vmatmul.mubr.bf16.gmra.mrb[0].mxu0 %v1134
        %v1313 = vpop.f32.mrb[0].mxu0
        %v1314 = vadd.f32 0.0, %v1313
        %v1315 = vpop.f32.mrb[0].mxu0
        %v1316 = vadd.f32 0.0, %v1315
        %v1317 = vpop.f32.mrb[0].mxu0
        %v1318 = vadd.f32 0.0, %v1317
        %v1319 = vpop.f32.mrb[0].mxu0
        %v1320 = vadd.f32 0.0, %v1319
        %1321 = vmatprep.mubr.bf16.mxu0 0
        %1322 = vmatmul.mubr.bf16.gmra.mrb[0].mxu0 %v1137
        %v1323 = vpop.f32.mrb[0].mxu0
        %v1324 = vadd.f32 0.0, %v1323
        %v1325 = vpop.f32.mrb[0].mxu0
        %v1326 = vadd.f32 0.0, %v1325
        %v1327 = vpop.f32.mrb[0].mxu0
        %v1328 = vadd.f32 0.0, %v1327
        %v1329 = vpop.f32.mrb[0].mxu0
        %v1330 = vadd.f32 0.0, %v1329
        %1331 = vdwg.mxu0
        %1332 = vxpose.xlu0.c.b16.start [1/8] %v1031, 128
        %1333 = vxpose.xlu0.c.b16.cont [2/8] %v1033, 128
        %1334 = vxpose.xlu0.c.b16.cont [3/8] 0, 128
        %1335 = vxpose.xlu0.c.b16.cont [4/8] 0, 128
        %1336 = vxpose.xlu0.c.b16.cont [5/8] 0, 128
        %1337 = vxpose.xlu0.c.b16.cont [6/8] 0, 128
        %1338 = vxpose.xlu0.c.b16.cont [7/8] 0, 128
        %1339 = vxpose.xlu0.c.b16.end [8/8] 0, 128
        %v1340 = vpop.trf.xlu0
        %v1341 = vpop.trf.xlu0
        %v1342 = vpop.trf.xlu0
        %v1343 = vpop.trf.xlu0
        %v1344 = vpop.trf.xlu0
        %v1345 = vpop.trf.xlu0
        %v1346 = vpop.trf.xlu0
        %v1347 = vpop.trf.xlu0
        %1348 = vxpose.xlu0.c.b16.start [1/8] %v1032, 128
        %1349 = vxpose.xlu0.c.b16.cont [2/8] %v1034, 128
        %1350 = vxpose.xlu0.c.b16.cont [3/8] 0, 128
        %1351 = vxpose.xlu0.c.b16.cont [4/8] 0, 128
        %1352 = vxpose.xlu0.c.b16.cont [5/8] 0, 128
        %1353 = vxpose.xlu0.c.b16.cont [6/8] 0, 128
        %1354 = vxpose.xlu0.c.b16.cont [7/8] 0, 128
        %1355 = vxpose.xlu0.c.b16.end [8/8] 0, 128
        %v1356 = vpop.trf.xlu0
        %v1357 = vpop.trf.xlu0
        %v1358 = vpop.trf.xlu0
        %v1359 = vpop.trf.xlu0
        %v1360 = vpop.trf.xlu0
        %v1361 = vpop.trf.xlu0
        %v1362 = vpop.trf.xlu0
        %v1363 = vpop.trf.xlu0
        %v1365 = vsel %vm377, %v1340, 0
        %v1368 = vsel %vm377, %v1341, 0
        %v1371 = vsel %vm377, %v1342, 0
        %v1374 = vsel %vm377, %v1343, 0
        %v1377 = vsel %vm377, %v1344, 0
        %v1380 = vsel %vm377, %v1345, 0
        %v1383 = vsel %vm377, %v1346, 0
        %v1386 = vsel %vm377, %v1347, 0
        %v1389 = vsel %vm377, %v1356, 0
        %v1392 = vsel %vm377, %v1357, 0
        %v1395 = vsel %vm377, %v1358, 0
        %v1398 = vsel %vm377, %v1359, 0
        %v1401 = vsel %vm377, %v1360, 0
        %v1404 = vsel %vm377, %v1361, 0
        %v1407 = vsel %vm377, %v1362, 0
        %v1410 = vsel %vm377, %v1363, 0
        %1412 = vmatprep.subr.bf16.mxu0 %v1048
        %1413 = vmatpush1.bf16.msra.mxu0 %v1047
        %1414 = vmatprep.subr.bf16.mxu0 %v1050
        %1415 = vmatpush1.bf16.msra.mxu0 %v1049
        %1416 = vmatprep.subr.bf16.mxu0 0
        %1417 = vmatpush1.bf16.msra.mxu0 0
        %1418 = vmatprep.subr.bf16.mxu0 0
        %1419 = vmatpush1.bf16.msra.mxu0 0
        %1420 = vmatprep.subr.bf16.mxu0 0
        %1421 = vmatpush1.bf16.msra.mxu0 0
        %1422 = vmatprep.subr.bf16.mxu0 0
        %1423 = vmatpush1.bf16.msra.mxu0 0
        %1424 = vmatprep.subr.bf16.mxu0 0
        %1425 = vmatpush1.bf16.msra.mxu0 0
        %1426 = vmatprep.subr.bf16.mxu0 0
        %1427 = vmatpush1.bf16.msra.mxu0 0
        %1428 = vmatprep.subr.bf16.mxu0 0
        %1429 = vmatpush1.bf16.msra.mxu0 0
        %1430 = vmatprep.subr.bf16.mxu0 0
        %1431 = vmatpush1.bf16.msra.mxu0 0
        %1432 = vmatprep.subr.bf16.mxu0 0
        %1433 = vmatpush1.bf16.msra.mxu0 0
        %1434 = vmatprep.subr.bf16.mxu0 0
        %1435 = vmatpush1.bf16.msra.mxu0 0
        %1436 = vmatprep.subr.bf16.mxu0 0
        %1437 = vmatpush1.bf16.msra.mxu0 0
        %1438 = vmatprep.subr.bf16.mxu0 0
        %1439 = vmatpush1.bf16.msra.mxu0 0
        %1440 = vmatprep.subr.bf16.mxu0 0
        %1441 = vmatpush1.bf16.msra.mxu0 0
        %1442 = vmatprep.subr.bf16.mxu0 0
        %1443 = vmatpush1.bf16.msra.mxu0 0
        %1444 = vmatprep.mubr.bf16.mxu0 0
        %1445 = vmatmul.mubr.bf16.gmra.mrb[0].mxu0 %v1365
        %v1446 = vpop.f32.mrb[0].mxu0
        %v1447 = vadd.f32 0.0, %v1446
        %v1448 = vpop.f32.mrb[0].mxu0
        %v1449 = vadd.f32 0.0, %v1448
        %v1450 = vpop.f32.mrb[0].mxu0
        %v1451 = vadd.f32 0.0, %v1450
        %v1452 = vpop.f32.mrb[0].mxu0
        %v1453 = vadd.f32 0.0, %v1452
        %1454 = vmatprep.mubr.bf16.mxu0 0
        %1455 = vmatmul.mubr.bf16.gmra.mrb[0].mxu0 %v1368
        %v1456 = vpop.f32.mrb[0].mxu0
        %v1457 = vadd.f32 0.0, %v1456
        %v1458 = vpop.f32.mrb[0].mxu0
        %v1459 = vadd.f32 0.0, %v1458
        %v1460 = vpop.f32.mrb[0].mxu0
        %v1461 = vadd.f32 0.0, %v1460
        %v1462 = vpop.f32.mrb[0].mxu0
        %v1463 = vadd.f32 0.0, %v1462
        %1464 = vmatprep.mubr.bf16.mxu0 0
        %1465 = vmatmul.mubr.bf16.gmra.mrb[0].mxu0 %v1371
        %v1466 = vpop.f32.mrb[0].mxu0
        %v1467 = vadd.f32 0.0, %v1466
        %v1468 = vpop.f32.mrb[0].mxu0
        %v1469 = vadd.f32 0.0, %v1468
        %v1470 = vpop.f32.mrb[0].mxu0
        %v1471 = vadd.f32 0.0, %v1470
        %v1472 = vpop.f32.mrb[0].mxu0
        %v1473 = vadd.f32 0.0, %v1472
        %1474 = vmatprep.mubr.bf16.mxu0 0
        %1475 = vmatmul.mubr.bf16.gmra.mrb[0].mxu0 %v1374
        %v1476 = vpop.f32.mrb[0].mxu0
        %v1477 = vadd.f32 0.0, %v1476
        %v1478 = vpop.f32.mrb[0].mxu0
        %v1479 = vadd.f32 0.0, %v1478
        %v1480 = vpop.f32.mrb[0].mxu0
        %v1481 = vadd.f32 0.0, %v1480
        %v1482 = vpop.f32.mrb[0].mxu0
        %v1483 = vadd.f32 0.0, %v1482
        %1484 = vmatprep.mubr.bf16.mxu0 0
        %1485 = vmatmul.mubr.bf16.gmra.mrb[0].mxu0 %v1377
        %v1486 = vpop.f32.mrb[0].mxu0
        %v1487 = vadd.f32 0.0, %v1486
        %v1488 = vpop.f32.mrb[0].mxu0
        %v1489 = vadd.f32 0.0, %v1488
        %v1490 = vpop.f32.mrb[0].mxu0
        %v1491 = vadd.f32 0.0, %v1490
        %v1492 = vpop.f32.mrb[0].mxu0
        %v1493 = vadd.f32 0.0, %v1492
        %1494 = vmatprep.mubr.bf16.mxu0 0
        %1495 = vmatmul.mubr.bf16.gmra.mrb[0].mxu0 %v1380
        %v1496 = vpop.f32.mrb[0].mxu0
        %v1497 = vadd.f32 0.0, %v1496
        %v1498 = vpop.f32.mrb[0].mxu0
        %v1499 = vadd.f32 0.0, %v1498
        %v1500 = vpop.f32.mrb[0].mxu0
        %v1501 = vadd.f32 0.0, %v1500
        %v1502 = vpop.f32.mrb[0].mxu0
        %v1503 = vadd.f32 0.0, %v1502
        %1504 = vmatprep.mubr.bf16.mxu0 0
        %1505 = vmatmul.mubr.bf16.gmra.mrb[0].mxu0 %v1383
        %v1506 = vpop.f32.mrb[0].mxu0
        %v1507 = vadd.f32 0.0, %v1506
        %v1508 = vpop.f32.mrb[0].mxu0
        %v1509 = vadd.f32 0.0, %v1508
        %v1510 = vpop.f32.mrb[0].mxu0
        %v1511 = vadd.f32 0.0, %v1510
        %v1512 = vpop.f32.mrb[0].mxu0
        %v1513 = vadd.f32 0.0, %v1512
        %1514 = vmatprep.mubr.bf16.mxu0 0
        %1515 = vmatmul.mubr.bf16.gmra.mrb[0].mxu0 %v1386
        %v1516 = vpop.f32.mrb[0].mxu0
        %v1517 = vadd.f32 0.0, %v1516
        %v1518 = vpop.f32.mrb[0].mxu0
        %v1519 = vadd.f32 0.0, %v1518
        %v1520 = vpop.f32.mrb[0].mxu0
        %v1521 = vadd.f32 0.0, %v1520
        %v1522 = vpop.f32.mrb[0].mxu0
        %v1523 = vadd.f32 0.0, %v1522
        %1524 = vmatprep.mubr.bf16.mxu0 0
        %1525 = vmatmul.mubr.bf16.gmra.mrb[0].mxu0 %v1389
        %v1526 = vpop.f32.mrb[0].mxu0
        %v1527 = vadd.f32 0.0, %v1526
        %v1528 = vpop.f32.mrb[0].mxu0
        %v1529 = vadd.f32 0.0, %v1528
        %v1530 = vpop.f32.mrb[0].mxu0
        %v1531 = vadd.f32 0.0, %v1530
        %v1532 = vpop.f32.mrb[0].mxu0
        %v1533 = vadd.f32 0.0, %v1532
        %1534 = vmatprep.mubr.bf16.mxu0 0
        %1535 = vmatmul.mubr.bf16.gmra.mrb[0].mxu0 %v1392
        %v1536 = vpop.f32.mrb[0].mxu0
        %v1537 = vadd.f32 0.0, %v1536
        %v1538 = vpop.f32.mrb[0].mxu0
        %v1539 = vadd.f32 0.0, %v1538
        %v1540 = vpop.f32.mrb[0].mxu0
        %v1541 = vadd.f32 0.0, %v1540
        %v1542 = vpop.f32.mrb[0].mxu0
        %v1543 = vadd.f32 0.0, %v1542
        %1544 = vmatprep.mubr.bf16.mxu0 0
        %1545 = vmatmul.mubr.bf16.gmra.mrb[0].mxu0 %v1395
        %v1546 = vpop.f32.mrb[0].mxu0
        %v1547 = vadd.f32 0.0, %v1546
        %v1548 = vpop.f32.mrb[0].mxu0
        %v1549 = vadd.f32 0.0, %v1548
        %v1550 = vpop.f32.mrb[0].mxu0
        %v1551 = vadd.f32 0.0, %v1550
        %v1552 = vpop.f32.mrb[0].mxu0
        %v1553 = vadd.f32 0.0, %v1552
        %1554 = vmatprep.mubr.bf16.mxu0 0
        %1555 = vmatmul.mubr.bf16.gmra.mrb[0].mxu0 %v1398
        %v1556 = vpop.f32.mrb[0].mxu0
        %v1557 = vadd.f32 0.0, %v1556
        %v1558 = vpop.f32.mrb[0].mxu0
        %v1559 = vadd.f32 0.0, %v1558
        %v1560 = vpop.f32.mrb[0].mxu0
        %v1561 = vadd.f32 0.0, %v1560
        %v1562 = vpop.f32.mrb[0].mxu0
        %v1563 = vadd.f32 0.0, %v1562
        %1564 = vmatprep.mubr.bf16.mxu0 0
        %1565 = vmatmul.mubr.bf16.gmra.mrb[0].mxu0 %v1401
        %v1566 = vpop.f32.mrb[0].mxu0
        %v1567 = vadd.f32 0.0, %v1566
        %v1568 = vpop.f32.mrb[0].mxu0
        %v1569 = vadd.f32 0.0, %v1568
        %v1570 = vpop.f32.mrb[0].mxu0
        %v1571 = vadd.f32 0.0, %v1570
        %v1572 = vpop.f32.mrb[0].mxu0
        %v1573 = vadd.f32 0.0, %v1572
        %1574 = vmatprep.mubr.bf16.mxu0 0
        %1575 = vmatmul.mubr.bf16.gmra.mrb[0].mxu0 %v1404
        %v1576 = vpop.f32.mrb[0].mxu0
        %v1577 = vadd.f32 0.0, %v1576
        %v1578 = vpop.f32.mrb[0].mxu0
        %v1579 = vadd.f32 0.0, %v1578
        %v1580 = vpop.f32.mrb[0].mxu0
        %v1581 = vadd.f32 0.0, %v1580
        %v1582 = vpop.f32.mrb[0].mxu0
        %v1583 = vadd.f32 0.0, %v1582
        %1584 = vmatprep.mubr.bf16.mxu0 0
        %1585 = vmatmul.mubr.bf16.gmra.mrb[0].mxu0 %v1407
        %v1586 = vpop.f32.mrb[0].mxu0
        %v1587 = vadd.f32 0.0, %v1586
        %v1588 = vpop.f32.mrb[0].mxu0
        %v1589 = vadd.f32 0.0, %v1588
        %v1590 = vpop.f32.mrb[0].mxu0
        %v1591 = vadd.f32 0.0, %v1590
        %v1592 = vpop.f32.mrb[0].mxu0
        %v1593 = vadd.f32 0.0, %v1592
        %1594 = vmatprep.mubr.bf16.mxu0 0
        %1595 = vmatmul.mubr.bf16.gmra.mrb[0].mxu0 %v1410
        %v1596 = vpop.f32.mrb[0].mxu0
        %v1597 = vadd.f32 0.0, %v1596
        %v1598 = vpop.f32.mrb[0].mxu0
        %v1599 = vadd.f32 0.0, %v1598
        %v1600 = vpop.f32.mrb[0].mxu0
        %v1601 = vadd.f32 0.0, %v1600
        %v1602 = vpop.f32.mrb[0].mxu0
        %v1603 = vadd.f32 0.0, %v1602
        %1604 = vdwg.mxu0
        %1605 = vxpose.xlu0.c.b16.start [1/8] %v1035, 128
        %1606 = vxpose.xlu0.c.b16.cont [2/8] %v1037, 128
        %1607 = vxpose.xlu0.c.b16.cont [3/8] 0, 128
        %1608 = vxpose.xlu0.c.b16.cont [4/8] 0, 128
        %1609 = vxpose.xlu0.c.b16.cont [5/8] 0, 128
        %1610 = vxpose.xlu0.c.b16.cont [6/8] 0, 128
        %1611 = vxpose.xlu0.c.b16.cont [7/8] 0, 128
        %1612 = vxpose.xlu0.c.b16.end [8/8] 0, 128
        %v1613 = vpop.trf.xlu0
        %v1614 = vpop.trf.xlu0
        %v1615 = vpop.trf.xlu0
        %v1616 = vpop.trf.xlu0
        %v1617 = vpop.trf.xlu0
        %v1618 = vpop.trf.xlu0
        %v1619 = vpop.trf.xlu0
        %v1620 = vpop.trf.xlu0
        %1621 = vxpose.xlu0.c.b16.start [1/8] %v1036, 128
        %1622 = vxpose.xlu0.c.b16.cont [2/8] %v1038, 128
        %1623 = vxpose.xlu0.c.b16.cont [3/8] 0, 128
        %1624 = vxpose.xlu0.c.b16.cont [4/8] 0, 128
        %1625 = vxpose.xlu0.c.b16.cont [5/8] 0, 128
        %1626 = vxpose.xlu0.c.b16.cont [6/8] 0, 128
        %1627 = vxpose.xlu0.c.b16.cont [7/8] 0, 128
        %1628 = vxpose.xlu0.c.b16.end [8/8] 0, 128
        %v1629 = vpop.trf.xlu0
        %v1630 = vpop.trf.xlu0
        %v1631 = vpop.trf.xlu0
        %v1632 = vpop.trf.xlu0
        %v1633 = vpop.trf.xlu0
        %v1634 = vpop.trf.xlu0
        %v1635 = vpop.trf.xlu0
        %v1636 = vpop.trf.xlu0
        %v1638 = vsel %vm377, %v1613, 0
        %v1641 = vsel %vm377, %v1614, 0
        %v1644 = vsel %vm377, %v1615, 0
        %v1647 = vsel %vm377, %v1616, 0
        %v1650 = vsel %vm377, %v1617, 0
        %v1653 = vsel %vm377, %v1618, 0
        %v1656 = vsel %vm377, %v1619, 0
        %v1659 = vsel %vm377, %v1620, 0
        %v1662 = vsel %vm377, %v1629, 0
        %v1665 = vsel %vm377, %v1630, 0
        %v1668 = vsel %vm377, %v1631, 0
        %v1671 = vsel %vm377, %v1632, 0
        %v1674 = vsel %vm377, %v1633, 0
        %v1677 = vsel %vm377, %v1634, 0
        %v1680 = vsel %vm377, %v1635, 0
        %v1683 = vsel %vm377, %v1636, 0
        %1685 = vmatprep.subr.bf16.mxu0 %v1052
        %1686 = vmatpush1.bf16.msra.mxu0 %v1051
        %1687 = vmatprep.subr.bf16.mxu0 %v1054
        %1688 = vmatpush1.bf16.msra.mxu0 %v1053
        %1689 = vmatprep.subr.bf16.mxu0 0
        %1690 = vmatpush1.bf16.msra.mxu0 0
        %1691 = vmatprep.subr.bf16.mxu0 0
        %1692 = vmatpush1.bf16.msra.mxu0 0
        %1693 = vmatprep.subr.bf16.mxu0 0
        %1694 = vmatpush1.bf16.msra.mxu0 0
        %1695 = vmatprep.subr.bf16.mxu0 0
        %1696 = vmatpush1.bf16.msra.mxu0 0
        %1697 = vmatprep.subr.bf16.mxu0 0
        %1698 = vmatpush1.bf16.msra.mxu0 0
        %1699 = vmatprep.subr.bf16.mxu0 0
        %1700 = vmatpush1.bf16.msra.mxu0 0
        %1701 = vmatprep.subr.bf16.mxu0 0
        %1702 = vmatpush1.bf16.msra.mxu0 0
        %1703 = vmatprep.subr.bf16.mxu0 0
        %1704 = vmatpush1.bf16.msra.mxu0 0
        %1705 = vmatprep.subr.bf16.mxu0 0
        %1706 = vmatpush1.bf16.msra.mxu0 0
        %1707 = vmatprep.subr.bf16.mxu0 0
        %1708 = vmatpush1.bf16.msra.mxu0 0
        %1709 = vmatprep.subr.bf16.mxu0 0
        %1710 = vmatpush1.bf16.msra.mxu0 0
        %1711 = vmatprep.subr.bf16.mxu0 0
        %1712 = vmatpush1.bf16.msra.mxu0 0
        %1713 = vmatprep.subr.bf16.mxu0 0
        %1714 = vmatpush1.bf16.msra.mxu0 0
        %1715 = vmatprep.subr.bf16.mxu0 0
        %1716 = vmatpush1.bf16.msra.mxu0 0
        %1717 = vmatprep.mubr.bf16.mxu0 0
        %1718 = vmatmul.mubr.bf16.gmra.mrb[0].mxu0 %v1638
        %v1719 = vpop.f32.mrb[0].mxu0
        %v1720 = vadd.f32 0.0, %v1719
        %v1721 = vpop.f32.mrb[0].mxu0
        %v1722 = vadd.f32 0.0, %v1721
        %v1723 = vpop.f32.mrb[0].mxu0
        %v1724 = vadd.f32 0.0, %v1723
        %v1725 = vpop.f32.mrb[0].mxu0
        %v1726 = vadd.f32 0.0, %v1725
        %1727 = vmatprep.mubr.bf16.mxu0 0
        %1728 = vmatmul.mubr.bf16.gmra.mrb[0].mxu0 %v1641
        %v1729 = vpop.f32.mrb[0].mxu0
        %v1730 = vadd.f32 0.0, %v1729
        %v1731 = vpop.f32.mrb[0].mxu0
        %v1732 = vadd.f32 0.0, %v1731
        %v1733 = vpop.f32.mrb[0].mxu0
        %v1734 = vadd.f32 0.0, %v1733
        %v1735 = vpop.f32.mrb[0].mxu0
        %v1736 = vadd.f32 0.0, %v1735
        %1737 = vmatprep.mubr.bf16.mxu0 0
        %1738 = vmatmul.mubr.bf16.gmra.mrb[0].mxu0 %v1644
        %v1739 = vpop.f32.mrb[0].mxu0
        %v1740 = vadd.f32 0.0, %v1739
        %v1741 = vpop.f32.mrb[0].mxu0
        %v1742 = vadd.f32 0.0, %v1741
        %v1743 = vpop.f32.mrb[0].mxu0
        %v1744 = vadd.f32 0.0, %v1743
        %v1745 = vpop.f32.mrb[0].mxu0
        %v1746 = vadd.f32 0.0, %v1745
        %1747 = vmatprep.mubr.bf16.mxu0 0
        %1748 = vmatmul.mubr.bf16.gmra.mrb[0].mxu0 %v1647
        %v1749 = vpop.f32.mrb[0].mxu0
        %v1750 = vadd.f32 0.0, %v1749
        %v1751 = vpop.f32.mrb[0].mxu0
        %v1752 = vadd.f32 0.0, %v1751
        %v1753 = vpop.f32.mrb[0].mxu0
        %v1754 = vadd.f32 0.0, %v1753
        %v1755 = vpop.f32.mrb[0].mxu0
        %v1756 = vadd.f32 0.0, %v1755
        %1757 = vmatprep.mubr.bf16.mxu0 0
        %1758 = vmatmul.mubr.bf16.gmra.mrb[0].mxu0 %v1650
        %v1759 = vpop.f32.mrb[0].mxu0
        %v1760 = vadd.f32 0.0, %v1759
        %v1761 = vpop.f32.mrb[0].mxu0
        %v1762 = vadd.f32 0.0, %v1761
        %v1763 = vpop.f32.mrb[0].mxu0
        %v1764 = vadd.f32 0.0, %v1763
        %v1765 = vpop.f32.mrb[0].mxu0
        %v1766 = vadd.f32 0.0, %v1765
        %1767 = vmatprep.mubr.bf16.mxu0 0
        %1768 = vmatmul.mubr.bf16.gmra.mrb[0].mxu0 %v1653
        %v1769 = vpop.f32.mrb[0].mxu0
        %v1770 = vadd.f32 0.0, %v1769
        %v1771 = vpop.f32.mrb[0].mxu0
        %v1772 = vadd.f32 0.0, %v1771
        %v1773 = vpop.f32.mrb[0].mxu0
        %v1774 = vadd.f32 0.0, %v1773
        %v1775 = vpop.f32.mrb[0].mxu0
        %v1776 = vadd.f32 0.0, %v1775
        %1777 = vmatprep.mubr.bf16.mxu0 0
        %1778 = vmatmul.mubr.bf16.gmra.mrb[0].mxu0 %v1656
        %v1779 = vpop.f32.mrb[0].mxu0
        %v1780 = vadd.f32 0.0, %v1779
        %v1781 = vpop.f32.mrb[0].mxu0
        %v1782 = vadd.f32 0.0, %v1781
        %v1783 = vpop.f32.mrb[0].mxu0
        %v1784 = vadd.f32 0.0, %v1783
        %v1785 = vpop.f32.mrb[0].mxu0
        %v1786 = vadd.f32 0.0, %v1785
        %1787 = vmatprep.mubr.bf16.mxu0 0
        %1788 = vmatmul.mubr.bf16.gmra.mrb[0].mxu0 %v1659
        %v1789 = vpop.f32.mrb[0].mxu0
        %v1790 = vadd.f32 0.0, %v1789
        %v1791 = vpop.f32.mrb[0].mxu0
        %v1792 = vadd.f32 0.0, %v1791
        %v1793 = vpop.f32.mrb[0].mxu0
        %v1794 = vadd.f32 0.0, %v1793
        %v1795 = vpop.f32.mrb[0].mxu0
        %v1796 = vadd.f32 0.0, %v1795
        %1797 = vmatprep.mubr.bf16.mxu0 0
        %1798 = vmatmul.mubr.bf16.gmra.mrb[0].mxu0 %v1662
        %v1799 = vpop.f32.mrb[0].mxu0
        %v1800 = vadd.f32 0.0, %v1799
        %v1801 = vpop.f32.mrb[0].mxu0
        %v1802 = vadd.f32 0.0, %v1801
        %v1803 = vpop.f32.mrb[0].mxu0
        %v1804 = vadd.f32 0.0, %v1803
        %v1805 = vpop.f32.mrb[0].mxu0
        %v1806 = vadd.f32 0.0, %v1805
        %1807 = vmatprep.mubr.bf16.mxu0 0
        %1808 = vmatmul.mubr.bf16.gmra.mrb[0].mxu0 %v1665
        %v1809 = vpop.f32.mrb[0].mxu0
        %v1810 = vadd.f32 0.0, %v1809
        %v1811 = vpop.f32.mrb[0].mxu0
        %v1812 = vadd.f32 0.0, %v1811
        %v1813 = vpop.f32.mrb[0].mxu0
        %v1814 = vadd.f32 0.0, %v1813
        %v1815 = vpop.f32.mrb[0].mxu0
        %v1816 = vadd.f32 0.0, %v1815
        %1817 = vmatprep.mubr.bf16.mxu0 0
        %1818 = vmatmul.mubr.bf16.gmra.mrb[0].mxu0 %v1668
        %v1819 = vpop.f32.mrb[0].mxu0
        %v1820 = vadd.f32 0.0, %v1819
        %v1821 = vpop.f32.mrb[0].mxu0
        %v1822 = vadd.f32 0.0, %v1821
        %v1823 = vpop.f32.mrb[0].mxu0
        %v1824 = vadd.f32 0.0, %v1823
        %v1825 = vpop.f32.mrb[0].mxu0
        %v1826 = vadd.f32 0.0, %v1825
        %1827 = vmatprep.mubr.bf16.mxu0 0
        %1828 = vmatmul.mubr.bf16.gmra.mrb[0].mxu0 %v1671
        %v1829 = vpop.f32.mrb[0].mxu0
        %v1830 = vadd.f32 0.0, %v1829
        %v1831 = vpop.f32.mrb[0].mxu0
        %v1832 = vadd.f32 0.0, %v1831
        %v1833 = vpop.f32.mrb[0].mxu0
        %v1834 = vadd.f32 0.0, %v1833
        %v1835 = vpop.f32.mrb[0].mxu0
        %v1836 = vadd.f32 0.0, %v1835
        %1837 = vmatprep.mubr.bf16.mxu0 0
        %1838 = vmatmul.mubr.bf16.gmra.mrb[0].mxu0 %v1674
        %v1839 = vpop.f32.mrb[0].mxu0
        %v1840 = vadd.f32 0.0, %v1839
        %v1841 = vpop.f32.mrb[0].mxu0
        %v1842 = vadd.f32 0.0, %v1841
        %v1843 = vpop.f32.mrb[0].mxu0
        %v1844 = vadd.f32 0.0, %v1843
        %v1845 = vpop.f32.mrb[0].mxu0
        %v1846 = vadd.f32 0.0, %v1845
        %1847 = vmatprep.mubr.bf16.mxu0 0
        %1848 = vmatmul.mubr.bf16.gmra.mrb[0].mxu0 %v1677
        %v1849 = vpop.f32.mrb[0].mxu0
        %v1850 = vadd.f32 0.0, %v1849
        %v1851 = vpop.f32.mrb[0].mxu0
        %v1852 = vadd.f32 0.0, %v1851
        %v1853 = vpop.f32.mrb[0].mxu0
        %v1854 = vadd.f32 0.0, %v1853
        %v1855 = vpop.f32.mrb[0].mxu0
        %v1856 = vadd.f32 0.0, %v1855
        %1857 = vmatprep.mubr.bf16.mxu0 0
        %1858 = vmatmul.mubr.bf16.gmra.mrb[0].mxu0 %v1680
        %v1859 = vpop.f32.mrb[0].mxu0
        %v1860 = vadd.f32 0.0, %v1859
        %v1861 = vpop.f32.mrb[0].mxu0
        %v1862 = vadd.f32 0.0, %v1861
        %v1863 = vpop.f32.mrb[0].mxu0
        %v1864 = vadd.f32 0.0, %v1863
        %v1865 = vpop.f32.mrb[0].mxu0
        %v1866 = vadd.f32 0.0, %v1865
        %1867 = vmatprep.mubr.bf16.mxu0 0
        %1868 = vmatmul.mubr.bf16.gmra.mrb[0].mxu0 %v1683
        %v1869 = vpop.f32.mrb[0].mxu0
        %v1870 = vadd.f32 0.0, %v1869
        %v1871 = vpop.f32.mrb[0].mxu0
        %v1872 = vadd.f32 0.0, %v1871
        %v1873 = vpop.f32.mrb[0].mxu0
        %v1874 = vadd.f32 0.0, %v1873
        %v1875 = vpop.f32.mrb[0].mxu0
        %v1876 = vadd.f32 0.0, %v1875
        %1877 = vdwg.mxu0
        %1878 = vxpose.xlu0.c.b16.start [1/8] %v1039, 128
        %1879 = vxpose.xlu0.c.b16.cont [2/8] %v1041, 128
        %1880 = vxpose.xlu0.c.b16.cont [3/8] 0, 128
        %1881 = vxpose.xlu0.c.b16.cont [4/8] 0, 128
        %1882 = vxpose.xlu0.c.b16.cont [5/8] 0, 128
        %1883 = vxpose.xlu0.c.b16.cont [6/8] 0, 128
        %1884 = vxpose.xlu0.c.b16.cont [7/8] 0, 128
        %1885 = vxpose.xlu0.c.b16.end [8/8] 0, 128
        %v1886 = vpop.trf.xlu0
        %v1887 = vpop.trf.xlu0
        %v1888 = vpop.trf.xlu0
        %v1889 = vpop.trf.xlu0
        %v1890 = vpop.trf.xlu0
        %v1891 = vpop.trf.xlu0
        %v1892 = vpop.trf.xlu0
        %v1893 = vpop.trf.xlu0
        %1894 = vxpose.xlu0.c.b16.start [1/8] %v1040, 128
        %1895 = vxpose.xlu0.c.b16.cont [2/8] %v1042, 128
        %1896 = vxpose.xlu0.c.b16.cont [3/8] 0, 128
        %1897 = vxpose.xlu0.c.b16.cont [4/8] 0, 128
        %1898 = vxpose.xlu0.c.b16.cont [5/8] 0, 128
        %1899 = vxpose.xlu0.c.b16.cont [6/8] 0, 128
        %1900 = vxpose.xlu0.c.b16.cont [7/8] 0, 128
        %1901 = vxpose.xlu0.c.b16.end [8/8] 0, 128
        %v1902 = vpop.trf.xlu0
        %v1903 = vpop.trf.xlu0
        %v1904 = vpop.trf.xlu0
        %v1905 = vpop.trf.xlu0
        %v1906 = vpop.trf.xlu0
        %v1907 = vpop.trf.xlu0
        %v1908 = vpop.trf.xlu0
        %v1909 = vpop.trf.xlu0
        %v1911 = vsel %vm377, %v1886, 0
        %v1914 = vsel %vm377, %v1887, 0
        %v1917 = vsel %vm377, %v1888, 0
        %v1920 = vsel %vm377, %v1889, 0
        %v1923 = vsel %vm377, %v1890, 0
        %v1926 = vsel %vm377, %v1891, 0
        %v1929 = vsel %vm377, %v1892, 0
        %v1932 = vsel %vm377, %v1893, 0
        %v1935 = vsel %vm377, %v1902, 0
        %v1938 = vsel %vm377, %v1903, 0
        %v1941 = vsel %vm377, %v1904, 0
        %v1944 = vsel %vm377, %v1905, 0
        %v1947 = vsel %vm377, %v1906, 0
        %v1950 = vsel %vm377, %v1907, 0
        %v1953 = vsel %vm377, %v1908, 0
        %v1956 = vsel %vm377, %v1909, 0
        %1958 = vmatprep.subr.bf16.mxu0 %v1056
        %1959 = vmatpush1.bf16.msra.mxu0 %v1055
        %1960 = vmatprep.subr.bf16.mxu0 %v1058
        %1961 = vmatpush1.bf16.msra.mxu0 %v1057
        %1962 = vmatprep.subr.bf16.mxu0 0
        %1963 = vmatpush1.bf16.msra.mxu0 0
        %1964 = vmatprep.subr.bf16.mxu0 0
        %1965 = vmatpush1.bf16.msra.mxu0 0
        %1966 = vmatprep.subr.bf16.mxu0 0
        %1967 = vmatpush1.bf16.msra.mxu0 0
        %1968 = vmatprep.subr.bf16.mxu0 0
        %1969 = vmatpush1.bf16.msra.mxu0 0
        %1970 = vmatprep.subr.bf16.mxu0 0
        %1971 = vmatpush1.bf16.msra.mxu0 0
        %1972 = vmatprep.subr.bf16.mxu0 0
        %1973 = vmatpush1.bf16.msra.mxu0 0
        %1974 = vmatprep.subr.bf16.mxu0 0
        %1975 = vmatpush1.bf16.msra.mxu0 0
        %1976 = vmatprep.subr.bf16.mxu0 0
        %1977 = vmatpush1.bf16.msra.mxu0 0
        %1978 = vmatprep.subr.bf16.mxu0 0
        %1979 = vmatpush1.bf16.msra.mxu0 0
        %1980 = vmatprep.subr.bf16.mxu0 0
        %1981 = vmatpush1.bf16.msra.mxu0 0
        %1982 = vmatprep.subr.bf16.mxu0 0
        %1983 = vmatpush1.bf16.msra.mxu0 0
        %1984 = vmatprep.subr.bf16.mxu0 0
        %1985 = vmatpush1.bf16.msra.mxu0 0
        %1986 = vmatprep.subr.bf16.mxu0 0
        %1987 = vmatpush1.bf16.msra.mxu0 0
        %1988 = vmatprep.subr.bf16.mxu0 0
        %1989 = vmatpush1.bf16.msra.mxu0 0
        %1990 = vmatprep.mubr.bf16.mxu0 0
        %1991 = vmatmul.mubr.bf16.gmra.mrb[0].mxu0 %v1911
        %v1992 = vpop.f32.mrb[0].mxu0
        %v1993 = vadd.f32 0.0, %v1992
        %v1994 = vpop.f32.mrb[0].mxu0
        %v1995 = vadd.f32 0.0, %v1994
        %v1996 = vpop.f32.mrb[0].mxu0
        %v1997 = vadd.f32 0.0, %v1996
        %v1998 = vpop.f32.mrb[0].mxu0
        %v1999 = vadd.f32 0.0, %v1998
        %2000 = vmatprep.mubr.bf16.mxu0 0
        %2001 = vmatmul.mubr.bf16.gmra.mrb[0].mxu0 %v1914
        %v2002 = vpop.f32.mrb[0].mxu0
        %v2003 = vadd.f32 0.0, %v2002
        %v2004 = vpop.f32.mrb[0].mxu0
        %v2005 = vadd.f32 0.0, %v2004
        %v2006 = vpop.f32.mrb[0].mxu0
        %v2007 = vadd.f32 0.0, %v2006
        %v2008 = vpop.f32.mrb[0].mxu0
        %v2009 = vadd.f32 0.0, %v2008
        %2010 = vmatprep.mubr.bf16.mxu0 0
        %2011 = vmatmul.mubr.bf16.gmra.mrb[0].mxu0 %v1917
        %v2012 = vpop.f32.mrb[0].mxu0
        %v2013 = vadd.f32 0.0, %v2012
        %v2014 = vpop.f32.mrb[0].mxu0
        %v2015 = vadd.f32 0.0, %v2014
        %v2016 = vpop.f32.mrb[0].mxu0
        %v2017 = vadd.f32 0.0, %v2016
        %v2018 = vpop.f32.mrb[0].mxu0
        %v2019 = vadd.f32 0.0, %v2018
        %2020 = vmatprep.mubr.bf16.mxu0 0
        %2021 = vmatmul.mubr.bf16.gmra.mrb[0].mxu0 %v1920
        %v2022 = vpop.f32.mrb[0].mxu0
        %v2023 = vadd.f32 0.0, %v2022
        %v2024 = vpop.f32.mrb[0].mxu0
        %v2025 = vadd.f32 0.0, %v2024
        %v2026 = vpop.f32.mrb[0].mxu0
        %v2027 = vadd.f32 0.0, %v2026
        %v2028 = vpop.f32.mrb[0].mxu0
        %v2029 = vadd.f32 0.0, %v2028
        %2030 = vmatprep.mubr.bf16.mxu0 0
        %2031 = vmatmul.mubr.bf16.gmra.mrb[0].mxu0 %v1923
        %v2032 = vpop.f32.mrb[0].mxu0
        %v2033 = vadd.f32 0.0, %v2032
        %v2034 = vpop.f32.mrb[0].mxu0
        %v2035 = vadd.f32 0.0, %v2034
        %v2036 = vpop.f32.mrb[0].mxu0
        %v2037 = vadd.f32 0.0, %v2036
        %v2038 = vpop.f32.mrb[0].mxu0
        %v2039 = vadd.f32 0.0, %v2038
        %2040 = vmatprep.mubr.bf16.mxu0 0
        %2041 = vmatmul.mubr.bf16.gmra.mrb[0].mxu0 %v1926
        %v2042 = vpop.f32.mrb[0].mxu0
        %v2043 = vadd.f32 0.0, %v2042
        %v2044 = vpop.f32.mrb[0].mxu0
        %v2045 = vadd.f32 0.0, %v2044
        %v2046 = vpop.f32.mrb[0].mxu0
        %v2047 = vadd.f32 0.0, %v2046
        %v2048 = vpop.f32.mrb[0].mxu0
        %v2049 = vadd.f32 0.0, %v2048
        %2050 = vmatprep.mubr.bf16.mxu0 0
        %2051 = vmatmul.mubr.bf16.gmra.mrb[0].mxu0 %v1929
        %v2052 = vpop.f32.mrb[0].mxu0
        %v2053 = vadd.f32 0.0, %v2052
        %v2054 = vpop.f32.mrb[0].mxu0
        %v2055 = vadd.f32 0.0, %v2054
        %v2056 = vpop.f32.mrb[0].mxu0
        %v2057 = vadd.f32 0.0, %v2056
        %v2058 = vpop.f32.mrb[0].mxu0
        %v2059 = vadd.f32 0.0, %v2058
        %2060 = vmatprep.mubr.bf16.mxu0 0
        %2061 = vmatmul.mubr.bf16.gmra.mrb[0].mxu0 %v1932
        %v2062 = vpop.f32.mrb[0].mxu0
        %v2063 = vadd.f32 0.0, %v2062
        %v2064 = vpop.f32.mrb[0].mxu0
        %v2065 = vadd.f32 0.0, %v2064
        %v2066 = vpop.f32.mrb[0].mxu0
        %v2067 = vadd.f32 0.0, %v2066
        %v2068 = vpop.f32.mrb[0].mxu0
        %v2069 = vadd.f32 0.0, %v2068
        %2070 = vmatprep.mubr.bf16.mxu0 0
        %2071 = vmatmul.mubr.bf16.gmra.mrb[0].mxu0 %v1935
        %v2072 = vpop.f32.mrb[0].mxu0
        %v2073 = vadd.f32 0.0, %v2072
        %v2074 = vpop.f32.mrb[0].mxu0
        %v2075 = vadd.f32 0.0, %v2074
        %v2076 = vpop.f32.mrb[0].mxu0
        %v2077 = vadd.f32 0.0, %v2076
        %v2078 = vpop.f32.mrb[0].mxu0
        %v2079 = vadd.f32 0.0, %v2078
        %2080 = vmatprep.mubr.bf16.mxu0 0
        %2081 = vmatmul.mubr.bf16.gmra.mrb[0].mxu0 %v1938
        %v2082 = vpop.f32.mrb[0].mxu0
        %v2083 = vadd.f32 0.0, %v2082
        %v2084 = vpop.f32.mrb[0].mxu0
        %v2085 = vadd.f32 0.0, %v2084
        %v2086 = vpop.f32.mrb[0].mxu0
        %v2087 = vadd.f32 0.0, %v2086
        %v2088 = vpop.f32.mrb[0].mxu0
        %v2089 = vadd.f32 0.0, %v2088
        %2090 = vmatprep.mubr.bf16.mxu0 0
        %2091 = vmatmul.mubr.bf16.gmra.mrb[0].mxu0 %v1941
        %v2092 = vpop.f32.mrb[0].mxu0
        %v2093 = vadd.f32 0.0, %v2092
        %v2094 = vpop.f32.mrb[0].mxu0
        %v2095 = vadd.f32 0.0, %v2094
        %v2096 = vpop.f32.mrb[0].mxu0
        %v2097 = vadd.f32 0.0, %v2096
        %v2098 = vpop.f32.mrb[0].mxu0
        %v2099 = vadd.f32 0.0, %v2098
        %2100 = vmatprep.mubr.bf16.mxu0 0
        %2101 = vmatmul.mubr.bf16.gmra.mrb[0].mxu0 %v1944
        %v2102 = vpop.f32.mrb[0].mxu0
        %v2103 = vadd.f32 0.0, %v2102
        %v2104 = vpop.f32.mrb[0].mxu0
        %v2105 = vadd.f32 0.0, %v2104
        %v2106 = vpop.f32.mrb[0].mxu0
        %v2107 = vadd.f32 0.0, %v2106
        %v2108 = vpop.f32.mrb[0].mxu0
        %v2109 = vadd.f32 0.0, %v2108
        %2110 = vmatprep.mubr.bf16.mxu0 0
        %2111 = vmatmul.mubr.bf16.gmra.mrb[0].mxu0 %v1947
        %v2112 = vpop.f32.mrb[0].mxu0
        %v2113 = vadd.f32 0.0, %v2112
        %v2114 = vpop.f32.mrb[0].mxu0
        %v2115 = vadd.f32 0.0, %v2114
        %v2116 = vpop.f32.mrb[0].mxu0
        %v2117 = vadd.f32 0.0, %v2116
        %v2118 = vpop.f32.mrb[0].mxu0
        %v2119 = vadd.f32 0.0, %v2118
        %2120 = vmatprep.mubr.bf16.mxu0 0
        %2121 = vmatmul.mubr.bf16.gmra.mrb[0].mxu0 %v1950
        %v2122 = vpop.f32.mrb[0].mxu0
        %v2123 = vadd.f32 0.0, %v2122
        %v2124 = vpop.f32.mrb[0].mxu0
        %v2125 = vadd.f32 0.0, %v2124
        %v2126 = vpop.f32.mrb[0].mxu0
        %v2127 = vadd.f32 0.0, %v2126
        %v2128 = vpop.f32.mrb[0].mxu0
        %v2129 = vadd.f32 0.0, %v2128
        %2130 = vmatprep.mubr.bf16.mxu0 0
        %2131 = vmatmul.mubr.bf16.gmra.mrb[0].mxu0 %v1953
        %v2132 = vpop.f32.mrb[0].mxu0
        %v2133 = vadd.f32 0.0, %v2132
        %v2134 = vpop.f32.mrb[0].mxu0
        %v2135 = vadd.f32 0.0, %v2134
        %v2136 = vpop.f32.mrb[0].mxu0
        %v2137 = vadd.f32 0.0, %v2136
        %v2138 = vpop.f32.mrb[0].mxu0
        %v2139 = vadd.f32 0.0, %v2138
        %2140 = vmatprep.mubr.bf16.mxu0 0
        %2141 = vmatmul.mubr.bf16.gmra.mrb[0].mxu0 %v1956
        %v2142 = vpop.f32.mrb[0].mxu0
        %v2143 = vadd.f32 0.0, %v2142
        %v2144 = vpop.f32.mrb[0].mxu0
        %v2145 = vadd.f32 0.0, %v2144
        %v2146 = vpop.f32.mrb[0].mxu0
        %v2147 = vadd.f32 0.0, %v2146
        %v2148 = vpop.f32.mrb[0].mxu0
        %v2149 = vadd.f32 0.0, %v2148
        %2150 = vdwg.mxu0
        %v2151 = vmul.f32 %v1174, 1.442695
        %v2152 = vpow.pop %v2151
        %v2153 = vmul.f32 %v1176, 1.442695
        %v2154 = vpow.pop %v2153
        %v2155 = vmul.f32 %v1178, 1.442695
        %v2156 = vpow.pop %v2155
        %v2157 = vmul.f32 %v1180, 1.442695
        %v2158 = vpow.pop %v2157
        %v2159 = vmul.f32 %v1184, 1.442695
        %v2160 = vpow.pop %v2159
        %v2161 = vmul.f32 %v1186, 1.442695
        %v2162 = vpow.pop %v2161
        %v2163 = vmul.f32 %v1188, 1.442695
        %v2164 = vpow.pop %v2163
        %v2165 = vmul.f32 %v1190, 1.442695
        %v2166 = vpow.pop %v2165
        %v2167 = vmul.f32 %v1194, 1.442695
        %v2168 = vpow.pop %v2167
        %v2169 = vmul.f32 %v1196, 1.442695
        %v2170 = vpow.pop %v2169
        %v2171 = vmul.f32 %v1198, 1.442695
        %v2172 = vpow.pop %v2171
        %v2173 = vmul.f32 %v1200, 1.442695
        %v2174 = vpow.pop %v2173
        %v2175 = vmul.f32 %v1204, 1.442695
        %v2176 = vpow.pop %v2175
        %v2177 = vmul.f32 %v1206, 1.442695
        %v2178 = vpow.pop %v2177
        %v2179 = vmul.f32 %v1208, 1.442695
        %v2180 = vpow.pop %v2179
        %v2181 = vmul.f32 %v1210, 1.442695
        %v2182 = vpow.pop %v2181
        %v2183 = vmul.f32 %v1214, 1.442695
        %v2184 = vpow.pop %v2183
        %v2185 = vmul.f32 %v1216, 1.442695
        %v2186 = vpow.pop %v2185
        %v2187 = vmul.f32 %v1218, 1.442695
        %v2188 = vpow.pop %v2187
        %v2189 = vmul.f32 %v1220, 1.442695
        %v2190 = vpow.pop %v2189
        %v2191 = vmul.f32 %v1224, 1.442695
        %v2192 = vpow.pop %v2191
        %v2193 = vmul.f32 %v1226, 1.442695
        %v2194 = vpow.pop %v2193
        %v2195 = vmul.f32 %v1228, 1.442695
        %v2196 = vpow.pop %v2195
        %v2197 = vmul.f32 %v1230, 1.442695
        %v2198 = vpow.pop %v2197
        %v2199 = vmul.f32 %v1234, 1.442695
        %v2200 = vpow.pop %v2199
        %v2201 = vmul.f32 %v1236, 1.442695
        %v2202 = vpow.pop %v2201
        %v2203 = vmul.f32 %v1238, 1.442695
        %v2204 = vpow.pop %v2203
        %v2205 = vmul.f32 %v1240, 1.442695
        %v2206 = vpow.pop %v2205
        %v2207 = vmul.f32 %v1244, 1.442695
        %v2208 = vpow.pop %v2207
        %v2209 = vmul.f32 %v1246, 1.442695
        %v2210 = vpow.pop %v2209
        %v2211 = vmul.f32 %v1248, 1.442695
        %v2212 = vpow.pop %v2211
        %v2213 = vmul.f32 %v1250, 1.442695
        %v2214 = vpow.pop %v2213
        %v2215 = vmul.f32 %v1254, 1.442695
        %v2216 = vpow.pop %v2215
        %v2217 = vmul.f32 %v1256, 1.442695
        %v2218 = vpow.pop %v2217
        %v2219 = vmul.f32 %v1258, 1.442695
        %v2220 = vpow.pop %v2219
        %v2221 = vmul.f32 %v1260, 1.442695
        %v2222 = vpow.pop %v2221
        %v2223 = vmul.f32 %v1264, 1.442695
        %v2224 = vpow.pop %v2223
        %v2225 = vmul.f32 %v1266, 1.442695
        %v2226 = vpow.pop %v2225
        %v2227 = vmul.f32 %v1268, 1.442695
        %v2228 = vpow.pop %v2227
        %v2229 = vmul.f32 %v1270, 1.442695
        %v2230 = vpow.pop %v2229
        %v2231 = vmul.f32 %v1274, 1.442695
        %v2232 = vpow.pop %v2231
        %v2233 = vmul.f32 %v1276, 1.442695
        %v2234 = vpow.pop %v2233
        %v2235 = vmul.f32 %v1278, 1.442695
        %v2236 = vpow.pop %v2235
        %v2237 = vmul.f32 %v1280, 1.442695
        %v2238 = vpow.pop %v2237
        %v2239 = vmul.f32 %v1284, 1.442695
        %v2240 = vpow.pop %v2239
        %v2241 = vmul.f32 %v1286, 1.442695
        %v2242 = vpow.pop %v2241
        %v2243 = vmul.f32 %v1288, 1.442695
        %v2244 = vpow.pop %v2243
        %v2245 = vmul.f32 %v1290, 1.442695
        %v2246 = vpow.pop %v2245
        %v2247 = vmul.f32 %v1294, 1.442695
        %v2248 = vpow.pop %v2247
        %v2249 = vmul.f32 %v1296, 1.442695
        %v2250 = vpow.pop %v2249
        %v2251 = vmul.f32 %v1298, 1.442695
        %v2252 = vpow.pop %v2251
        %v2253 = vmul.f32 %v1300, 1.442695
        %v2254 = vpow.pop %v2253
        %v2255 = vmul.f32 %v1304, 1.442695
        %v2256 = vpow.pop %v2255
        %v2257 = vmul.f32 %v1306, 1.442695
        %v2258 = vpow.pop %v2257
        %v2259 = vmul.f32 %v1308, 1.442695
        %v2260 = vpow.pop %v2259
        %v2261 = vmul.f32 %v1310, 1.442695
        %v2262 = vpow.pop %v2261
        %v2263 = vmul.f32 %v1314, 1.442695
        %v2264 = vpow.pop %v2263
        %v2265 = vmul.f32 %v1316, 1.442695
        %v2266 = vpow.pop %v2265
        %v2267 = vmul.f32 %v1318, 1.442695
        %v2268 = vpow.pop %v2267
        %v2269 = vmul.f32 %v1320, 1.442695
        %v2270 = vpow.pop %v2269
        %v2271 = vmul.f32 %v1324, 1.442695
        %v2272 = vpow.pop %v2271
        %v2273 = vmul.f32 %v1326, 1.442695
        %v2274 = vpow.pop %v2273
        %v2275 = vmul.f32 %v1328, 1.442695
        %v2276 = vpow.pop %v2275
        %v2277 = vmul.f32 %v1330, 1.442695
        %v2278 = vpow.pop %v2277
        %v2279 = vmul.f32 %v1447, 1.442695
        %v2280 = vpow.pop %v2279
        %v2281 = vmul.f32 %v1449, 1.442695
        %v2282 = vpow.pop %v2281
        %v2283 = vmul.f32 %v1451, 1.442695
        %v2284 = vpow.pop %v2283
        %v2285 = vmul.f32 %v1453, 1.442695
        %v2286 = vpow.pop %v2285
        %v2287 = vmul.f32 %v1457, 1.442695
        %v2288 = vpow.pop %v2287
        %v2289 = vmul.f32 %v1459, 1.442695
        %v2290 = vpow.pop %v2289
        %v2291 = vmul.f32 %v1461, 1.442695
        %v2292 = vpow.pop %v2291
        %v2293 = vmul.f32 %v1463, 1.442695
        %v2294 = vpow.pop %v2293
        %v2295 = vmul.f32 %v1467, 1.442695
        %v2296 = vpow.pop %v2295
        %v2297 = vmul.f32 %v1469, 1.442695
        %v2298 = vpow.pop %v2297
        %v2299 = vmul.f32 %v1471, 1.442695
        %v2300 = vpow.pop %v2299
        %v2301 = vmul.f32 %v1473, 1.442695
        %v2302 = vpow.pop %v2301
        %v2303 = vmul.f32 %v1477, 1.442695
        %v2304 = vpow.pop %v2303
        %v2305 = vmul.f32 %v1479, 1.442695
        %v2306 = vpow.pop %v2305
        %v2307 = vmul.f32 %v1481, 1.442695
        %v2308 = vpow.pop %v2307
        %v2309 = vmul.f32 %v1483, 1.442695
        %v2310 = vpow.pop %v2309
        %v2311 = vmul.f32 %v1487, 1.442695
        %v2312 = vpow.pop %v2311
        %v2313 = vmul.f32 %v1489, 1.442695
        %v2314 = vpow.pop %v2313
        %v2315 = vmul.f32 %v1491, 1.442695
        %v2316 = vpow.pop %v2315
        %v2317 = vmul.f32 %v1493, 1.442695
        %v2318 = vpow.pop %v2317
        %v2319 = vmul.f32 %v1497, 1.442695
        %v2320 = vpow.pop %v2319
        %v2321 = vmul.f32 %v1499, 1.442695
        %v2322 = vpow.pop %v2321
        %v2323 = vmul.f32 %v1501, 1.442695
        %v2324 = vpow.pop %v2323
        %v2325 = vmul.f32 %v1503, 1.442695
        %v2326 = vpow.pop %v2325
        %v2327 = vmul.f32 %v1507, 1.442695
        %v2328 = vpow.pop %v2327
        %v2329 = vmul.f32 %v1509, 1.442695
        %v2330 = vpow.pop %v2329
        %v2331 = vmul.f32 %v1511, 1.442695
        %v2332 = vpow.pop %v2331
        %v2333 = vmul.f32 %v1513, 1.442695
        %v2334 = vpow.pop %v2333
        %v2335 = vmul.f32 %v1517, 1.442695
        %v2336 = vpow.pop %v2335
        %v2337 = vmul.f32 %v1519, 1.442695
        %v2338 = vpow.pop %v2337
        %v2339 = vmul.f32 %v1521, 1.442695
        %v2340 = vpow.pop %v2339
        %v2341 = vmul.f32 %v1523, 1.442695
        %v2342 = vpow.pop %v2341
        %v2343 = vmul.f32 %v1527, 1.442695
        %v2344 = vpow.pop %v2343
        %v2345 = vmul.f32 %v1529, 1.442695
        %v2346 = vpow.pop %v2345
        %v2347 = vmul.f32 %v1531, 1.442695
        %v2348 = vpow.pop %v2347
        %v2349 = vmul.f32 %v1533, 1.442695
        %v2350 = vpow.pop %v2349
        %v2351 = vmul.f32 %v1537, 1.442695
        %v2352 = vpow.pop %v2351
        %v2353 = vmul.f32 %v1539, 1.442695
        %v2354 = vpow.pop %v2353
        %v2355 = vmul.f32 %v1541, 1.442695
        %v2356 = vpow.pop %v2355
        %v2357 = vmul.f32 %v1543, 1.442695
        %v2358 = vpow.pop %v2357
        %v2359 = vmul.f32 %v1547, 1.442695
        %v2360 = vpow.pop %v2359
        %v2361 = vmul.f32 %v1549, 1.442695
        %v2362 = vpow.pop %v2361
        %v2363 = vmul.f32 %v1551, 1.442695
        %v2364 = vpow.pop %v2363
        %v2365 = vmul.f32 %v1553, 1.442695
        %v2366 = vpow.pop %v2365
        %v2367 = vmul.f32 %v1557, 1.442695
        %v2368 = vpow.pop %v2367
        %v2369 = vmul.f32 %v1559, 1.442695
        %v2370 = vpow.pop %v2369
        %v2371 = vmul.f32 %v1561, 1.442695
        %v2372 = vpow.pop %v2371
        %v2373 = vmul.f32 %v1563, 1.442695
        %v2374 = vpow.pop %v2373
        %v2375 = vmul.f32 %v1567, 1.442695
        %v2376 = vpow.pop %v2375
        %v2377 = vmul.f32 %v1569, 1.442695
        %v2378 = vpow.pop %v2377
        %v2379 = vmul.f32 %v1571, 1.442695
        %v2380 = vpow.pop %v2379
        %v2381 = vmul.f32 %v1573, 1.442695
        %v2382 = vpow.pop %v2381
        %v2383 = vmul.f32 %v1577, 1.442695
        %v2384 = vpow.pop %v2383
        %v2385 = vmul.f32 %v1579, 1.442695
        %v2386 = vpow.pop %v2385
        %v2387 = vmul.f32 %v1581, 1.442695
        %v2388 = vpow.pop %v2387
        %v2389 = vmul.f32 %v1583, 1.442695
        %v2390 = vpow.pop %v2389
        %v2391 = vmul.f32 %v1587, 1.442695
        %v2392 = vpow.pop %v2391
        %v2393 = vmul.f32 %v1589, 1.442695
        %v2394 = vpow.pop %v2393
        %v2395 = vmul.f32 %v1591, 1.442695
        %v2396 = vpow.pop %v2395
        %v2397 = vmul.f32 %v1593, 1.442695
        %v2398 = vpow.pop %v2397
        %v2399 = vmul.f32 %v1597, 1.442695
        %v2400 = vpow.pop %v2399
        %v2401 = vmul.f32 %v1599, 1.442695
        %v2402 = vpow.pop %v2401
        %v2403 = vmul.f32 %v1601, 1.442695
        %v2404 = vpow.pop %v2403
        %v2405 = vmul.f32 %v1603, 1.442695
        %v2406 = vpow.pop %v2405
        %v2407 = vmul.f32 %v1720, 1.442695
        %v2408 = vpow.pop %v2407
        %v2409 = vmul.f32 %v1722, 1.442695
        %v2410 = vpow.pop %v2409
        %v2411 = vmul.f32 %v1724, 1.442695
        %v2412 = vpow.pop %v2411
        %v2413 = vmul.f32 %v1726, 1.442695
        %v2414 = vpow.pop %v2413
        %v2415 = vmul.f32 %v1730, 1.442695
        %v2416 = vpow.pop %v2415
        %v2417 = vmul.f32 %v1732, 1.442695
        %v2418 = vpow.pop %v2417
        %v2419 = vmul.f32 %v1734, 1.442695
        %v2420 = vpow.pop %v2419
        %v2421 = vmul.f32 %v1736, 1.442695
        %v2422 = vpow.pop %v2421
        %v2423 = vmul.f32 %v1740, 1.442695
        %v2424 = vpow.pop %v2423
        %v2425 = vmul.f32 %v1742, 1.442695
        %v2426 = vpow.pop %v2425
        %v2427 = vmul.f32 %v1744, 1.442695
        %v2428 = vpow.pop %v2427
        %v2429 = vmul.f32 %v1746, 1.442695
        %v2430 = vpow.pop %v2429
        %v2431 = vmul.f32 %v1750, 1.442695
        %v2432 = vpow.pop %v2431
        %v2433 = vmul.f32 %v1752, 1.442695
        %v2434 = vpow.pop %v2433
        %v2435 = vmul.f32 %v1754, 1.442695
        %v2436 = vpow.pop %v2435
        %v2437 = vmul.f32 %v1756, 1.442695
        %v2438 = vpow.pop %v2437
        %v2439 = vmul.f32 %v1760, 1.442695
        %v2440 = vpow.pop %v2439
        %v2441 = vmul.f32 %v1762, 1.442695
        %v2442 = vpow.pop %v2441
        %v2443 = vmul.f32 %v1764, 1.442695
        %v2444 = vpow.pop %v2443
        %v2445 = vmul.f32 %v1766, 1.442695
        %v2446 = vpow.pop %v2445
        %v2447 = vmul.f32 %v1770, 1.442695
        %v2448 = vpow.pop %v2447
        %v2449 = vmul.f32 %v1772, 1.442695
        %v2450 = vpow.pop %v2449
        %v2451 = vmul.f32 %v1774, 1.442695
        %v2452 = vpow.pop %v2451
        %v2453 = vmul.f32 %v1776, 1.442695
        %v2454 = vpow.pop %v2453
        %v2455 = vmul.f32 %v1780, 1.442695
        %v2456 = vpow.pop %v2455
        %v2457 = vmul.f32 %v1782, 1.442695
        %v2458 = vpow.pop %v2457
        %v2459 = vmul.f32 %v1784, 1.442695
        %v2460 = vpow.pop %v2459
        %v2461 = vmul.f32 %v1786, 1.442695
        %v2462 = vpow.pop %v2461
        %v2463 = vmul.f32 %v1790, 1.442695
        %v2464 = vpow.pop %v2463
        %v2465 = vmul.f32 %v1792, 1.442695
        %v2466 = vpow.pop %v2465
        %v2467 = vmul.f32 %v1794, 1.442695
        %v2468 = vpow.pop %v2467
        %v2469 = vmul.f32 %v1796, 1.442695
        %v2470 = vpow.pop %v2469
        %v2471 = vmul.f32 %v1800, 1.442695
        %v2472 = vpow.pop %v2471
        %v2473 = vmul.f32 %v1802, 1.442695
        %v2474 = vpow.pop %v2473
        %v2475 = vmul.f32 %v1804, 1.442695
        %v2476 = vpow.pop %v2475
        %v2477 = vmul.f32 %v1806, 1.442695
        %v2478 = vpow.pop %v2477
        %v2479 = vmul.f32 %v1810, 1.442695
        %v2480 = vpow.pop %v2479
        %v2481 = vmul.f32 %v1812, 1.442695
        %v2482 = vpow.pop %v2481
        %v2483 = vmul.f32 %v1814, 1.442695
        %v2484 = vpow.pop %v2483
        %v2485 = vmul.f32 %v1816, 1.442695
        %v2486 = vpow.pop %v2485
        %v2487 = vmul.f32 %v1820, 1.442695
        %v2488 = vpow.pop %v2487
        %v2489 = vmul.f32 %v1822, 1.442695
        %v2490 = vpow.pop %v2489
        %v2491 = vmul.f32 %v1824, 1.442695
        %v2492 = vpow.pop %v2491
        %v2493 = vmul.f32 %v1826, 1.442695
        %v2494 = vpow.pop %v2493
        %v2495 = vmul.f32 %v1830, 1.442695
        %v2496 = vpow.pop %v2495
        %v2497 = vmul.f32 %v1832, 1.442695
        %v2498 = vpow.pop %v2497
        %v2499 = vmul.f32 %v1834, 1.442695
        %v2500 = vpow.pop %v2499
        %v2501 = vmul.f32 %v1836, 1.442695
        %v2502 = vpow.pop %v2501
        %v2503 = vmul.f32 %v1840, 1.442695
        %v2504 = vpow.pop %v2503
        %v2505 = vmul.f32 %v1842, 1.442695
        %v2506 = vpow.pop %v2505
        %v2507 = vmul.f32 %v1844, 1.442695
        %v2508 = vpow.pop %v2507
        %v2509 = vmul.f32 %v1846, 1.442695
        %v2510 = vpow.pop %v2509
        %v2511 = vmul.f32 %v1850, 1.442695
        %v2512 = vpow.pop %v2511
        %v2513 = vmul.f32 %v1852, 1.442695
        %v2514 = vpow.pop %v2513
        %v2515 = vmul.f32 %v1854, 1.442695
        %v2516 = vpow.pop %v2515
        %v2517 = vmul.f32 %v1856, 1.442695
        %v2518 = vpow.pop %v2517
        %v2519 = vmul.f32 %v1860, 1.442695
        %v2520 = vpow.pop %v2519
        %v2521 = vmul.f32 %v1862, 1.442695
        %v2522 = vpow.pop %v2521
        %v2523 = vmul.f32 %v1864, 1.442695
        %v2524 = vpow.pop %v2523
        %v2525 = vmul.f32 %v1866, 1.442695
        %v2526 = vpow.pop %v2525
        %v2527 = vmul.f32 %v1870, 1.442695
        %v2528 = vpow.pop %v2527
        %v2529 = vmul.f32 %v1872, 1.442695
        %v2530 = vpow.pop %v2529
        %v2531 = vmul.f32 %v1874, 1.442695
        %v2532 = vpow.pop %v2531
        %v2533 = vmul.f32 %v1876, 1.442695
        %v2534 = vpow.pop %v2533
        %v2535 = vmul.f32 %v1993, 1.442695
        %v2536 = vpow.pop %v2535
        %v2537 = vmul.f32 %v1995, 1.442695
        %v2538 = vpow.pop %v2537
        %v2539 = vmul.f32 %v1997, 1.442695
        %v2540 = vpow.pop %v2539
        %v2541 = vmul.f32 %v1999, 1.442695
        %v2542 = vpow.pop %v2541
        %v2543 = vmul.f32 %v2003, 1.442695
        %v2544 = vpow.pop %v2543
        %v2545 = vmul.f32 %v2005, 1.442695
        %v2546 = vpow.pop %v2545
        %v2547 = vmul.f32 %v2007, 1.442695
        %v2548 = vpow.pop %v2547
        %v2549 = vmul.f32 %v2009, 1.442695
        %v2550 = vpow.pop %v2549
        %v2551 = vmul.f32 %v2013, 1.442695
        %v2552 = vpow.pop %v2551
        %v2553 = vmul.f32 %v2015, 1.442695
        %v2554 = vpow.pop %v2553
        %v2555 = vmul.f32 %v2017, 1.442695
        %v2556 = vpow.pop %v2555
        %v2557 = vmul.f32 %v2019, 1.442695
        %v2558 = vpow.pop %v2557
        %v2559 = vmul.f32 %v2023, 1.442695
        %v2560 = vpow.pop %v2559
        %v2561 = vmul.f32 %v2025, 1.442695
        %v2562 = vpow.pop %v2561
        %v2563 = vmul.f32 %v2027, 1.442695
        %v2564 = vpow.pop %v2563
        %v2565 = vmul.f32 %v2029, 1.442695
        %v2566 = vpow.pop %v2565
        %v2567 = vmul.f32 %v2033, 1.442695
        %v2568 = vpow.pop %v2567
        %v2569 = vmul.f32 %v2035, 1.442695
        %v2570 = vpow.pop %v2569
        %v2571 = vmul.f32 %v2037, 1.442695
        %v2572 = vpow.pop %v2571
        %v2573 = vmul.f32 %v2039, 1.442695
        %v2574 = vpow.pop %v2573
        %v2575 = vmul.f32 %v2043, 1.442695
        %v2576 = vpow.pop %v2575
        %v2577 = vmul.f32 %v2045, 1.442695
        %v2578 = vpow.pop %v2577
        %v2579 = vmul.f32 %v2047, 1.442695
        %v2580 = vpow.pop %v2579
        %v2581 = vmul.f32 %v2049, 1.442695
        %v2582 = vpow.pop %v2581
        %v2583 = vmul.f32 %v2053, 1.442695
        %v2584 = vpow.pop %v2583
        %v2585 = vmul.f32 %v2055, 1.442695
        %v2586 = vpow.pop %v2585
        %v2587 = vmul.f32 %v2057, 1.442695
        %v2588 = vpow.pop %v2587
        %v2589 = vmul.f32 %v2059, 1.442695
        %v2590 = vpow.pop %v2589
        %v2591 = vmul.f32 %v2063, 1.442695
        %v2592 = vpow.pop %v2591
        %v2593 = vmul.f32 %v2065, 1.442695
        %v2594 = vpow.pop %v2593
        %v2595 = vmul.f32 %v2067, 1.442695
        %v2596 = vpow.pop %v2595
        %v2597 = vmul.f32 %v2069, 1.442695
        %v2598 = vpow.pop %v2597
        %v2599 = vmul.f32 %v2073, 1.442695
        %v2600 = vpow.pop %v2599
        %v2601 = vmul.f32 %v2075, 1.442695
        %v2602 = vpow.pop %v2601
        %v2603 = vmul.f32 %v2077, 1.442695
        %v2604 = vpow.pop %v2603
        %v2605 = vmul.f32 %v2079, 1.442695
        %v2606 = vpow.pop %v2605
        %v2607 = vmul.f32 %v2083, 1.442695
        %v2608 = vpow.pop %v2607
        %v2609 = vmul.f32 %v2085, 1.442695
        %v2610 = vpow.pop %v2609
        %v2611 = vmul.f32 %v2087, 1.442695
        %v2612 = vpow.pop %v2611
        %v2613 = vmul.f32 %v2089, 1.442695
        %v2614 = vpow.pop %v2613
        %v2615 = vmul.f32 %v2093, 1.442695
        %v2616 = vpow.pop %v2615
        %v2617 = vmul.f32 %v2095, 1.442695
        %v2618 = vpow.pop %v2617
        %v2619 = vmul.f32 %v2097, 1.442695
        %v2620 = vpow.pop %v2619
        %v2621 = vmul.f32 %v2099, 1.442695
        %v2622 = vpow.pop %v2621
        %v2623 = vmul.f32 %v2103, 1.442695
        %v2624 = vpow.pop %v2623
        %v2625 = vmul.f32 %v2105, 1.442695
        %v2626 = vpow.pop %v2625
        %v2627 = vmul.f32 %v2107, 1.442695
        %v2628 = vpow.pop %v2627
        %v2629 = vmul.f32 %v2109, 1.442695
        %v2630 = vpow.pop %v2629
        %v2631 = vmul.f32 %v2113, 1.442695
        %v2632 = vpow.pop %v2631
        %v2633 = vmul.f32 %v2115, 1.442695
        %v2634 = vpow.pop %v2633
        %v2635 = vmul.f32 %v2117, 1.442695
        %v2636 = vpow.pop %v2635
        %v2637 = vmul.f32 %v2119, 1.442695
        %v2638 = vpow.pop %v2637
        %v2639 = vmul.f32 %v2123, 1.442695
        %v2640 = vpow.pop %v2639
        %v2641 = vmul.f32 %v2125, 1.442695
        %v2642 = vpow.pop %v2641
        %v2643 = vmul.f32 %v2127, 1.442695
        %v2644 = vpow.pop %v2643
        %v2645 = vmul.f32 %v2129, 1.442695
        %v2646 = vpow.pop %v2645
        %v2647 = vmul.f32 %v2133, 1.442695
        %v2648 = vpow.pop %v2647
        %v2649 = vmul.f32 %v2135, 1.442695
        %v2650 = vpow.pop %v2649
        %v2651 = vmul.f32 %v2137, 1.442695
        %v2652 = vpow.pop %v2651
        %v2653 = vmul.f32 %v2139, 1.442695
        %v2654 = vpow.pop %v2653
        %v2655 = vmul.f32 %v2143, 1.442695
        %v2656 = vpow.pop %v2655
        %v2657 = vmul.f32 %v2145, 1.442695
        %v2658 = vpow.pop %v2657
        %v2659 = vmul.f32 %v2147, 1.442695
        %v2660 = vpow.pop %v2659
        %v2661 = vmul.f32 %v2149, 1.442695
        %v2662 = vpow.pop %v2661
        %v2663 = vadd.f32 %v2152, %v2154
        %2664 = vadd.xlane.f32.xlu0 %v2663
        %v2665 = vpop.xlane.xlu0 %2664
        %v2666 = vadd.f32 %v2156, %v2158
        %2667 = vadd.xlane.f32.xlu0 %v2666
        %v2668 = vpop.xlane.xlu0 %2667
        %v2669 = vadd.f32 %v2160, %v2162
        %2670 = vadd.xlane.f32.xlu0 %v2669
        %v2671 = vpop.xlane.xlu0 %2670
        %v2672 = vadd.f32 %v2164, %v2166
        %2673 = vadd.xlane.f32.xlu0 %v2672
        %v2674 = vpop.xlane.xlu0 %2673
        %v2675 = vadd.f32 %v2168, %v2170
        %2676 = vadd.xlane.f32.xlu0 %v2675
        %v2677 = vpop.xlane.xlu0 %2676
        %v2678 = vadd.f32 %v2172, %v2174
        %2679 = vadd.xlane.f32.xlu0 %v2678
        %v2680 = vpop.xlane.xlu0 %2679
        %v2681 = vadd.f32 %v2176, %v2178
        %2682 = vadd.xlane.f32.xlu0 %v2681
        %v2683 = vpop.xlane.xlu0 %2682
        %v2684 = vadd.f32 %v2180, %v2182
        %2685 = vadd.xlane.f32.xlu0 %v2684
        %v2686 = vpop.xlane.xlu0 %2685
        %v2687 = vadd.f32 %v2184, %v2186
        %2688 = vadd.xlane.f32.xlu0 %v2687
        %v2689 = vpop.xlane.xlu0 %2688
        %v2690 = vadd.f32 %v2188, %v2190
        %2691 = vadd.xlane.f32.xlu0 %v2690
        %v2692 = vpop.xlane.xlu0 %2691
        %v2693 = vadd.f32 %v2192, %v2194
        %2694 = vadd.xlane.f32.xlu0 %v2693
        %v2695 = vpop.xlane.xlu0 %2694
        %v2696 = vadd.f32 %v2196, %v2198
        %2697 = vadd.xlane.f32.xlu0 %v2696
        %v2698 = vpop.xlane.xlu0 %2697
        %v2699 = vadd.f32 %v2200, %v2202
        %2700 = vadd.xlane.f32.xlu0 %v2699
        %v2701 = vpop.xlane.xlu0 %2700
        %v2702 = vadd.f32 %v2204, %v2206
        %2703 = vadd.xlane.f32.xlu0 %v2702
        %v2704 = vpop.xlane.xlu0 %2703
        %v2705 = vadd.f32 %v2208, %v2210
        %2706 = vadd.xlane.f32.xlu0 %v2705
        %v2707 = vpop.xlane.xlu0 %2706
        %v2708 = vadd.f32 %v2212, %v2214
        %2709 = vadd.xlane.f32.xlu0 %v2708
        %v2710 = vpop.xlane.xlu0 %2709
        %v2711 = vadd.f32 %v2216, %v2218
        %2712 = vadd.xlane.f32.xlu0 %v2711
        %v2713 = vpop.xlane.xlu0 %2712
        %v2714 = vadd.f32 %v2220, %v2222
        %2715 = vadd.xlane.f32.xlu0 %v2714
        %v2716 = vpop.xlane.xlu0 %2715
        %v2717 = vadd.f32 %v2224, %v2226
        %2718 = vadd.xlane.f32.xlu0 %v2717
        %v2719 = vpop.xlane.xlu0 %2718
        %v2720 = vadd.f32 %v2228, %v2230
        %2721 = vadd.xlane.f32.xlu0 %v2720
        %v2722 = vpop.xlane.xlu0 %2721
        %v2723 = vadd.f32 %v2232, %v2234
        %2724 = vadd.xlane.f32.xlu0 %v2723
        %v2725 = vpop.xlane.xlu0 %2724
        %v2726 = vadd.f32 %v2236, %v2238
        %2727 = vadd.xlane.f32.xlu0 %v2726
        %v2728 = vpop.xlane.xlu0 %2727
        %v2729 = vadd.f32 %v2240, %v2242
        %2730 = vadd.xlane.f32.xlu0 %v2729
        %v2731 = vpop.xlane.xlu0 %2730
        %v2732 = vadd.f32 %v2244, %v2246
        %2733 = vadd.xlane.f32.xlu0 %v2732
        %v2734 = vpop.xlane.xlu0 %2733
        %v2735 = vadd.f32 %v2248, %v2250
        %2736 = vadd.xlane.f32.xlu0 %v2735
        %v2737 = vpop.xlane.xlu0 %2736
        %v2738 = vadd.f32 %v2252, %v2254
        %2739 = vadd.xlane.f32.xlu0 %v2738
        %v2740 = vpop.xlane.xlu0 %2739
        %v2741 = vadd.f32 %v2256, %v2258
        %2742 = vadd.xlane.f32.xlu0 %v2741
        %v2743 = vpop.xlane.xlu0 %2742
        %v2744 = vadd.f32 %v2260, %v2262
        %2745 = vadd.xlane.f32.xlu0 %v2744
        %v2746 = vpop.xlane.xlu0 %2745
        %v2747 = vadd.f32 %v2264, %v2266
        %2748 = vadd.xlane.f32.xlu0 %v2747
        %v2749 = vpop.xlane.xlu0 %2748
        %v2750 = vadd.f32 %v2268, %v2270
        %2751 = vadd.xlane.f32.xlu0 %v2750
        %v2752 = vpop.xlane.xlu0 %2751
        %v2753 = vadd.f32 %v2272, %v2274
        %2754 = vadd.xlane.f32.xlu0 %v2753
        %v2755 = vpop.xlane.xlu0 %2754
        %v2756 = vadd.f32 %v2276, %v2278
        %2757 = vadd.xlane.f32.xlu0 %v2756
        %v2758 = vpop.xlane.xlu0 %2757
        %v2759 = vadd.f32 %v2280, %v2282
        %2760 = vadd.xlane.f32.xlu0 %v2759
        %v2761 = vpop.xlane.xlu0 %2760
        %v2762 = vadd.f32 %v2284, %v2286
        %2763 = vadd.xlane.f32.xlu0 %v2762
        %v2764 = vpop.xlane.xlu0 %2763
        %v2765 = vadd.f32 %v2288, %v2290
        %2766 = vadd.xlane.f32.xlu0 %v2765
        %v2767 = vpop.xlane.xlu0 %2766
        %v2768 = vadd.f32 %v2292, %v2294
        %2769 = vadd.xlane.f32.xlu0 %v2768
        %v2770 = vpop.xlane.xlu0 %2769
        %v2771 = vadd.f32 %v2296, %v2298
        %2772 = vadd.xlane.f32.xlu0 %v2771
        %v2773 = vpop.xlane.xlu0 %2772
        %v2774 = vadd.f32 %v2300, %v2302
        %2775 = vadd.xlane.f32.xlu0 %v2774
        %v2776 = vpop.xlane.xlu0 %2775
        %v2777 = vadd.f32 %v2304, %v2306
        %2778 = vadd.xlane.f32.xlu0 %v2777
        %v2779 = vpop.xlane.xlu0 %2778
        %v2780 = vadd.f32 %v2308, %v2310
        %2781 = vadd.xlane.f32.xlu0 %v2780
        %v2782 = vpop.xlane.xlu0 %2781
        %v2783 = vadd.f32 %v2312, %v2314
        %2784 = vadd.xlane.f32.xlu0 %v2783
        %v2785 = vpop.xlane.xlu0 %2784
        %v2786 = vadd.f32 %v2316, %v2318
        %2787 = vadd.xlane.f32.xlu0 %v2786
        %v2788 = vpop.xlane.xlu0 %2787
        %v2789 = vadd.f32 %v2320, %v2322
        %2790 = vadd.xlane.f32.xlu0 %v2789
        %v2791 = vpop.xlane.xlu0 %2790
        %v2792 = vadd.f32 %v2324, %v2326
        %2793 = vadd.xlane.f32.xlu0 %v2792
        %v2794 = vpop.xlane.xlu0 %2793
        %v2795 = vadd.f32 %v2328, %v2330
        %2796 = vadd.xlane.f32.xlu0 %v2795
        %v2797 = vpop.xlane.xlu0 %2796
        %v2798 = vadd.f32 %v2332, %v2334
        %2799 = vadd.xlane.f32.xlu0 %v2798
        %v2800 = vpop.xlane.xlu0 %2799
        %v2801 = vadd.f32 %v2336, %v2338
        %2802 = vadd.xlane.f32.xlu0 %v2801
        %v2803 = vpop.xlane.xlu0 %2802
        %v2804 = vadd.f32 %v2340, %v2342
        %2805 = vadd.xlane.f32.xlu0 %v2804
        %v2806 = vpop.xlane.xlu0 %2805
        %v2807 = vadd.f32 %v2344, %v2346
        %2808 = vadd.xlane.f32.xlu0 %v2807
        %v2809 = vpop.xlane.xlu0 %2808
        %v2810 = vadd.f32 %v2348, %v2350
        %2811 = vadd.xlane.f32.xlu0 %v2810
        %v2812 = vpop.xlane.xlu0 %2811
        %v2813 = vadd.f32 %v2352, %v2354
        %2814 = vadd.xlane.f32.xlu0 %v2813
        %v2815 = vpop.xlane.xlu0 %2814
        %v2816 = vadd.f32 %v2356, %v2358
        %2817 = vadd.xlane.f32.xlu0 %v2816
        %v2818 = vpop.xlane.xlu0 %2817
        %v2819 = vadd.f32 %v2360, %v2362
        %2820 = vadd.xlane.f32.xlu0 %v2819
        %v2821 = vpop.xlane.xlu0 %2820
        %v2822 = vadd.f32 %v2364, %v2366
        %2823 = vadd.xlane.f32.xlu0 %v2822
        %v2824 = vpop.xlane.xlu0 %2823
        %v2825 = vadd.f32 %v2368, %v2370
        %2826 = vadd.xlane.f32.xlu0 %v2825
        %v2827 = vpop.xlane.xlu0 %2826
        %v2828 = vadd.f32 %v2372, %v2374
        %2829 = vadd.xlane.f32.xlu0 %v2828
        %v2830 = vpop.xlane.xlu0 %2829
        %v2831 = vadd.f32 %v2376, %v2378
        %2832 = vadd.xlane.f32.xlu0 %v2831
        %v2833 = vpop.xlane.xlu0 %2832
        %v2834 = vadd.f32 %v2380, %v2382
        %2835 = vadd.xlane.f32.xlu0 %v2834
        %v2836 = vpop.xlane.xlu0 %2835
        %v2837 = vadd.f32 %v2384, %v2386
        %2838 = vadd.xlane.f32.xlu0 %v2837
        %v2839 = vpop.xlane.xlu0 %2838
        %v2840 = vadd.f32 %v2388, %v2390
        %2841 = vadd.xlane.f32.xlu0 %v2840
        %v2842 = vpop.xlane.xlu0 %2841
        %v2843 = vadd.f32 %v2392, %v2394
        %2844 = vadd.xlane.f32.xlu0 %v2843
        %v2845 = vpop.xlane.xlu0 %2844
        %v2846 = vadd.f32 %v2396, %v2398
        %2847 = vadd.xlane.f32.xlu0 %v2846
        %v2848 = vpop.xlane.xlu0 %2847
        %v2849 = vadd.f32 %v2400, %v2402
        %2850 = vadd.xlane.f32.xlu0 %v2849
        %v2851 = vpop.xlane.xlu0 %2850
        %v2852 = vadd.f32 %v2404, %v2406
        %2853 = vadd.xlane.f32.xlu0 %v2852
        %v2854 = vpop.xlane.xlu0 %2853
        %v2855 = vadd.f32 %v2408, %v2410
        %2856 = vadd.xlane.f32.xlu0 %v2855
        %v2857 = vpop.xlane.xlu0 %2856
        %v2858 = vadd.f32 %v2412, %v2414
        %2859 = vadd.xlane.f32.xlu0 %v2858
        %v2860 = vpop.xlane.xlu0 %2859
        %v2861 = vadd.f32 %v2416, %v2418
        %2862 = vadd.xlane.f32.xlu0 %v2861
        %v2863 = vpop.xlane.xlu0 %2862
        %v2864 = vadd.f32 %v2420, %v2422
        %2865 = vadd.xlane.f32.xlu0 %v2864
        %v2866 = vpop.xlane.xlu0 %2865
        %v2867 = vadd.f32 %v2424, %v2426
        %2868 = vadd.xlane.f32.xlu0 %v2867
        %v2869 = vpop.xlane.xlu0 %2868
        %v2870 = vadd.f32 %v2428, %v2430
        %2871 = vadd.xlane.f32.xlu0 %v2870
        %v2872 = vpop.xlane.xlu0 %2871
        %v2873 = vadd.f32 %v2432, %v2434
        %2874 = vadd.xlane.f32.xlu0 %v2873
        %v2875 = vpop.xlane.xlu0 %2874
        %v2876 = vadd.f32 %v2436, %v2438
        %2877 = vadd.xlane.f32.xlu0 %v2876
        %v2878 = vpop.xlane.xlu0 %2877
        %v2879 = vadd.f32 %v2440, %v2442
        %2880 = vadd.xlane.f32.xlu0 %v2879
        %v2881 = vpop.xlane.xlu0 %2880
        %v2882 = vadd.f32 %v2444, %v2446
        %2883 = vadd.xlane.f32.xlu0 %v2882
        %v2884 = vpop.xlane.xlu0 %2883
        %v2885 = vadd.f32 %v2448, %v2450
        %2886 = vadd.xlane.f32.xlu0 %v2885
        %v2887 = vpop.xlane.xlu0 %2886
        %v2888 = vadd.f32 %v2452, %v2454
        %2889 = vadd.xlane.f32.xlu0 %v2888
        %v2890 = vpop.xlane.xlu0 %2889
        %v2891 = vadd.f32 %v2456, %v2458
        %2892 = vadd.xlane.f32.xlu0 %v2891
        %v2893 = vpop.xlane.xlu0 %2892
        %v2894 = vadd.f32 %v2460, %v2462
        %2895 = vadd.xlane.f32.xlu0 %v2894
        %v2896 = vpop.xlane.xlu0 %2895
        %v2897 = vadd.f32 %v2464, %v2466
        %2898 = vadd.xlane.f32.xlu0 %v2897
        %v2899 = vpop.xlane.xlu0 %2898
        %v2900 = vadd.f32 %v2468, %v2470
        %2901 = vadd.xlane.f32.xlu0 %v2900
        %v2902 = vpop.xlane.xlu0 %2901
        %v2903 = vadd.f32 %v2472, %v2474
        %2904 = vadd.xlane.f32.xlu0 %v2903
        %v2905 = vpop.xlane.xlu0 %2904
        %v2906 = vadd.f32 %v2476, %v2478
        %2907 = vadd.xlane.f32.xlu0 %v2906
        %v2908 = vpop.xlane.xlu0 %2907
        %v2909 = vadd.f32 %v2480, %v2482
        %2910 = vadd.xlane.f32.xlu0 %v2909
        %v2911 = vpop.xlane.xlu0 %2910
        %v2912 = vadd.f32 %v2484, %v2486
        %2913 = vadd.xlane.f32.xlu0 %v2912
        %v2914 = vpop.xlane.xlu0 %2913
        %v2915 = vadd.f32 %v2488, %v2490
        %2916 = vadd.xlane.f32.xlu0 %v2915
        %v2917 = vpop.xlane.xlu0 %2916
        %v2918 = vadd.f32 %v2492, %v2494
        %2919 = vadd.xlane.f32.xlu0 %v2918
        %v2920 = vpop.xlane.xlu0 %2919
        %v2921 = vadd.f32 %v2496, %v2498
        %2922 = vadd.xlane.f32.xlu0 %v2921
        %v2923 = vpop.xlane.xlu0 %2922
        %v2924 = vadd.f32 %v2500, %v2502
        %2925 = vadd.xlane.f32.xlu0 %v2924
        %v2926 = vpop.xlane.xlu0 %2925
        %v2927 = vadd.f32 %v2504, %v2506
        %2928 = vadd.xlane.f32.xlu0 %v2927
        %v2929 = vpop.xlane.xlu0 %2928
        %v2930 = vadd.f32 %v2508, %v2510
        %2931 = vadd.xlane.f32.xlu0 %v2930
        %v2932 = vpop.xlane.xlu0 %2931
        %v2933 = vadd.f32 %v2512, %v2514
        %2934 = vadd.xlane.f32.xlu0 %v2933
        %v2935 = vpop.xlane.xlu0 %2934
        %v2936 = vadd.f32 %v2516, %v2518
        %2937 = vadd.xlane.f32.xlu0 %v2936
        %v2938 = vpop.xlane.xlu0 %2937
        %v2939 = vadd.f32 %v2520, %v2522
        %2940 = vadd.xlane.f32.xlu0 %v2939
        %v2941 = vpop.xlane.xlu0 %2940
        %v2942 = vadd.f32 %v2524, %v2526
        %2943 = vadd.xlane.f32.xlu0 %v2942
        %v2944 = vpop.xlane.xlu0 %2943
        %v2945 = vadd.f32 %v2528, %v2530
        %2946 = vadd.xlane.f32.xlu0 %v2945
        %v2947 = vpop.xlane.xlu0 %2946
        %v2948 = vadd.f32 %v2532, %v2534
        %2949 = vadd.xlane.f32.xlu0 %v2948
        %v2950 = vpop.xlane.xlu0 %2949
        %v2951 = vadd.f32 %v2536, %v2538
        %2952 = vadd.xlane.f32.xlu0 %v2951
        %v2953 = vpop.xlane.xlu0 %2952
        %v2954 = vadd.f32 %v2540, %v2542
        %2955 = vadd.xlane.f32.xlu0 %v2954
        %v2956 = vpop.xlane.xlu0 %2955
        %v2957 = vadd.f32 %v2544, %v2546
        %2958 = vadd.xlane.f32.xlu0 %v2957
        %v2959 = vpop.xlane.xlu0 %2958
        %v2960 = vadd.f32 %v2548, %v2550
        %2961 = vadd.xlane.f32.xlu0 %v2960
        %v2962 = vpop.xlane.xlu0 %2961
        %v2963 = vadd.f32 %v2552, %v2554
        %2964 = vadd.xlane.f32.xlu0 %v2963
        %v2965 = vpop.xlane.xlu0 %2964
        %v2966 = vadd.f32 %v2556, %v2558
        %2967 = vadd.xlane.f32.xlu0 %v2966
        %v2968 = vpop.xlane.xlu0 %2967
        %v2969 = vadd.f32 %v2560, %v2562
        %2970 = vadd.xlane.f32.xlu0 %v2969
        %v2971 = vpop.xlane.xlu0 %2970
        %v2972 = vadd.f32 %v2564, %v2566
        %2973 = vadd.xlane.f32.xlu0 %v2972
        %v2974 = vpop.xlane.xlu0 %2973
        %v2975 = vadd.f32 %v2568, %v2570
        %2976 = vadd.xlane.f32.xlu0 %v2975
        %v2977 = vpop.xlane.xlu0 %2976
        %v2978 = vadd.f32 %v2572, %v2574
        %2979 = vadd.xlane.f32.xlu0 %v2978
        %v2980 = vpop.xlane.xlu0 %2979
        %v2981 = vadd.f32 %v2576, %v2578
        %2982 = vadd.xlane.f32.xlu0 %v2981
        %v2983 = vpop.xlane.xlu0 %2982
        %v2984 = vadd.f32 %v2580, %v2582
        %2985 = vadd.xlane.f32.xlu0 %v2984
        %v2986 = vpop.xlane.xlu0 %2985
        %v2987 = vadd.f32 %v2584, %v2586
        %2988 = vadd.xlane.f32.xlu0 %v2987
        %v2989 = vpop.xlane.xlu0 %2988
        %v2990 = vadd.f32 %v2588, %v2590
        %2991 = vadd.xlane.f32.xlu0 %v2990
        %v2992 = vpop.xlane.xlu0 %2991
        %v2993 = vadd.f32 %v2592, %v2594
        %2994 = vadd.xlane.f32.xlu0 %v2993
        %v2995 = vpop.xlane.xlu0 %2994
        %v2996 = vadd.f32 %v2596, %v2598
        %2997 = vadd.xlane.f32.xlu0 %v2996
        %v2998 = vpop.xlane.xlu0 %2997
        %v2999 = vadd.f32 %v2600, %v2602
        %3000 = vadd.xlane.f32.xlu0 %v2999
        %v3001 = vpop.xlane.xlu0 %3000
        %v3002 = vadd.f32 %v2604, %v2606
        %3003 = vadd.xlane.f32.xlu0 %v3002
        %v3004 = vpop.xlane.xlu0 %3003
        %v3005 = vadd.f32 %v2608, %v2610
        %3006 = vadd.xlane.f32.xlu0 %v3005
        %v3007 = vpop.xlane.xlu0 %3006
        %v3008 = vadd.f32 %v2612, %v2614
        %3009 = vadd.xlane.f32.xlu0 %v3008
        %v3010 = vpop.xlane.xlu0 %3009
        %v3011 = vadd.f32 %v2616, %v2618
        %3012 = vadd.xlane.f32.xlu0 %v3011
        %v3013 = vpop.xlane.xlu0 %3012
        %v3014 = vadd.f32 %v2620, %v2622
        %3015 = vadd.xlane.f32.xlu0 %v3014
        %v3016 = vpop.xlane.xlu0 %3015
        %v3017 = vadd.f32 %v2624, %v2626
        %3018 = vadd.xlane.f32.xlu0 %v3017
        %v3019 = vpop.xlane.xlu0 %3018
        %v3020 = vadd.f32 %v2628, %v2630
        %3021 = vadd.xlane.f32.xlu0 %v3020
        %v3022 = vpop.xlane.xlu0 %3021
        %v3023 = vadd.f32 %v2632, %v2634
        %3024 = vadd.xlane.f32.xlu0 %v3023
        %v3025 = vpop.xlane.xlu0 %3024
        %v3026 = vadd.f32 %v2636, %v2638
        %3027 = vadd.xlane.f32.xlu0 %v3026
        %v3028 = vpop.xlane.xlu0 %3027
        %v3029 = vadd.f32 %v2640, %v2642
        %3030 = vadd.xlane.f32.xlu0 %v3029
        %v3031 = vpop.xlane.xlu0 %3030
        %v3032 = vadd.f32 %v2644, %v2646
        %3033 = vadd.xlane.f32.xlu0 %v3032
        %v3034 = vpop.xlane.xlu0 %3033
        %v3035 = vadd.f32 %v2648, %v2650
        %3036 = vadd.xlane.f32.xlu0 %v3035
        %v3037 = vpop.xlane.xlu0 %3036
        %v3038 = vadd.f32 %v2652, %v2654
        %3039 = vadd.xlane.f32.xlu0 %v3038
        %v3040 = vpop.xlane.xlu0 %3039
        %v3041 = vadd.f32 %v2656, %v2658
        %3042 = vadd.xlane.f32.xlu0 %v3041
        %v3043 = vpop.xlane.xlu0 %3042
        %v3044 = vadd.f32 %v2660, %v2662
        %3045 = vadd.xlane.f32.xlu0 %v3044
        %v3046 = vpop.xlane.xlu0 %3045
        %v3047 = vpack.c.bf16 %v649, %v645
        %v3048 = vpack.c.bf16 %v651, %v647
        %v3049 = vpack.c.bf16 %v659, %v655
        %v3050 = vpack.c.bf16 %v661, %v657
        %v3051 = vpack.c.bf16 %v669, %v665
        %v3052 = vpack.c.bf16 %v671, %v667
        %v3053 = vpack.c.bf16 %v679, %v675
        %v3054 = vpack.c.bf16 %v681, %v677
        %v3055 = vpack.c.bf16 %v689, %v685
        %v3056 = vpack.c.bf16 %v691, %v687
        %v3057 = vpack.c.bf16 %v699, %v695
        %v3058 = vpack.c.bf16 %v701, %v697
        %v3059 = vpack.c.bf16 %v709, %v705
        %v3060 = vpack.c.bf16 %v711, %v707
        %v3061 = vpack.c.bf16 %v719, %v715
        %v3062 = vpack.c.bf16 %v721, %v717
        %v3063 = vpack.c.bf16 %v2156, %v2152
        %v3064 = vpack.c.bf16 %v2158, %v2154
        %v3065 = vpack.c.bf16 %v2164, %v2160
        %v3066 = vpack.c.bf16 %v2166, %v2162
        %v3067 = vpack.c.bf16 %v2172, %v2168
        %v3068 = vpack.c.bf16 %v2174, %v2170
        %v3069 = vpack.c.bf16 %v2180, %v2176
        %v3070 = vpack.c.bf16 %v2182, %v2178
        %v3071 = vpack.c.bf16 %v2188, %v2184
        %v3072 = vpack.c.bf16 %v2190, %v2186
        %v3073 = vpack.c.bf16 %v2196, %v2192
        %v3074 = vpack.c.bf16 %v2198, %v2194
        %v3075 = vpack.c.bf16 %v2204, %v2200
        %v3076 = vpack.c.bf16 %v2206, %v2202
        %v3077 = vpack.c.bf16 %v2212, %v2208
        %v3078 = vpack.c.bf16 %v2214, %v2210
        %v3079 = vpack.c.bf16 %v2220, %v2216
        %v3080 = vpack.c.bf16 %v2222, %v2218
        %v3081 = vpack.c.bf16 %v2228, %v2224
        %v3082 = vpack.c.bf16 %v2230, %v2226
        %v3083 = vpack.c.bf16 %v2236, %v2232
        %v3084 = vpack.c.bf16 %v2238, %v2234
        %v3085 = vpack.c.bf16 %v2244, %v2240
        %v3086 = vpack.c.bf16 %v2246, %v2242
        %v3087 = vpack.c.bf16 %v2252, %v2248
        %v3088 = vpack.c.bf16 %v2254, %v2250
        %v3089 = vpack.c.bf16 %v2260, %v2256
        %v3090 = vpack.c.bf16 %v2262, %v2258
        %v3091 = vpack.c.bf16 %v2268, %v2264
        %v3092 = vpack.c.bf16 %v2270, %v2266
        %v3093 = vpack.c.bf16 %v2276, %v2272
        %v3094 = vpack.c.bf16 %v2278, %v2274
        %v3095 = vpack.c.bf16 %v2284, %v2280
        %v3096 = vpack.c.bf16 %v2286, %v2282
        %v3097 = vpack.c.bf16 %v2292, %v2288
        %v3098 = vpack.c.bf16 %v2294, %v2290
        %v3099 = vpack.c.bf16 %v2300, %v2296
        %v3100 = vpack.c.bf16 %v2302, %v2298
        %v3101 = vpack.c.bf16 %v2308, %v2304
        %v3102 = vpack.c.bf16 %v2310, %v2306
        %v3103 = vpack.c.bf16 %v2316, %v2312
        %v3104 = vpack.c.bf16 %v2318, %v2314
        %v3105 = vpack.c.bf16 %v2324, %v2320
        %v3106 = vpack.c.bf16 %v2326, %v2322
        %v3107 = vpack.c.bf16 %v2332, %v2328
        %v3108 = vpack.c.bf16 %v2334, %v2330
        %v3109 = vpack.c.bf16 %v2340, %v2336
        %v3110 = vpack.c.bf16 %v2342, %v2338
        %v3111 = vpack.c.bf16 %v2348, %v2344
        %v3112 = vpack.c.bf16 %v2350, %v2346
        %v3113 = vpack.c.bf16 %v2356, %v2352
        %v3114 = vpack.c.bf16 %v2358, %v2354
        %v3115 = vpack.c.bf16 %v2364, %v2360
        %v3116 = vpack.c.bf16 %v2366, %v2362
        %v3117 = vpack.c.bf16 %v2372, %v2368
        %v3118 = vpack.c.bf16 %v2374, %v2370
        %v3119 = vpack.c.bf16 %v2380, %v2376
        %v3120 = vpack.c.bf16 %v2382, %v2378
        %v3121 = vpack.c.bf16 %v2388, %v2384
        %v3122 = vpack.c.bf16 %v2390, %v2386
        %v3123 = vpack.c.bf16 %v2396, %v2392
        %v3124 = vpack.c.bf16 %v2398, %v2394
        %v3125 = vpack.c.bf16 %v2404, %v2400
        %v3126 = vpack.c.bf16 %v2406, %v2402
        %v3127 = vpack.c.bf16 %v2412, %v2408
        %v3128 = vpack.c.bf16 %v2414, %v2410
        %v3129 = vpack.c.bf16 %v2420, %v2416
        %v3130 = vpack.c.bf16 %v2422, %v2418
        %v3131 = vpack.c.bf16 %v2428, %v2424
        %v3132 = vpack.c.bf16 %v2430, %v2426
        %v3133 = vpack.c.bf16 %v2436, %v2432
        %v3134 = vpack.c.bf16 %v2438, %v2434
        %v3135 = vpack.c.bf16 %v2444, %v2440
        %v3136 = vpack.c.bf16 %v2446, %v2442
        %v3137 = vpack.c.bf16 %v2452, %v2448
        %v3138 = vpack.c.bf16 %v2454, %v2450
        %v3139 = vpack.c.bf16 %v2460, %v2456
        %v3140 = vpack.c.bf16 %v2462, %v2458
        %v3141 = vpack.c.bf16 %v2468, %v2464
        %v3142 = vpack.c.bf16 %v2470, %v2466
        %v3143 = vpack.c.bf16 %v2476, %v2472
        %v3144 = vpack.c.bf16 %v2478, %v2474
        %v3145 = vpack.c.bf16 %v2484, %v2480
        %v3146 = vpack.c.bf16 %v2486, %v2482
        %v3147 = vpack.c.bf16 %v2492, %v2488
        %v3148 = vpack.c.bf16 %v2494, %v2490
        %v3149 = vpack.c.bf16 %v2500, %v2496
        %v3150 = vpack.c.bf16 %v2502, %v2498
        %v3151 = vpack.c.bf16 %v2508, %v2504
        %v3152 = vpack.c.bf16 %v2510, %v2506
        %v3153 = vpack.c.bf16 %v2516, %v2512
        %v3154 = vpack.c.bf16 %v2518, %v2514
        %v3155 = vpack.c.bf16 %v2524, %v2520
        %v3156 = vpack.c.bf16 %v2526, %v2522
        %v3157 = vpack.c.bf16 %v2532, %v2528
        %v3158 = vpack.c.bf16 %v2534, %v2530
        %v3159 = vpack.c.bf16 %v2540, %v2536
        %v3160 = vpack.c.bf16 %v2542, %v2538
        %v3161 = vpack.c.bf16 %v2548, %v2544
        %v3162 = vpack.c.bf16 %v2550, %v2546
        %v3163 = vpack.c.bf16 %v2556, %v2552
        %v3164 = vpack.c.bf16 %v2558, %v2554
        %v3165 = vpack.c.bf16 %v2564, %v2560
        %v3166 = vpack.c.bf16 %v2566, %v2562
        %v3167 = vpack.c.bf16 %v2572, %v2568
        %v3168 = vpack.c.bf16 %v2574, %v2570
        %v3169 = vpack.c.bf16 %v2580, %v2576
        %v3170 = vpack.c.bf16 %v2582, %v2578
        %v3171 = vpack.c.bf16 %v2588, %v2584
        %v3172 = vpack.c.bf16 %v2590, %v2586
        %v3173 = vpack.c.bf16 %v2596, %v2592
        %v3174 = vpack.c.bf16 %v2598, %v2594
        %v3175 = vpack.c.bf16 %v2604, %v2600
        %v3176 = vpack.c.bf16 %v2606, %v2602
        %v3177 = vpack.c.bf16 %v2612, %v2608
        %v3178 = vpack.c.bf16 %v2614, %v2610
        %v3179 = vpack.c.bf16 %v2620, %v2616
        %v3180 = vpack.c.bf16 %v2622, %v2618
        %v3181 = vpack.c.bf16 %v2628, %v2624
        %v3182 = vpack.c.bf16 %v2630, %v2626
        %v3183 = vpack.c.bf16 %v2636, %v2632
        %v3184 = vpack.c.bf16 %v2638, %v2634
        %v3185 = vpack.c.bf16 %v2644, %v2640
        %v3186 = vpack.c.bf16 %v2646, %v2642
        %v3187 = vpack.c.bf16 %v2652, %v2648
        %v3188 = vpack.c.bf16 %v2654, %v2650
        %v3189 = vpack.c.bf16 %v2660, %v2656
        %v3190 = vpack.c.bf16 %v2662, %v2658
        %3191 = vmatprep.subr.bf16.mxu0 %v3064
        %3192 = vmatpush1.bf16.xpose.msra.mxu0 %v3063
        %3193 = vmatprep.subr.bf16.mxu0 %v3066
        %3194 = vmatpush1.bf16.xpose.msra.mxu0 %v3065
        %3195 = vmatprep.subr.bf16.mxu0 %v3068
        %3196 = vmatpush1.bf16.xpose.msra.mxu0 %v3067
        %3197 = vmatprep.subr.bf16.mxu0 %v3070
        %3198 = vmatpush1.bf16.xpose.msra.mxu0 %v3069
        %3199 = vmatprep.subr.bf16.mxu0 %v3072
        %3200 = vmatpush1.bf16.xpose.msra.mxu0 %v3071
        %3201 = vmatprep.subr.bf16.mxu0 %v3074
        %3202 = vmatpush1.bf16.xpose.msra.mxu0 %v3073
        %3203 = vmatprep.subr.bf16.mxu0 %v3076
        %3204 = vmatpush1.bf16.xpose.msra.mxu0 %v3075
        %3205 = vmatprep.subr.bf16.mxu0 %v3078
        %3206 = vmatpush1.bf16.xpose.msra.mxu0 %v3077
        %3207 = vmatprep.subr.bf16.mxu0 %v3080
        %3208 = vmatpush1.bf16.xpose.msra.mxu0 %v3079
        %3209 = vmatprep.subr.bf16.mxu0 %v3082
        %3210 = vmatpush1.bf16.xpose.msra.mxu0 %v3081
        %3211 = vmatprep.subr.bf16.mxu0 %v3084
        %3212 = vmatpush1.bf16.xpose.msra.mxu0 %v3083
        %3213 = vmatprep.subr.bf16.mxu0 %v3086
        %3214 = vmatpush1.bf16.xpose.msra.mxu0 %v3085
        %3215 = vmatprep.subr.bf16.mxu0 %v3088
        %3216 = vmatpush1.bf16.xpose.msra.mxu0 %v3087
        %3217 = vmatprep.subr.bf16.mxu0 %v3090
        %3218 = vmatpush1.bf16.xpose.msra.mxu0 %v3089
        %3219 = vmatprep.subr.bf16.mxu0 %v3092
        %3220 = vmatpush1.bf16.xpose.msra.mxu0 %v3091
        %3221 = vmatprep.subr.bf16.mxu0 %v3094
        %3222 = vmatpush1.bf16.xpose.msra.mxu0 %v3093
        %3223 = vmatprep.mubr.bf16.mxu0 %v3048
        %3224 = vmatmul.mubr.bf16.gmra.mrb[0].mxu0 %v3047
        %v3225 = vpop.f32.mrb[0].mxu0
        %v3226 = vadd.f32 0.0, %v3225
        %v3227 = vpop.f32.mrb[0].mxu0
        %v3228 = vadd.f32 0.0, %v3227
        %v3229 = vpop.f32.mrb[0].mxu0
        %v3230 = vadd.f32 0.0, %v3229
        %v3231 = vpop.f32.mrb[0].mxu0
        %v3232 = vadd.f32 0.0, %v3231
        %3233 = vmatprep.mubr.bf16.mxu0 %v3050
        %3234 = vmatmul.mubr.bf16.gmra.mrb[0].mxu0 %v3049
        %v3235 = vpop.f32.mrb[0].mxu0
        %v3236 = vadd.f32 0.0, %v3235
        %v3237 = vpop.f32.mrb[0].mxu0
        %v3238 = vadd.f32 0.0, %v3237
        %v3239 = vpop.f32.mrb[0].mxu0
        %v3240 = vadd.f32 0.0, %v3239
        %v3241 = vpop.f32.mrb[0].mxu0
        %v3242 = vadd.f32 0.0, %v3241
        %3243 = vdwg.mxu0
        %3244 = vmatprep.subr.bf16.mxu0 %v3096
        %3245 = vmatpush1.bf16.xpose.msra.mxu0 %v3095
        %3246 = vmatprep.subr.bf16.mxu0 %v3098
        %3247 = vmatpush1.bf16.xpose.msra.mxu0 %v3097
        %3248 = vmatprep.subr.bf16.mxu0 %v3100
        %3249 = vmatpush1.bf16.xpose.msra.mxu0 %v3099
        %3250 = vmatprep.subr.bf16.mxu0 %v3102
        %3251 = vmatpush1.bf16.xpose.msra.mxu0 %v3101
        %3252 = vmatprep.subr.bf16.mxu0 %v3104
        %3253 = vmatpush1.bf16.xpose.msra.mxu0 %v3103
        %3254 = vmatprep.subr.bf16.mxu0 %v3106
        %3255 = vmatpush1.bf16.xpose.msra.mxu0 %v3105
        %3256 = vmatprep.subr.bf16.mxu0 %v3108
        %3257 = vmatpush1.bf16.xpose.msra.mxu0 %v3107
        %3258 = vmatprep.subr.bf16.mxu0 %v3110
        %3259 = vmatpush1.bf16.xpose.msra.mxu0 %v3109
        %3260 = vmatprep.subr.bf16.mxu0 %v3112
        %3261 = vmatpush1.bf16.xpose.msra.mxu0 %v3111
        %3262 = vmatprep.subr.bf16.mxu0 %v3114
        %3263 = vmatpush1.bf16.xpose.msra.mxu0 %v3113
        %3264 = vmatprep.subr.bf16.mxu0 %v3116
        %3265 = vmatpush1.bf16.xpose.msra.mxu0 %v3115
        %3266 = vmatprep.subr.bf16.mxu0 %v3118
        %3267 = vmatpush1.bf16.xpose.msra.mxu0 %v3117
        %3268 = vmatprep.subr.bf16.mxu0 %v3120
        %3269 = vmatpush1.bf16.xpose.msra.mxu0 %v3119
        %3270 = vmatprep.subr.bf16.mxu0 %v3122
        %3271 = vmatpush1.bf16.xpose.msra.mxu0 %v3121
        %3272 = vmatprep.subr.bf16.mxu0 %v3124
        %3273 = vmatpush1.bf16.xpose.msra.mxu0 %v3123
        %3274 = vmatprep.subr.bf16.mxu0 %v3126
        %3275 = vmatpush1.bf16.xpose.msra.mxu0 %v3125
        %3276 = vmatprep.mubr.bf16.mxu0 %v3052
        %3277 = vmatmul.mubr.bf16.gmra.mrb[0].mxu0 %v3051
        %v3278 = vpop.f32.mrb[0].mxu0
        %v3279 = vadd.f32 0.0, %v3278
        %v3280 = vpop.f32.mrb[0].mxu0
        %v3281 = vadd.f32 0.0, %v3280
        %v3282 = vpop.f32.mrb[0].mxu0
        %v3283 = vadd.f32 0.0, %v3282
        %v3284 = vpop.f32.mrb[0].mxu0
        %v3285 = vadd.f32 0.0, %v3284
        %3286 = vmatprep.mubr.bf16.mxu0 %v3054
        %3287 = vmatmul.mubr.bf16.gmra.mrb[0].mxu0 %v3053
        %v3288 = vpop.f32.mrb[0].mxu0
        %v3289 = vadd.f32 0.0, %v3288
        %v3290 = vpop.f32.mrb[0].mxu0
        %v3291 = vadd.f32 0.0, %v3290
        %v3292 = vpop.f32.mrb[0].mxu0
        %v3293 = vadd.f32 0.0, %v3292
        %v3294 = vpop.f32.mrb[0].mxu0
        %v3295 = vadd.f32 0.0, %v3294
        %3296 = vdwg.mxu0
        %3297 = vmatprep.subr.bf16.mxu0 %v3128
        %3298 = vmatpush1.bf16.xpose.msra.mxu0 %v3127
        %3299 = vmatprep.subr.bf16.mxu0 %v3130
        %3300 = vmatpush1.bf16.xpose.msra.mxu0 %v3129
        %3301 = vmatprep.subr.bf16.mxu0 %v3132
        %3302 = vmatpush1.bf16.xpose.msra.mxu0 %v3131
        %3303 = vmatprep.subr.bf16.mxu0 %v3134
        %3304 = vmatpush1.bf16.xpose.msra.mxu0 %v3133
        %3305 = vmatprep.subr.bf16.mxu0 %v3136
        %3306 = vmatpush1.bf16.xpose.msra.mxu0 %v3135
        %3307 = vmatprep.subr.bf16.mxu0 %v3138
        %3308 = vmatpush1.bf16.xpose.msra.mxu0 %v3137
        %3309 = vmatprep.subr.bf16.mxu0 %v3140
        %3310 = vmatpush1.bf16.xpose.msra.mxu0 %v3139
        %3311 = vmatprep.subr.bf16.mxu0 %v3142
        %3312 = vmatpush1.bf16.xpose.msra.mxu0 %v3141
        %3313 = vmatprep.subr.bf16.mxu0 %v3144
        %3314 = vmatpush1.bf16.xpose.msra.mxu0 %v3143
        %3315 = vmatprep.subr.bf16.mxu0 %v3146
        %3316 = vmatpush1.bf16.xpose.msra.mxu0 %v3145
        %3317 = vmatprep.subr.bf16.mxu0 %v3148
        %3318 = vmatpush1.bf16.xpose.msra.mxu0 %v3147
        %3319 = vmatprep.subr.bf16.mxu0 %v3150
        %3320 = vmatpush1.bf16.xpose.msra.mxu0 %v3149
        %3321 = vmatprep.subr.bf16.mxu0 %v3152
        %3322 = vmatpush1.bf16.xpose.msra.mxu0 %v3151
        %3323 = vmatprep.subr.bf16.mxu0 %v3154
        %3324 = vmatpush1.bf16.xpose.msra.mxu0 %v3153
        %3325 = vmatprep.subr.bf16.mxu0 %v3156
        %3326 = vmatpush1.bf16.xpose.msra.mxu0 %v3155
        %3327 = vmatprep.subr.bf16.mxu0 %v3158
        %3328 = vmatpush1.bf16.xpose.msra.mxu0 %v3157
        %3329 = vmatprep.mubr.bf16.mxu0 %v3056
        %3330 = vmatmul.mubr.bf16.gmra.mrb[0].mxu0 %v3055
        %v3331 = vpop.f32.mrb[0].mxu0
        %v3332 = vadd.f32 0.0, %v3331
        %v3333 = vpop.f32.mrb[0].mxu0
        %v3334 = vadd.f32 0.0, %v3333
        %v3335 = vpop.f32.mrb[0].mxu0
        %v3336 = vadd.f32 0.0, %v3335
        %v3337 = vpop.f32.mrb[0].mxu0
        %v3338 = vadd.f32 0.0, %v3337
        %3339 = vmatprep.mubr.bf16.mxu0 %v3058
        %3340 = vmatmul.mubr.bf16.gmra.mrb[0].mxu0 %v3057
        %v3341 = vpop.f32.mrb[0].mxu0
        %v3342 = vadd.f32 0.0, %v3341
        %v3343 = vpop.f32.mrb[0].mxu0
        %v3344 = vadd.f32 0.0, %v3343
        %v3345 = vpop.f32.mrb[0].mxu0
        %v3346 = vadd.f32 0.0, %v3345
        %v3347 = vpop.f32.mrb[0].mxu0
        %v3348 = vadd.f32 0.0, %v3347
        %3349 = vdwg.mxu0
        %3350 = vmatprep.subr.bf16.mxu0 %v3160
        %3351 = vmatpush1.bf16.xpose.msra.mxu0 %v3159
        %3352 = vmatprep.subr.bf16.mxu0 %v3162
        %3353 = vmatpush1.bf16.xpose.msra.mxu0 %v3161
        %3354 = vmatprep.subr.bf16.mxu0 %v3164
        %3355 = vmatpush1.bf16.xpose.msra.mxu0 %v3163
        %3356 = vmatprep.subr.bf16.mxu0 %v3166
        %3357 = vmatpush1.bf16.xpose.msra.mxu0 %v3165
        %3358 = vmatprep.subr.bf16.mxu0 %v3168
        %3359 = vmatpush1.bf16.xpose.msra.mxu0 %v3167
        %3360 = vmatprep.subr.bf16.mxu0 %v3170
        %3361 = vmatpush1.bf16.xpose.msra.mxu0 %v3169
        %3362 = vmatprep.subr.bf16.mxu0 %v3172
        %3363 = vmatpush1.bf16.xpose.msra.mxu0 %v3171
        %3364 = vmatprep.subr.bf16.mxu0 %v3174
        %3365 = vmatpush1.bf16.xpose.msra.mxu0 %v3173
        %3366 = vmatprep.subr.bf16.mxu0 %v3176
        %3367 = vmatpush1.bf16.xpose.msra.mxu0 %v3175
        %3368 = vmatprep.subr.bf16.mxu0 %v3178
        %3369 = vmatpush1.bf16.xpose.msra.mxu0 %v3177
        %3370 = vmatprep.subr.bf16.mxu0 %v3180
        %3371 = vmatpush1.bf16.xpose.msra.mxu0 %v3179
        %3372 = vmatprep.subr.bf16.mxu0 %v3182
        %3373 = vmatpush1.bf16.xpose.msra.mxu0 %v3181
        %3374 = vmatprep.subr.bf16.mxu0 %v3184
        %3375 = vmatpush1.bf16.xpose.msra.mxu0 %v3183
        %3376 = vmatprep.subr.bf16.mxu0 %v3186
        %3377 = vmatpush1.bf16.xpose.msra.mxu0 %v3185
        %3378 = vmatprep.subr.bf16.mxu0 %v3188
        %3379 = vmatpush1.bf16.xpose.msra.mxu0 %v3187
        %3380 = vmatprep.subr.bf16.mxu0 %v3190
        %3381 = vmatpush1.bf16.xpose.msra.mxu0 %v3189
        %3382 = vmatprep.mubr.bf16.mxu0 %v3060
        %3383 = vmatmul.mubr.bf16.gmra.mrb[0].mxu0 %v3059
        %v3384 = vpop.f32.mrb[0].mxu0
        %v3385 = vadd.f32 0.0, %v3384
        %v3386 = vpop.f32.mrb[0].mxu0
        %v3387 = vadd.f32 0.0, %v3386
        %v3388 = vpop.f32.mrb[0].mxu0
        %v3389 = vadd.f32 0.0, %v3388
        %v3390 = vpop.f32.mrb[0].mxu0
        %v3391 = vadd.f32 0.0, %v3390
        %3392 = vmatprep.mubr.bf16.mxu0 %v3062
        %3393 = vmatmul.mubr.bf16.gmra.mrb[0].mxu0 %v3061
        %v3394 = vpop.f32.mrb[0].mxu0
        %v3395 = vadd.f32 0.0, %v3394
        %v3396 = vpop.f32.mrb[0].mxu0
        %v3397 = vadd.f32 0.0, %v3396
        %v3398 = vpop.f32.mrb[0].mxu0
        %v3399 = vadd.f32 0.0, %v3398
        %v3400 = vpop.f32.mrb[0].mxu0
        %v3401 = vadd.f32 0.0, %v3400
        %3402 = vdwg.mxu0
        %v3403 = vrcp.pop %v2665
        %v3404 = vrcp.pop %v2668
        %v3405 = vrcp.pop %v2671
        %v3406 = vrcp.pop %v2674
        %v3407 = vrcp.pop %v2677
        %v3408 = vrcp.pop %v2680
        %v3409 = vrcp.pop %v2683
        %v3410 = vrcp.pop %v2686
        %v3411 = vrcp.pop %v2689
        %v3412 = vrcp.pop %v2692
        %v3413 = vrcp.pop %v2695
        %v3414 = vrcp.pop %v2698
        %v3415 = vrcp.pop %v2701
        %v3416 = vrcp.pop %v2704
        %v3417 = vrcp.pop %v2707
        %v3418 = vrcp.pop %v2710
        %v3419 = vrcp.pop %v2713
        %v3420 = vrcp.pop %v2716
        %v3421 = vrcp.pop %v2719
        %v3422 = vrcp.pop %v2722
        %v3423 = vrcp.pop %v2725
        %v3424 = vrcp.pop %v2728
        %v3425 = vrcp.pop %v2731
        %v3426 = vrcp.pop %v2734
        %v3427 = vrcp.pop %v2737
        %v3428 = vrcp.pop %v2740
        %v3429 = vrcp.pop %v2743
        %v3430 = vrcp.pop %v2746
        %v3431 = vrcp.pop %v2749
        %v3432 = vrcp.pop %v2752
        %v3433 = vrcp.pop %v2755
        %v3434 = vrcp.pop %v2758
        %v3435 = vrcp.pop %v2761
        %v3436 = vrcp.pop %v2764
        %v3437 = vrcp.pop %v2767
        %v3438 = vrcp.pop %v2770
        %v3439 = vrcp.pop %v2773
        %v3440 = vrcp.pop %v2776
        %v3441 = vrcp.pop %v2779
        %v3442 = vrcp.pop %v2782
        %v3443 = vrcp.pop %v2785
        %v3444 = vrcp.pop %v2788
        %v3445 = vrcp.pop %v2791
        %v3446 = vrcp.pop %v2794
        %v3447 = vrcp.pop %v2797
        %v3448 = vrcp.pop %v2800
        %v3449 = vrcp.pop %v2803
        %v3450 = vrcp.pop %v2806
        %v3451 = vrcp.pop %v2809
        %v3452 = vrcp.pop %v2812
        %v3453 = vrcp.pop %v2815
        %v3454 = vrcp.pop %v2818
        %v3455 = vrcp.pop %v2821
        %v3456 = vrcp.pop %v2824
        %v3457 = vrcp.pop %v2827
        %v3458 = vrcp.pop %v2830
        %v3459 = vrcp.pop %v2833
        %v3460 = vrcp.pop %v2836
        %v3461 = vrcp.pop %v2839
        %v3462 = vrcp.pop %v2842
        %v3463 = vrcp.pop %v2845
        %v3464 = vrcp.pop %v2848
        %v3465 = vrcp.pop %v2851
        %v3466 = vrcp.pop %v2854
        %v3467 = vrcp.pop %v2857
        %v3468 = vrcp.pop %v2860
        %v3469 = vrcp.pop %v2863
        %v3470 = vrcp.pop %v2866
        %v3471 = vrcp.pop %v2869
        %v3472 = vrcp.pop %v2872
        %v3473 = vrcp.pop %v2875
        %v3474 = vrcp.pop %v2878
        %v3475 = vrcp.pop %v2881
        %v3476 = vrcp.pop %v2884
        %v3477 = vrcp.pop %v2887
        %v3478 = vrcp.pop %v2890
        %v3479 = vrcp.pop %v2893
        %v3480 = vrcp.pop %v2896
        %v3481 = vrcp.pop %v2899
        %v3482 = vrcp.pop %v2902
        %v3483 = vrcp.pop %v2905
        %v3484 = vrcp.pop %v2908
        %v3485 = vrcp.pop %v2911
        %v3486 = vrcp.pop %v2914
        %v3487 = vrcp.pop %v2917
        %v3488 = vrcp.pop %v2920
        %v3489 = vrcp.pop %v2923
        %v3490 = vrcp.pop %v2926
        %v3491 = vrcp.pop %v2929
        %v3492 = vrcp.pop %v2932
        %v3493 = vrcp.pop %v2935
        %v3494 = vrcp.pop %v2938
        %v3495 = vrcp.pop %v2941
        %v3496 = vrcp.pop %v2944
        %v3497 = vrcp.pop %v2947
        %v3498 = vrcp.pop %v2950
        %v3499 = vrcp.pop %v2953
        %v3500 = vrcp.pop %v2956
        %v3501 = vrcp.pop %v2959
        %v3502 = vrcp.pop %v2962
        %v3503 = vrcp.pop %v2965
        %v3504 = vrcp.pop %v2968
        %v3505 = vrcp.pop %v2971
        %v3506 = vrcp.pop %v2974
        %v3507 = vrcp.pop %v2977
        %v3508 = vrcp.pop %v2980
        %v3509 = vrcp.pop %v2983
        %v3510 = vrcp.pop %v2986
        %v3511 = vrcp.pop %v2989
        %v3512 = vrcp.pop %v2992
        %v3513 = vrcp.pop %v2995
        %v3514 = vrcp.pop %v2998
        %v3515 = vrcp.pop %v3001
        %v3516 = vrcp.pop %v3004
        %v3517 = vrcp.pop %v3007
        %v3518 = vrcp.pop %v3010
        %v3519 = vrcp.pop %v3013
        %v3520 = vrcp.pop %v3016
        %v3521 = vrcp.pop %v3019
        %v3522 = vrcp.pop %v3022
        %v3523 = vrcp.pop %v3025
        %v3524 = vrcp.pop %v3028
        %v3525 = vrcp.pop %v3031
        %v3526 = vrcp.pop %v3034
        %v3527 = vrcp.pop %v3037
        %v3528 = vrcp.pop %v3040
        %v3529 = vrcp.pop %v3043
        %v3530 = vrcp.pop %v3046
        %v3659 = vlaneseq
        %v3660 = vand.u32 %v3659, 127
        %v3661 = vlaneseq
        %v3662 = vshrl.u32 %v3661, 7
        %v3663 = vsub.s32 %v3660, %v3662
        %v3664 = vrot.slane %v3403, %v3663
        %v3665 = vadd.s32 %v3660, 4294967288
        %v3666 = vlaneseq
        %v3667 = vshrl.u32 %v3666, 7
        %v3668 = vsub.s32 %v3665, %v3667
        %v3669 = vrot.slane %v3404, %v3668
        %vm3670 = vcmask 130112
        %v3671 = vsel %vm3670, %v3669, %v3664
        %v3672 = vadd.s32 %v3660, 4294967280
        %v3673 = vlaneseq
        %v3674 = vshrl.u32 %v3673, 7
        %v3675 = vsub.s32 %v3672, %v3674
        %v3676 = vrot.slane %v3405, %v3675
        %vm3677 = vcmask 195712
        %v3678 = vsel %vm3677, %v3676, %v3671
        %v3679 = vadd.s32 %v3660, 4294967272
        %v3680 = vlaneseq
        %v3681 = vshrl.u32 %v3680, 7
        %v3682 = vsub.s32 %v3679, %v3681
        %v3683 = vrot.slane %v3406, %v3682
        %vm3684 = vcmask 261312
        %v3685 = vsel %vm3684, %v3683, %v3678
        %v3686 = vadd.s32 %v3660, 4294967264
        %v3687 = vlaneseq
        %v3688 = vshrl.u32 %v3687, 7
        %v3689 = vsub.s32 %v3686, %v3688
        %v3690 = vrot.slane %v3407, %v3689
        %vm3691 = vcmask 326912
        %v3692 = vsel %vm3691, %v3690, %v3685
        %v3693 = vadd.s32 %v3660, 4294967256
        %v3694 = vlaneseq
        %v3695 = vshrl.u32 %v3694, 7
        %v3696 = vsub.s32 %v3693, %v3695
        %v3697 = vrot.slane %v3408, %v3696
        %vm3698 = vcmask 392512
        %v3699 = vsel %vm3698, %v3697, %v3692
        %v3700 = vadd.s32 %v3660, 4294967248
        %v3701 = vlaneseq
        %v3702 = vshrl.u32 %v3701, 7
        %v3703 = vsub.s32 %v3700, %v3702
        %v3704 = vrot.slane %v3409, %v3703
        %vm3705 = vcmask 458112
        %v3706 = vsel %vm3705, %v3704, %v3699
        %v3707 = vadd.s32 %v3660, 4294967240
        %v3708 = vlaneseq
        %v3709 = vshrl.u32 %v3708, 7
        %v3710 = vsub.s32 %v3707, %v3709
        %v3711 = vrot.slane %v3410, %v3710
        %vm3712 = vcmask 523712
        %v3713 = vsel %vm3712, %v3711, %v3706
        %v3714 = vadd.s32 %v3660, 4294967232
        %v3715 = vlaneseq
        %v3716 = vshrl.u32 %v3715, 7
        %v3717 = vsub.s32 %v3714, %v3716
        %v3718 = vrot.slane %v3411, %v3717
        %vm3719 = vcmask 589312
        %v3720 = vsel %vm3719, %v3718, %v3713
        %v3721 = vadd.s32 %v3660, 4294967224
        %v3722 = vlaneseq
        %v3723 = vshrl.u32 %v3722, 7
        %v3724 = vsub.s32 %v3721, %v3723
        %v3725 = vrot.slane %v3412, %v3724
        %vm3726 = vcmask 654912
        %v3727 = vsel %vm3726, %v3725, %v3720
        %v3728 = vadd.s32 %v3660, 4294967216
        %v3729 = vlaneseq
        %v3730 = vshrl.u32 %v3729, 7
        %v3731 = vsub.s32 %v3728, %v3730
        %v3732 = vrot.slane %v3413, %v3731
        %vm3733 = vcmask 720512
        %v3734 = vsel %vm3733, %v3732, %v3727
        %v3735 = vadd.s32 %v3660, 4294967208
        %v3736 = vlaneseq
        %v3737 = vshrl.u32 %v3736, 7
        %v3738 = vsub.s32 %v3735, %v3737
        %v3739 = vrot.slane %v3414, %v3738
        %vm3740 = vcmask 786112
        %v3741 = vsel %vm3740, %v3739, %v3734
        %v3742 = vadd.s32 %v3660, 4294967200
        %v3743 = vlaneseq
        %v3744 = vshrl.u32 %v3743, 7
        %v3745 = vsub.s32 %v3742, %v3744
        %v3746 = vrot.slane %v3415, %v3745
        %vm3747 = vcmask 851712
        %v3748 = vsel %vm3747, %v3746, %v3741
        %v3749 = vadd.s32 %v3660, 4294967192
        %v3750 = vlaneseq
        %v3751 = vshrl.u32 %v3750, 7
        %v3752 = vsub.s32 %v3749, %v3751
        %v3753 = vrot.slane %v3416, %v3752
        %vm3754 = vcmask 917312
        %v3755 = vsel %vm3754, %v3753, %v3748
        %v3756 = vadd.s32 %v3660, 4294967184
        %v3757 = vlaneseq
        %v3758 = vshrl.u32 %v3757, 7
        %v3759 = vsub.s32 %v3756, %v3758
        %v3760 = vrot.slane %v3417, %v3759
        %vm3761 = vcmask 982912
        %v3762 = vsel %vm3761, %v3760, %v3755
        %v3763 = vadd.s32 %v3660, 4294967176
        %v3764 = vlaneseq
        %v3765 = vshrl.u32 %v3764, 7
        %v3766 = vsub.s32 %v3763, %v3765
        %v3767 = vrot.slane %v3418, %v3766
        %vm3768 = vcmask 1048512
        %v3769 = vsel %vm3768, %v3767, %v3762
        %v3770 = vlaneseq
        %v3771 = vshrl.u32 %v3770, 7
        %v3772 = vsub.s32 %v3660, %v3771
        %v3773 = vrot.slane %v3419, %v3772
        %v3774 = vlaneseq
        %v3775 = vshrl.u32 %v3774, 7
        %v3776 = vsub.s32 %v3665, %v3775
        %v3777 = vrot.slane %v3420, %v3776
        %v3778 = vsel %vm3670, %v3777, %v3773
        %v3779 = vlaneseq
        %v3780 = vshrl.u32 %v3779, 7
        %v3781 = vsub.s32 %v3672, %v3780
        %v3782 = vrot.slane %v3421, %v3781
        %v3783 = vsel %vm3677, %v3782, %v3778
        %v3784 = vlaneseq
        %v3785 = vshrl.u32 %v3784, 7
        %v3786 = vsub.s32 %v3679, %v3785
        %v3787 = vrot.slane %v3422, %v3786
        %v3788 = vsel %vm3684, %v3787, %v3783
        %v3789 = vlaneseq
        %v3790 = vshrl.u32 %v3789, 7
        %v3791 = vsub.s32 %v3686, %v3790
        %v3792 = vrot.slane %v3423, %v3791
        %v3793 = vsel %vm3691, %v3792, %v3788
        %v3794 = vlaneseq
        %v3795 = vshrl.u32 %v3794, 7
        %v3796 = vsub.s32 %v3693, %v3795
        %v3797 = vrot.slane %v3424, %v3796
        %v3798 = vsel %vm3698, %v3797, %v3793
        %v3799 = vlaneseq
        %v3800 = vshrl.u32 %v3799, 7
        %v3801 = vsub.s32 %v3700, %v3800
        %v3802 = vrot.slane %v3425, %v3801
        %v3803 = vsel %vm3705, %v3802, %v3798
        %v3804 = vlaneseq
        %v3805 = vshrl.u32 %v3804, 7
        %v3806 = vsub.s32 %v3707, %v3805
        %v3807 = vrot.slane %v3426, %v3806
        %v3808 = vsel %vm3712, %v3807, %v3803
        %v3809 = vlaneseq
        %v3810 = vshrl.u32 %v3809, 7
        %v3811 = vsub.s32 %v3714, %v3810
        %v3812 = vrot.slane %v3427, %v3811
        %v3813 = vsel %vm3719, %v3812, %v3808
        %v3814 = vlaneseq
        %v3815 = vshrl.u32 %v3814, 7
        %v3816 = vsub.s32 %v3721, %v3815
        %v3817 = vrot.slane %v3428, %v3816
        %v3818 = vsel %vm3726, %v3817, %v3813
        %v3819 = vlaneseq
        %v3820 = vshrl.u32 %v3819, 7
        %v3821 = vsub.s32 %v3728, %v3820
        %v3822 = vrot.slane %v3429, %v3821
        %v3823 = vsel %vm3733, %v3822, %v3818
        %v3824 = vlaneseq
        %v3825 = vshrl.u32 %v3824, 7
        %v3826 = vsub.s32 %v3735, %v3825
        %v3827 = vrot.slane %v3430, %v3826
        %v3828 = vsel %vm3740, %v3827, %v3823
        %v3829 = vlaneseq
        %v3830 = vshrl.u32 %v3829, 7
        %v3831 = vsub.s32 %v3742, %v3830
        %v3832 = vrot.slane %v3431, %v3831
        %v3833 = vsel %vm3747, %v3832, %v3828
        %v3834 = vlaneseq
        %v3835 = vshrl.u32 %v3834, 7
        %v3836 = vsub.s32 %v3749, %v3835
        %v3837 = vrot.slane %v3432, %v3836
        %v3838 = vsel %vm3754, %v3837, %v3833
        %v3839 = vlaneseq
        %v3840 = vshrl.u32 %v3839, 7
        %v3841 = vsub.s32 %v3756, %v3840
        %v3842 = vrot.slane %v3433, %v3841
        %v3843 = vsel %vm3761, %v3842, %v3838
        %v3844 = vlaneseq
        %v3845 = vshrl.u32 %v3844, 7
        %v3846 = vsub.s32 %v3763, %v3845
        %v3847 = vrot.slane %v3434, %v3846
        %v3848 = vsel %vm3768, %v3847, %v3843
        %v3849 = vlaneseq
        %v3850 = vshrl.u32 %v3849, 7
        %v3851 = vsub.s32 %v3660, %v3850
        %v3852 = vrot.slane %v3435, %v3851
        %v3853 = vlaneseq
        %v3854 = vshrl.u32 %v3853, 7
        %v3855 = vsub.s32 %v3665, %v3854
        %v3856 = vrot.slane %v3436, %v3855
        %v3857 = vsel %vm3670, %v3856, %v3852
        %v3858 = vlaneseq
        %v3859 = vshrl.u32 %v3858, 7
        %v3860 = vsub.s32 %v3672, %v3859
        %v3861 = vrot.slane %v3437, %v3860
        %v3862 = vsel %vm3677, %v3861, %v3857
        %v3863 = vlaneseq
        %v3864 = vshrl.u32 %v3863, 7
        %v3865 = vsub.s32 %v3679, %v3864
        %v3866 = vrot.slane %v3438, %v3865
        %v3867 = vsel %vm3684, %v3866, %v3862
        %v3868 = vlaneseq
        %v3869 = vshrl.u32 %v3868, 7
        %v3870 = vsub.s32 %v3686, %v3869
        %v3871 = vrot.slane %v3439, %v3870
        %v3872 = vsel %vm3691, %v3871, %v3867
        %v3873 = vlaneseq
        %v3874 = vshrl.u32 %v3873, 7
        %v3875 = vsub.s32 %v3693, %v3874
        %v3876 = vrot.slane %v3440, %v3875
        %v3877 = vsel %vm3698, %v3876, %v3872
        %v3878 = vlaneseq
        %v3879 = vshrl.u32 %v3878, 7
        %v3880 = vsub.s32 %v3700, %v3879
        %v3881 = vrot.slane %v3441, %v3880
        %v3882 = vsel %vm3705, %v3881, %v3877
        %v3883 = vlaneseq
        %v3884 = vshrl.u32 %v3883, 7
        %v3885 = vsub.s32 %v3707, %v3884
        %v3886 = vrot.slane %v3442, %v3885
        %v3887 = vsel %vm3712, %v3886, %v3882
        %v3888 = vlaneseq
        %v3889 = vshrl.u32 %v3888, 7
        %v3890 = vsub.s32 %v3714, %v3889
        %v3891 = vrot.slane %v3443, %v3890
        %v3892 = vsel %vm3719, %v3891, %v3887
        %v3893 = vlaneseq
        %v3894 = vshrl.u32 %v3893, 7
        %v3895 = vsub.s32 %v3721, %v3894
        %v3896 = vrot.slane %v3444, %v3895
        %v3897 = vsel %vm3726, %v3896, %v3892
        %v3898 = vlaneseq
        %v3899 = vshrl.u32 %v3898, 7
        %v3900 = vsub.s32 %v3728, %v3899
        %v3901 = vrot.slane %v3445, %v3900
        %v3902 = vsel %vm3733, %v3901, %v3897
        %v3903 = vlaneseq
        %v3904 = vshrl.u32 %v3903, 7
        %v3905 = vsub.s32 %v3735, %v3904
        %v3906 = vrot.slane %v3446, %v3905
        %v3907 = vsel %vm3740, %v3906, %v3902
        %v3908 = vlaneseq
        %v3909 = vshrl.u32 %v3908, 7
        %v3910 = vsub.s32 %v3742, %v3909
        %v3911 = vrot.slane %v3447, %v3910
        %v3912 = vsel %vm3747, %v3911, %v3907
        %v3913 = vlaneseq
        %v3914 = vshrl.u32 %v3913, 7
        %v3915 = vsub.s32 %v3749, %v3914
        %v3916 = vrot.slane %v3448, %v3915
        %v3917 = vsel %vm3754, %v3916, %v3912
        %v3918 = vlaneseq
        %v3919 = vshrl.u32 %v3918, 7
        %v3920 = vsub.s32 %v3756, %v3919
        %v3921 = vrot.slane %v3449, %v3920
        %v3922 = vsel %vm3761, %v3921, %v3917
        %v3923 = vlaneseq
        %v3924 = vshrl.u32 %v3923, 7
        %v3925 = vsub.s32 %v3763, %v3924
        %v3926 = vrot.slane %v3450, %v3925
        %v3927 = vsel %vm3768, %v3926, %v3922
        %v3928 = vlaneseq
        %v3929 = vshrl.u32 %v3928, 7
        %v3930 = vsub.s32 %v3660, %v3929
        %v3931 = vrot.slane %v3451, %v3930
        %v3932 = vlaneseq
        %v3933 = vshrl.u32 %v3932, 7
        %v3934 = vsub.s32 %v3665, %v3933
        %v3935 = vrot.slane %v3452, %v3934
        %v3936 = vsel %vm3670, %v3935, %v3931
        %v3937 = vlaneseq
        %v3938 = vshrl.u32 %v3937, 7
        %v3939 = vsub.s32 %v3672, %v3938
        %v3940 = vrot.slane %v3453, %v3939
        %v3941 = vsel %vm3677, %v3940, %v3936
        %v3942 = vlaneseq
        %v3943 = vshrl.u32 %v3942, 7
        %v3944 = vsub.s32 %v3679, %v3943
        %v3945 = vrot.slane %v3454, %v3944
        %v3946 = vsel %vm3684, %v3945, %v3941
        %v3947 = vlaneseq
        %v3948 = vshrl.u32 %v3947, 7
        %v3949 = vsub.s32 %v3686, %v3948
        %v3950 = vrot.slane %v3455, %v3949
        %v3951 = vsel %vm3691, %v3950, %v3946
        %v3952 = vlaneseq
        %v3953 = vshrl.u32 %v3952, 7
        %v3954 = vsub.s32 %v3693, %v3953
        %v3955 = vrot.slane %v3456, %v3954
        %v3956 = vsel %vm3698, %v3955, %v3951
        %v3957 = vlaneseq
        %v3958 = vshrl.u32 %v3957, 7
        %v3959 = vsub.s32 %v3700, %v3958
        %v3960 = vrot.slane %v3457, %v3959
        %v3961 = vsel %vm3705, %v3960, %v3956
        %v3962 = vlaneseq
        %v3963 = vshrl.u32 %v3962, 7
        %v3964 = vsub.s32 %v3707, %v3963
        %v3965 = vrot.slane %v3458, %v3964
        %v3966 = vsel %vm3712, %v3965, %v3961
        %v3967 = vlaneseq
        %v3968 = vshrl.u32 %v3967, 7
        %v3969 = vsub.s32 %v3714, %v3968
        %v3970 = vrot.slane %v3459, %v3969
        %v3971 = vsel %vm3719, %v3970, %v3966
        %v3972 = vlaneseq
        %v3973 = vshrl.u32 %v3972, 7
        %v3974 = vsub.s32 %v3721, %v3973
        %v3975 = vrot.slane %v3460, %v3974
        %v3976 = vsel %vm3726, %v3975, %v3971
        %v3977 = vlaneseq
        %v3978 = vshrl.u32 %v3977, 7
        %v3979 = vsub.s32 %v3728, %v3978
        %v3980 = vrot.slane %v3461, %v3979
        %v3981 = vsel %vm3733, %v3980, %v3976
        %v3982 = vlaneseq
        %v3983 = vshrl.u32 %v3982, 7
        %v3984 = vsub.s32 %v3735, %v3983
        %v3985 = vrot.slane %v3462, %v3984
        %v3986 = vsel %vm3740, %v3985, %v3981
        %v3987 = vlaneseq
        %v3988 = vshrl.u32 %v3987, 7
        %v3989 = vsub.s32 %v3742, %v3988
        %v3990 = vrot.slane %v3463, %v3989
        %v3991 = vsel %vm3747, %v3990, %v3986
        %v3992 = vlaneseq
        %v3993 = vshrl.u32 %v3992, 7
        %v3994 = vsub.s32 %v3749, %v3993
        %v3995 = vrot.slane %v3464, %v3994
        %v3996 = vsel %vm3754, %v3995, %v3991
        %v3997 = vlaneseq
        %v3998 = vshrl.u32 %v3997, 7
        %v3999 = vsub.s32 %v3756, %v3998
        %v4000 = vrot.slane %v3465, %v3999
        %v4001 = vsel %vm3761, %v4000, %v3996
        %v4002 = vlaneseq
        %v4003 = vshrl.u32 %v4002, 7
        %v4004 = vsub.s32 %v3763, %v4003
        %v4005 = vrot.slane %v3466, %v4004
        %v4006 = vsel %vm3768, %v4005, %v4001
        %v4007 = vlaneseq
        %v4008 = vshrl.u32 %v4007, 7
        %v4009 = vsub.s32 %v3660, %v4008
        %v4010 = vrot.slane %v3467, %v4009
        %v4011 = vlaneseq
        %v4012 = vshrl.u32 %v4011, 7
        %v4013 = vsub.s32 %v3665, %v4012
        %v4014 = vrot.slane %v3468, %v4013
        %v4015 = vsel %vm3670, %v4014, %v4010
        %v4016 = vlaneseq
        %v4017 = vshrl.u32 %v4016, 7
        %v4018 = vsub.s32 %v3672, %v4017
        %v4019 = vrot.slane %v3469, %v4018
        %v4020 = vsel %vm3677, %v4019, %v4015
        %v4021 = vlaneseq
        %v4022 = vshrl.u32 %v4021, 7
        %v4023 = vsub.s32 %v3679, %v4022
        %v4024 = vrot.slane %v3470, %v4023
        %v4025 = vsel %vm3684, %v4024, %v4020
        %v4026 = vlaneseq
        %v4027 = vshrl.u32 %v4026, 7
        %v4028 = vsub.s32 %v3686, %v4027
        %v4029 = vrot.slane %v3471, %v4028
        %v4030 = vsel %vm3691, %v4029, %v4025
        %v4031 = vlaneseq
        %v4032 = vshrl.u32 %v4031, 7
        %v4033 = vsub.s32 %v3693, %v4032
        %v4034 = vrot.slane %v3472, %v4033
        %v4035 = vsel %vm3698, %v4034, %v4030
        %v4036 = vlaneseq
        %v4037 = vshrl.u32 %v4036, 7
        %v4038 = vsub.s32 %v3700, %v4037
        %v4039 = vrot.slane %v3473, %v4038
        %v4040 = vsel %vm3705, %v4039, %v4035
        %v4041 = vlaneseq
        %v4042 = vshrl.u32 %v4041, 7
        %v4043 = vsub.s32 %v3707, %v4042
        %v4044 = vrot.slane %v3474, %v4043
        %v4045 = vsel %vm3712, %v4044, %v4040
        %v4046 = vlaneseq
        %v4047 = vshrl.u32 %v4046, 7
        %v4048 = vsub.s32 %v3714, %v4047
        %v4049 = vrot.slane %v3475, %v4048
        %v4050 = vsel %vm3719, %v4049, %v4045
        %v4051 = vlaneseq
        %v4052 = vshrl.u32 %v4051, 7
        %v4053 = vsub.s32 %v3721, %v4052
        %v4054 = vrot.slane %v3476, %v4053
        %v4055 = vsel %vm3726, %v4054, %v4050
        %v4056 = vlaneseq
        %v4057 = vshrl.u32 %v4056, 7
        %v4058 = vsub.s32 %v3728, %v4057
        %v4059 = vrot.slane %v3477, %v4058
        %v4060 = vsel %vm3733, %v4059, %v4055
        %v4061 = vlaneseq
        %v4062 = vshrl.u32 %v4061, 7
        %v4063 = vsub.s32 %v3735, %v4062
        %v4064 = vrot.slane %v3478, %v4063
        %v4065 = vsel %vm3740, %v4064, %v4060
        %v4066 = vlaneseq
        %v4067 = vshrl.u32 %v4066, 7
        %v4068 = vsub.s32 %v3742, %v4067
        %v4069 = vrot.slane %v3479, %v4068
        %v4070 = vsel %vm3747, %v4069, %v4065
        %v4071 = vlaneseq
        %v4072 = vshrl.u32 %v4071, 7
        %v4073 = vsub.s32 %v3749, %v4072
        %v4074 = vrot.slane %v3480, %v4073
        %v4075 = vsel %vm3754, %v4074, %v4070
        %v4076 = vlaneseq
        %v4077 = vshrl.u32 %v4076, 7
        %v4078 = vsub.s32 %v3756, %v4077
        %v4079 = vrot.slane %v3481, %v4078
        %v4080 = vsel %vm3761, %v4079, %v4075
        %v4081 = vlaneseq
        %v4082 = vshrl.u32 %v4081, 7
        %v4083 = vsub.s32 %v3763, %v4082
        %v4084 = vrot.slane %v3482, %v4083
        %v4085 = vsel %vm3768, %v4084, %v4080
        %v4086 = vlaneseq
        %v4087 = vshrl.u32 %v4086, 7
        %v4088 = vsub.s32 %v3660, %v4087
        %v4089 = vrot.slane %v3483, %v4088
        %v4090 = vlaneseq
        %v4091 = vshrl.u32 %v4090, 7
        %v4092 = vsub.s32 %v3665, %v4091
        %v4093 = vrot.slane %v3484, %v4092
        %v4094 = vsel %vm3670, %v4093, %v4089
        %v4095 = vlaneseq
        %v4096 = vshrl.u32 %v4095, 7
        %v4097 = vsub.s32 %v3672, %v4096
        %v4098 = vrot.slane %v3485, %v4097
        %v4099 = vsel %vm3677, %v4098, %v4094
        %v4100 = vlaneseq
        %v4101 = vshrl.u32 %v4100, 7
        %v4102 = vsub.s32 %v3679, %v4101
        %v4103 = vrot.slane %v3486, %v4102
        %v4104 = vsel %vm3684, %v4103, %v4099
        %v4105 = vlaneseq
        %v4106 = vshrl.u32 %v4105, 7
        %v4107 = vsub.s32 %v3686, %v4106
        %v4108 = vrot.slane %v3487, %v4107
        %v4109 = vsel %vm3691, %v4108, %v4104
        %v4110 = vlaneseq
        %v4111 = vshrl.u32 %v4110, 7
        %v4112 = vsub.s32 %v3693, %v4111
        %v4113 = vrot.slane %v3488, %v4112
        %v4114 = vsel %vm3698, %v4113, %v4109
        %v4115 = vlaneseq
        %v4116 = vshrl.u32 %v4115, 7
        %v4117 = vsub.s32 %v3700, %v4116
        %v4118 = vrot.slane %v3489, %v4117
        %v4119 = vsel %vm3705, %v4118, %v4114
        %v4120 = vlaneseq
        %v4121 = vshrl.u32 %v4120, 7
        %v4122 = vsub.s32 %v3707, %v4121
        %v4123 = vrot.slane %v3490, %v4122
        %v4124 = vsel %vm3712, %v4123, %v4119
        %v4125 = vlaneseq
        %v4126 = vshrl.u32 %v4125, 7
        %v4127 = vsub.s32 %v3714, %v4126
        %v4128 = vrot.slane %v3491, %v4127
        %v4129 = vsel %vm3719, %v4128, %v4124
        %v4130 = vlaneseq
        %v4131 = vshrl.u32 %v4130, 7
        %v4132 = vsub.s32 %v3721, %v4131
        %v4133 = vrot.slane %v3492, %v4132
        %v4134 = vsel %vm3726, %v4133, %v4129
        %v4135 = vlaneseq
        %v4136 = vshrl.u32 %v4135, 7
        %v4137 = vsub.s32 %v3728, %v4136
        %v4138 = vrot.slane %v3493, %v4137
        %v4139 = vsel %vm3733, %v4138, %v4134
        %v4140 = vlaneseq
        %v4141 = vshrl.u32 %v4140, 7
        %v4142 = vsub.s32 %v3735, %v4141
        %v4143 = vrot.slane %v3494, %v4142
        %v4144 = vsel %vm3740, %v4143, %v4139
        %v4145 = vlaneseq
        %v4146 = vshrl.u32 %v4145, 7
        %v4147 = vsub.s32 %v3742, %v4146
        %v4148 = vrot.slane %v3495, %v4147
        %v4149 = vsel %vm3747, %v4148, %v4144
        %v4150 = vlaneseq
        %v4151 = vshrl.u32 %v4150, 7
        %v4152 = vsub.s32 %v3749, %v4151
        %v4153 = vrot.slane %v3496, %v4152
        %v4154 = vsel %vm3754, %v4153, %v4149
        %v4155 = vlaneseq
        %v4156 = vshrl.u32 %v4155, 7
        %v4157 = vsub.s32 %v3756, %v4156
        %v4158 = vrot.slane %v3497, %v4157
        %v4159 = vsel %vm3761, %v4158, %v4154
        %v4160 = vlaneseq
        %v4161 = vshrl.u32 %v4160, 7
        %v4162 = vsub.s32 %v3763, %v4161
        %v4163 = vrot.slane %v3498, %v4162
        %v4164 = vsel %vm3768, %v4163, %v4159
        %v4165 = vlaneseq
        %v4166 = vshrl.u32 %v4165, 7
        %v4167 = vsub.s32 %v3660, %v4166
        %v4168 = vrot.slane %v3499, %v4167
        %v4169 = vlaneseq
        %v4170 = vshrl.u32 %v4169, 7
        %v4171 = vsub.s32 %v3665, %v4170
        %v4172 = vrot.slane %v3500, %v4171
        %v4173 = vsel %vm3670, %v4172, %v4168
        %v4174 = vlaneseq
        %v4175 = vshrl.u32 %v4174, 7
        %v4176 = vsub.s32 %v3672, %v4175
        %v4177 = vrot.slane %v3501, %v4176
        %v4178 = vsel %vm3677, %v4177, %v4173
        %v4179 = vlaneseq
        %v4180 = vshrl.u32 %v4179, 7
        %v4181 = vsub.s32 %v3679, %v4180
        %v4182 = vrot.slane %v3502, %v4181
        %v4183 = vsel %vm3684, %v4182, %v4178
        %v4184 = vlaneseq
        %v4185 = vshrl.u32 %v4184, 7
        %v4186 = vsub.s32 %v3686, %v4185
        %v4187 = vrot.slane %v3503, %v4186
        %v4188 = vsel %vm3691, %v4187, %v4183
        %v4189 = vlaneseq
        %v4190 = vshrl.u32 %v4189, 7
        %v4191 = vsub.s32 %v3693, %v4190
        %v4192 = vrot.slane %v3504, %v4191
        %v4193 = vsel %vm3698, %v4192, %v4188
        %v4194 = vlaneseq
        %v4195 = vshrl.u32 %v4194, 7
        %v4196 = vsub.s32 %v3700, %v4195
        %v4197 = vrot.slane %v3505, %v4196
        %v4198 = vsel %vm3705, %v4197, %v4193
        %v4199 = vlaneseq
        %v4200 = vshrl.u32 %v4199, 7
        %v4201 = vsub.s32 %v3707, %v4200
        %v4202 = vrot.slane %v3506, %v4201
        %v4203 = vsel %vm3712, %v4202, %v4198
        %v4204 = vlaneseq
        %v4205 = vshrl.u32 %v4204, 7
        %v4206 = vsub.s32 %v3714, %v4205
        %v4207 = vrot.slane %v3507, %v4206
        %v4208 = vsel %vm3719, %v4207, %v4203
        %v4209 = vlaneseq
        %v4210 = vshrl.u32 %v4209, 7
        %v4211 = vsub.s32 %v3721, %v4210
        %v4212 = vrot.slane %v3508, %v4211
        %v4213 = vsel %vm3726, %v4212, %v4208
        %v4214 = vlaneseq
        %v4215 = vshrl.u32 %v4214, 7
        %v4216 = vsub.s32 %v3728, %v4215
        %v4217 = vrot.slane %v3509, %v4216
        %v4218 = vsel %vm3733, %v4217, %v4213
        %v4219 = vlaneseq
        %v4220 = vshrl.u32 %v4219, 7
        %v4221 = vsub.s32 %v3735, %v4220
        %v4222 = vrot.slane %v3510, %v4221
        %v4223 = vsel %vm3740, %v4222, %v4218
        %v4224 = vlaneseq
        %v4225 = vshrl.u32 %v4224, 7
        %v4226 = vsub.s32 %v3742, %v4225
        %v4227 = vrot.slane %v3511, %v4226
        %v4228 = vsel %vm3747, %v4227, %v4223
        %v4229 = vlaneseq
        %v4230 = vshrl.u32 %v4229, 7
        %v4231 = vsub.s32 %v3749, %v4230
        %v4232 = vrot.slane %v3512, %v4231
        %v4233 = vsel %vm3754, %v4232, %v4228
        %v4234 = vlaneseq
        %v4235 = vshrl.u32 %v4234, 7
        %v4236 = vsub.s32 %v3756, %v4235
        %v4237 = vrot.slane %v3513, %v4236
        %v4238 = vsel %vm3761, %v4237, %v4233
        %v4239 = vlaneseq
        %v4240 = vshrl.u32 %v4239, 7
        %v4241 = vsub.s32 %v3763, %v4240
        %v4242 = vrot.slane %v3514, %v4241
        %v4243 = vsel %vm3768, %v4242, %v4238
        %v4244 = vlaneseq
        %v4245 = vshrl.u32 %v4244, 7
        %v4246 = vsub.s32 %v3660, %v4245
        %v4247 = vrot.slane %v3515, %v4246
        %v4248 = vlaneseq
        %v4249 = vshrl.u32 %v4248, 7
        %v4250 = vsub.s32 %v3665, %v4249
        %v4251 = vrot.slane %v3516, %v4250
        %v4252 = vsel %vm3670, %v4251, %v4247
        %v4253 = vlaneseq
        %v4254 = vshrl.u32 %v4253, 7
        %v4255 = vsub.s32 %v3672, %v4254
        %v4256 = vrot.slane %v3517, %v4255
        %v4257 = vsel %vm3677, %v4256, %v4252
        %v4258 = vlaneseq
        %v4259 = vshrl.u32 %v4258, 7
        %v4260 = vsub.s32 %v3679, %v4259
        %v4261 = vrot.slane %v3518, %v4260
        %v4262 = vsel %vm3684, %v4261, %v4257
        %v4263 = vlaneseq
        %v4264 = vshrl.u32 %v4263, 7
        %v4265 = vsub.s32 %v3686, %v4264
        %v4266 = vrot.slane %v3519, %v4265
        %v4267 = vsel %vm3691, %v4266, %v4262
        %v4268 = vlaneseq
        %v4269 = vshrl.u32 %v4268, 7
        %v4270 = vsub.s32 %v3693, %v4269
        %v4271 = vrot.slane %v3520, %v4270
        %v4272 = vsel %vm3698, %v4271, %v4267
        %v4273 = vlaneseq
        %v4274 = vshrl.u32 %v4273, 7
        %v4275 = vsub.s32 %v3700, %v4274
        %v4276 = vrot.slane %v3521, %v4275
        %v4277 = vsel %vm3705, %v4276, %v4272
        %v4278 = vlaneseq
        %v4279 = vshrl.u32 %v4278, 7
        %v4280 = vsub.s32 %v3707, %v4279
        %v4281 = vrot.slane %v3522, %v4280
        %v4282 = vsel %vm3712, %v4281, %v4277
        %v4283 = vlaneseq
        %v4284 = vshrl.u32 %v4283, 7
        %v4285 = vsub.s32 %v3714, %v4284
        %v4286 = vrot.slane %v3523, %v4285
        %v4287 = vsel %vm3719, %v4286, %v4282
        %v4288 = vlaneseq
        %v4289 = vshrl.u32 %v4288, 7
        %v4290 = vsub.s32 %v3721, %v4289
        %v4291 = vrot.slane %v3524, %v4290
        %v4292 = vsel %vm3726, %v4291, %v4287
        %v4293 = vlaneseq
        %v4294 = vshrl.u32 %v4293, 7
        %v4295 = vsub.s32 %v3728, %v4294
        %v4296 = vrot.slane %v3525, %v4295
        %v4297 = vsel %vm3733, %v4296, %v4292
        %v4298 = vlaneseq
        %v4299 = vshrl.u32 %v4298, 7
        %v4300 = vsub.s32 %v3735, %v4299
        %v4301 = vrot.slane %v3526, %v4300
        %v4302 = vsel %vm3740, %v4301, %v4297
        %v4303 = vlaneseq
        %v4304 = vshrl.u32 %v4303, 7
        %v4305 = vsub.s32 %v3742, %v4304
        %v4306 = vrot.slane %v3527, %v4305
        %v4307 = vsel %vm3747, %v4306, %v4302
        %v4308 = vlaneseq
        %v4309 = vshrl.u32 %v4308, 7
        %v4310 = vsub.s32 %v3749, %v4309
        %v4311 = vrot.slane %v3528, %v4310
        %v4312 = vsel %vm3754, %v4311, %v4307
        %v4313 = vlaneseq
        %v4314 = vshrl.u32 %v4313, 7
        %v4315 = vsub.s32 %v3756, %v4314
        %v4316 = vrot.slane %v3529, %v4315
        %v4317 = vsel %vm3761, %v4316, %v4312
        %v4318 = vlaneseq
        %v4319 = vshrl.u32 %v4318, 7
        %v4320 = vsub.s32 %v3763, %v4319
        %v4321 = vrot.slane %v3530, %v4320
        %v4322 = vsel %vm3768, %v4321, %v4317
        %vm4323 = vcmask 1042434
        %v4324 = vsel %vm4323, %v3769, %v3769
        %vm4325 = vcmask 1043459
        %v4326 = vsel %vm4325, %v3769, %v4324
        %vm4327 = vcmask 1044484
        %v4328 = vsel %vm4327, %v3769, %v4326
        %vm4329 = vcmask 1045509
        %v4330 = vsel %vm4329, %v3769, %v4328
        %vm4331 = vcmask 1046534
        %v4332 = vsel %vm4331, %v3769, %v4330
        %vm4333 = vcmask 1047559
        %v4334 = vsel %vm4333, %v3769, %v4332
        %v4335 = vsel %vm4323, %v3848, %v3848
        %v4336 = vsel %vm4325, %v3848, %v4335
        %v4337 = vsel %vm4327, %v3848, %v4336
        %v4338 = vsel %vm4329, %v3848, %v4337
        %v4339 = vsel %vm4331, %v3848, %v4338
        %v4340 = vsel %vm4333, %v3848, %v4339
        %v4341 = vsel %vm4323, %v3927, %v3927
        %v4342 = vsel %vm4325, %v3927, %v4341
        %v4343 = vsel %vm4327, %v3927, %v4342
        %v4344 = vsel %vm4329, %v3927, %v4343
        %v4345 = vsel %vm4331, %v3927, %v4344
        %v4346 = vsel %vm4333, %v3927, %v4345
        %v4347 = vsel %vm4323, %v4006, %v4006
        %v4348 = vsel %vm4325, %v4006, %v4347
        %v4349 = vsel %vm4327, %v4006, %v4348
        %v4350 = vsel %vm4329, %v4006, %v4349
        %v4351 = vsel %vm4331, %v4006, %v4350
        %v4352 = vsel %vm4333, %v4006, %v4351
        %v4353 = vsel %vm4323, %v4085, %v4085
        %v4354 = vsel %vm4325, %v4085, %v4353
        %v4355 = vsel %vm4327, %v4085, %v4354
        %v4356 = vsel %vm4329, %v4085, %v4355
        %v4357 = vsel %vm4331, %v4085, %v4356
        %v4358 = vsel %vm4333, %v4085, %v4357
        %v4359 = vsel %vm4323, %v4164, %v4164
        %v4360 = vsel %vm4325, %v4164, %v4359
        %v4361 = vsel %vm4327, %v4164, %v4360
        %v4362 = vsel %vm4329, %v4164, %v4361
        %v4363 = vsel %vm4331, %v4164, %v4362
        %v4364 = vsel %vm4333, %v4164, %v4363
        %v4365 = vsel %vm4323, %v4243, %v4243
        %v4366 = vsel %vm4325, %v4243, %v4365
        %v4367 = vsel %vm4327, %v4243, %v4366
        %v4368 = vsel %vm4329, %v4243, %v4367
        %v4369 = vsel %vm4331, %v4243, %v4368
        %v4370 = vsel %vm4333, %v4243, %v4369
        %v4371 = vsel %vm4323, %v4322, %v4322
        %v4372 = vsel %vm4325, %v4322, %v4371
        %v4373 = vsel %vm4327, %v4322, %v4372
        %v4374 = vsel %vm4329, %v4322, %v4373
        %v4375 = vsel %vm4331, %v4322, %v4374
        %v4376 = vsel %vm4333, %v4322, %v4375
        %v4385 = vmul.f32 %v3226, %v4334
        %v4386 = vmul.f32 %v3228, %v4340
        %v4387 = vmul.f32 %v3230, %v4334
        %v4388 = vmul.f32 %v3232, %v4340
        %v4389 = vmul.f32 %v3236, %v4334
        %v4390 = vmul.f32 %v3238, %v4340
        %v4391 = vmul.f32 %v3240, %v4334
        %v4392 = vmul.f32 %v3242, %v4340
        %v4393 = vmul.f32 %v3279, %v4346
        %v4394 = vmul.f32 %v3281, %v4352
        %v4395 = vmul.f32 %v3283, %v4346
        %v4396 = vmul.f32 %v3285, %v4352
        %v4397 = vmul.f32 %v3289, %v4346
        %v4398 = vmul.f32 %v3291, %v4352
        %v4399 = vmul.f32 %v3293, %v4346
        %v4400 = vmul.f32 %v3295, %v4352
        %v4401 = vmul.f32 %v3332, %v4358
        %v4402 = vmul.f32 %v3334, %v4364
        %v4403 = vmul.f32 %v3336, %v4358
        %v4404 = vmul.f32 %v3338, %v4364
        %v4405 = vmul.f32 %v3342, %v4358
        %v4406 = vmul.f32 %v3344, %v4364
        %v4407 = vmul.f32 %v3346, %v4358
        %v4408 = vmul.f32 %v3348, %v4364
        %v4409 = vmul.f32 %v3385, %v4370
        %v4410 = vmul.f32 %v3387, %v4376
        %v4411 = vmul.f32 %v3389, %v4370
        %v4412 = vmul.f32 %v3391, %v4376
        %v4413 = vmul.f32 %v3395, %v4370
        %v4414 = vmul.f32 %v3397, %v4376
        %v4415 = vmul.f32 %v3399, %v4370
        %v4416 = vmul.f32 %v3401, %v4376
        %v4417 = vpack.c.bf16 %v4387, %v4385
        %v4418 = vpack.c.bf16 %v4388, %v4386
        %v4419 = vpack.c.bf16 %v4391, %v4389
        %v4420 = vpack.c.bf16 %v4392, %v4390
        %v4421 = vpack.c.bf16 %v4395, %v4393
        %v4422 = vpack.c.bf16 %v4396, %v4394
        %v4423 = vpack.c.bf16 %v4399, %v4397
        %v4424 = vpack.c.bf16 %v4400, %v4398
        %v4425 = vpack.c.bf16 %v4403, %v4401
        %v4426 = vpack.c.bf16 %v4404, %v4402
        %v4427 = vpack.c.bf16 %v4407, %v4405
        %v4428 = vpack.c.bf16 %v4408, %v4406
        %v4429 = vpack.c.bf16 %v4411, %v4409
        %v4430 = vpack.c.bf16 %v4412, %v4410
        %v4431 = vpack.c.bf16 %v4415, %v4413
        %v4432 = vpack.c.bf16 %v4416, %v4414
        %v4433 = vld [vmem:[%s2] sm:$0xf]
        %v4434 = vld [vmem:[%s2 + $0x4] sm:$0xf]
        %v4435 = vld [vmem:[%s2 + $0x8] sm:$0xf]
        %v4436 = vld [vmem:[%s2 + $0xc] sm:$0xf]
        %v4437 = vld [vmem:[%s3] sm:$0xff]
        %v4438 = vld [vmem:[%s3 + $0x8] sm:$0xff]
        %v4439 = vld [vmem:[%s3 + $0x10] sm:$0xff]
        %v4440 = vld [vmem:[%s3 + $0x18] sm:$0xff]
        %4442 = vset.pattern.permute.xlu0 0
        %4443 = vperm.xlu0 %4442, %v4437
        %v4444 = vpop.permute.xlu0 %4443
        %4447 = vset.pattern.permute.xlu0 0
        %4448 = vperm.xlu0 %4447, %v4438
        %v4449 = vpop.permute.xlu0 %4448
        %4452 = vset.pattern.permute.xlu0 0
        %4453 = vperm.xlu0 %4452, %v4439
        %v4454 = vpop.permute.xlu0 %4453
        %4457 = vset.pattern.permute.xlu0 0
        %4458 = vperm.xlu0 %4457, %v4440
        %v4459 = vpop.permute.xlu0 %4458
        %v4465 = vunpack.c.l.b16 %v4433
        %v4466 = vunpack.c.l.b16 %v4434
        %v4467 = vunpack.c.l.b16 %v4435
        %v4468 = vunpack.c.l.b16 %v4436
        %v4469 = vpack.c.b16 %v4466, %v4465
        %v4470 = vpack.c.b16 %v4468, %v4467
        %4473 = vmatprep.subr.bf16.mxu0 %v4418
        %4474 = vmatpush1.bf16.msra.mxu0 %v4417
        %4475 = vmatprep.subr.bf16.mxu0 %v4420
        %4476 = vmatpush1.bf16.msra.mxu0 %v4419
        %4477 = vmatprep.subr.bf16.mxu0 %v4422
        %4478 = vmatpush1.bf16.msra.mxu0 %v4421
        %4479 = vmatprep.subr.bf16.mxu0 %v4424
        %4480 = vmatpush1.bf16.msra.mxu0 %v4423
        %4481 = vmatprep.subr.bf16.mxu0 %v4426
        %4482 = vmatpush1.bf16.msra.mxu0 %v4425
        %4483 = vmatprep.subr.bf16.mxu0 %v4428
        %4484 = vmatpush1.bf16.msra.mxu0 %v4427
        %4485 = vmatprep.subr.bf16.mxu0 %v4430
        %4486 = vmatpush1.bf16.msra.mxu0 %v4429
        %4487 = vmatprep.subr.bf16.mxu0 %v4432
        %4488 = vmatpush1.bf16.msra.mxu0 %v4431
        %4489 = vmatprep.subr.bf16.mxu0 0
        %4490 = vmatpush1.bf16.msra.mxu0 0
        %4491 = vmatprep.subr.bf16.mxu0 0
        %4492 = vmatpush1.bf16.msra.mxu0 0
        %4493 = vmatprep.subr.bf16.mxu0 0
        %4494 = vmatpush1.bf16.msra.mxu0 0
        %4495 = vmatprep.subr.bf16.mxu0 0
        %4496 = vmatpush1.bf16.msra.mxu0 0
        %4497 = vmatprep.subr.bf16.mxu0 0
        %4498 = vmatpush1.bf16.msra.mxu0 0
        %4499 = vmatprep.subr.bf16.mxu0 0
        %4500 = vmatpush1.bf16.msra.mxu0 0
        %4501 = vmatprep.subr.bf16.mxu0 0
        %4502 = vmatpush1.bf16.msra.mxu0 0
        %4503 = vmatprep.subr.bf16.mxu0 0
        %4504 = vmatpush1.bf16.msra.mxu0 0
        %4505 = vmatprep.mubr.bf16.mxu0 0
        %4506 = vmatmul.mubr.bf16.gmra.mrb[0].mxu0 %v4469
        %v4507 = vpop.f32.mrb[0].mxu0
        %v4508 = vadd.f32 %v4444, %v4507
        %v4509 = vpop.f32.mrb[0].mxu0
        %v4510 = vadd.f32 %v4444, %v4509
        %v4511 = vpop.f32.mrb[0].mxu0
        %v4512 = vadd.f32 %v4449, %v4511
        %v4513 = vpop.f32.mrb[0].mxu0
        %v4514 = vadd.f32 %v4449, %v4513
        %4515 = vmatprep.mubr.bf16.mxu0 0
        %4516 = vmatmul.mubr.bf16.gmra.mrb[0].mxu0 %v4470
        %v4517 = vpop.f32.mrb[0].mxu0
        %v4518 = vadd.f32 %v4454, %v4517
        %v4519 = vpop.f32.mrb[0].mxu0
        %v4520 = vadd.f32 %v4454, %v4519
        %v4521 = vpop.f32.mrb[0].mxu0
        %v4522 = vadd.f32 %v4459, %v4521
        %v4523 = vpop.f32.mrb[0].mxu0
        %v4524 = vadd.f32 %v4459, %v4523
        %4525 = vdwg.mxu0
        %4526 = vst [vmem:[%s190] sm:$0xff] %v4508
        %4527 = vst [vmem:[%s190 + $0x8] sm:$0xff] %v4510
        %4528 = vst [vmem:[%s190 + $0x10] sm:$0xff] %v4512
        %4529 = vst [vmem:[%s190 + $0x18] sm:$0xff] %v4514
        %4530 = vst [vmem:[%s190 + $0x20] sm:$0xff] %v4518
        %4531 = vst [vmem:[%s190 + $0x28] sm:$0xff] %v4520
        %4532 = vst [vmem:[%s190 + $0x30] sm:$0xff] %v4522
        %4533 = vst [vmem:[%s190 + $0x38] sm:$0xff] %v4524
        %s4534 = sand.u32 %s115, 1
        %s4535 = scalar_lea.sflag [#allocation3], %s4534
        %s4536 = sand.u32 %s115, 1
        %s4537 = smul.addr %s4536, 64
        %s4538 = scalar_lea.vmem [#allocation2], %s4537
        // Predicated region
        $region37: #{tpu_custom_call.1} parent=35 // pred_check
          %p4539 = pneg %p125
        $region38: #{tpu_custom_call.1} parent=35 // pred_check_branch
          %4541 = sbr.rel (%p4539) target = $region40
        $region39: #{tpu_custom_call.1} parent=35 // pred_region
          %s4543 = ssub.s32 1024, 1024
          %4544 = vsyncadd %s4535, %s4543
          %s4545 = smul.addr %s18, 8
          %s4546 = smul.addr %s4545, 128
          %s4547 = scalar_lea.hbm %s4, %s4546
          %s4548 = sshll.u32 %s4538, 4
          %s4549 = int_to_ptr.vmem [resolvable:$true] %s4548
          %4554 = dma.vmem_to_hbm [thread:$0]  %s4549, 1024, %s4547, %s4535, 256, 256, 16
        $region40: #{tpu_custom_call.1} parent=35 // pred_fallthru
          _
      $region36: #{tpu_custom_call.1} parent=5 // pred_fallthru
        _
      %p4555 = scmp.le.s32.totalorder 2, %s13
      // Predicated region
      $region41: #{tpu_custom_call.1} parent=5 // pred_check
        %p4556 = pneg %p4555
      $region42: #{tpu_custom_call.1} parent=5 // pred_check_branch
        %4558 = sbr.rel (%p4556) target = $region44
      $region43: #{tpu_custom_call.1} parent=5 // pred_region
        %s4559 = ssub.s32 %s13, 2
        // Predicated region
        $region45: #{tpu_custom_call.1} parent=43 // pred_check
          %p4560 = pneg %p131
        $region46: #{tpu_custom_call.1} parent=43 // pred_check_branch
          %4562 = sbr.rel (%p4560) target = $region48
        $region47: #{tpu_custom_call.1} parent=43 // pred_region
          %s4563 = sand.u32 %s116, 1
          %s4564 = scalar_lea.sflag [#allocation3], %s4563
          %s4565 = sand.u32 %s116, 1
          %s4566 = smul.addr %s4565, 64
          %s4567 = scalar_lea.vmem [#allocation2], %s4566
          %4568 = dma.done %s4564, 1024
        $region48: #{tpu_custom_call.1} parent=43 // pred_fallthru
          _
      $region44: #{tpu_custom_call.1} parent=5 // pred_fallthru
        _
    $region6: #{tpu_custom_call.1} parent=1 // loop_footer
      %s17 = sadd.s32 1, %s13
    $region7: #{tpu_custom_call.1} parent=1 // loop_footer_branch
      %12 = sbr.rel target = $region3
    $region8: #{tpu_custom_call.1} parent=1 // loop_exit
      _
    %4569 = vsyncpa [#allocation3], 1
    %s4570 = scalar_lea.sflag [#allocation3], 1
    %4571 = vsyncpa %s4570, 1

</llo_original>
